<compile_context>
chip_gen: v6e
topology: v6e:2x2x1
jax: 0.10.0
libtpu: 0.0.40
codegen_flags: <defaults>
</compile_context>

<pallas_src>
import functools
import numpy as np
import jax
import jax.numpy as jnp
from jax.experimental import pallas as pl
from jax.experimental.pallas import tpu as pltpu


# ---------------------------------------------------------------------------
# per-generation tiling config (derived from physical VMEM capacity)
# ---------------------------------------------------------------------------
def _tpu_vmem_capacity_bytes():
    try:
        return int(pltpu.get_tpu_info().vmem_capacity_bytes)
    except Exception:
        return 64 * 1024 * 1024   # conservative (v7x-sized) fallback


_VMEM_CAP = _tpu_vmem_capacity_bytes()
if _VMEM_CAP >= 96 * 1024 * 1024:        # v5e / v6e: 128 MiB VMEM
    MAX_TILE_ROWS_K = 512                # per-(point, K) fused kernels
    _VMEM_LIMIT = 96 * 1024 * 1024
else:                                    # v7x: 64 MiB VMEM per TensorCore
    MAX_TILE_ROWS_K = 256
    _VMEM_LIMIT = 52 * 1024 * 1024
MAX_TILE_ROWS = 2048                     # per-point (2D) matmul kernels


# ---------------------------------------------------------------------------
# helpers: tiling with padding; always aim for >= 2 grid steps (v7x megacore)
# ---------------------------------------------------------------------------
def _round_up(x, m):
    return (x + m - 1) // m * m


def _pick_tile(m, max_tile, min_grid=2):
    tm = min(max_tile, _round_up(m, 8))
    while tm > 8 and _round_up(m, tm) // tm < min_grid:
        tm = _round_up(tm // 2, 8)
    return tm, _round_up(m, tm)


def _pad_rows(x, m_pad):
    m = x.shape[0]
    if m == m_pad:
        return x
    return jnp.pad(x, [(0, m_pad - m)] + [(0, 0)] * (x.ndim - 1))


# ---------------------------------------------------------------------------
# Kernel 1: 1x1 conv (matmul) + bias (BN scale already folded into W) + act
# ---------------------------------------------------------------------------
def _conv_bias_act_kernel(x_ref, w_ref, b_ref, o_ref, *, act):
    y = jnp.dot(x_ref[...].astype(jnp.bfloat16), w_ref[...],
                preferred_element_type=jnp.float32)
    y = y + b_ref[...]
    if act == "relu":
        y = jnp.maximum(y, 0.0)
    elif act == "leaky":
        y = jnp.where(y > 0, y, 0.2 * y)
    o_ref[...] = y.astype(o_ref.dtype)


def conv_bias_act(x, w, b, act="relu", out_dtype=jnp.float32):
    m, cin = x.shape
    cout = w.shape[1]
    tm, m_pad = _pick_tile(m, MAX_TILE_ROWS)
    xp = _pad_rows(x, m_pad)
    out = pl.pallas_call(
        functools.partial(_conv_bias_act_kernel, act=act),
        out_shape=jax.ShapeDtypeStruct((m_pad, cout), out_dtype),
        grid_spec=pltpu.PrefetchScalarGridSpec(
            num_scalar_prefetch=0,
            grid=(m_pad // tm,),
            in_specs=[
                pl.BlockSpec((tm, cin), lambda i: (i, 0)),
                pl.BlockSpec((cin, cout), lambda i: (0, 0)),
                pl.BlockSpec((1, cout), lambda i: (0, 0)),
            ],
            out_specs=pl.BlockSpec((tm, cout), lambda i: (i, 0)),
        ),
        compiler_params=pltpu.CompilerParams(
            dimension_semantics=("parallel",),
            vmem_limit_bytes=_VMEM_LIMIT),
    )(xp, w, b)
    return out[:m]


# ---------------------------------------------------------------------------
# Shared in-kernel softmax over the neighbor (K, axis=1) dimension (f32)
# ---------------------------------------------------------------------------
def _softmax_k(a):
    a = a - jnp.max(a, axis=1, keepdims=True)
    p = jnp.exp(a)
    return p * pl.reciprocal(jnp.sum(p, axis=1, keepdims=True), approx=True)


# ---------------------------------------------------------------------------
# Kernel 2 (fused Building_block stage 1):
#   relative-pos encoding -> bb.mlp1 (BN+ReLU)
#   -> att_pooling_1 (merged-column fc, softmax over K, weighted sum, mlp BN+ReLU)
#   -> bb.mlp2 (BN+ReLU) on f_xyz          (f_xyz never touches HBM)
# Outputs (bf16): f_pc_agg1 (tn, C2)  and  f_xyz2 (tn, K, C2)
# ---------------------------------------------------------------------------
def _lfa_stage1_kernel(xc_ref, xn_ref, fn_ref,
                       wdis_ref, wrel_ref, wctr_ref, wngh_ref, brel_ref,
                       wfc_n_ref, wfc_x_ref,
                       wmlp_n_ref, wmlp_x_ref, batt_ref,
                       wm2_ref, bm2_ref,
                       agg_ref, fxyz2_ref):
    xc = xc_ref[...]                     # (tn, 3)     center xyz
    xn = xn_ref[...]                     # (tn, K, 3)  neighbor xyz
    fn_bf = fn_ref[...]                  # (tn, K, C2) gathered point features (bf16)
    tn, k, c2 = fn_bf.shape

    rel = xc[:, None, :] - xn                                     # (tn, K, 3)
    dis = jnp.sqrt(jnp.sum(rel * rel, axis=-1, keepdims=True))    # (tn, K, 1)

    rel2 = rel.reshape(tn * k, 3)
    xn2 = xn.reshape(tn * k, 3)
    dis2 = dis.reshape(tn * k, 1)

    # 10-channel [dis, rel, center, neighbor] feature -> bb.mlp1 (BN folded, ReLU)
    # center contribution computed once per point, broadcast over K.
    ctr = jnp.dot(xc, wctr_ref[...], preferred_element_type=jnp.float32)   # (tn, C2)
    fx = (dis2 * wdis_ref[...]
          + jnp.dot(rel2, wrel_ref[...], preferred_element_type=jnp.float32)
          + jnp.dot(xn2, wngh_ref[...], preferred_element_type=jnp.float32))
    fx3 = jnp.maximum(fx.reshape(tn, k, c2) + ctr[:, None, :] + brel_ref[...], 0.0)
    fx2_bf = fx3.reshape(tn * k, c2).astype(jnp.bfloat16)

    # Att_pooling_1: fc of the concat expressed as two row-split matmuls with
    # merged output columns (no concat, half the MXU issues of the quadrant form)
    fn2_bf = fn_bf.reshape(tn * k, c2)
    att = (jnp.dot(fn2_bf, wfc_n_ref[...], preferred_element_type=jnp.float32)
           + jnp.dot(fx2_bf, wfc_x_ref[...], preferred_element_type=jnp.float32)
           ).reshape(tn, k, 2 * c2)
    att_n = att[:, :, :c2]
    att_x = att[:, :, c2:]

    agg_n = jnp.sum(fn_bf.astype(jnp.float32) * _softmax_k(att_n), axis=1)  # (tn, C2)
    agg_x = jnp.sum(fx3 * _softmax_k(att_x), axis=1)                        # (tn, C2)

    y = (jnp.dot(agg_n.astype(jnp.bfloat16), wmlp_n_ref[...],
                 preferred_element_type=jnp.float32)
         + jnp.dot(agg_x.astype(jnp.bfloat16), wmlp_x_ref[...],
                   preferred_element_type=jnp.float32)
         + batt_ref[...])
    agg_ref[...] = jnp.maximum(y, 0.0).astype(agg_ref.dtype)

    # bb.mlp2 (BN folded + ReLU) fused in: f_xyz2 written once (bf16)
    f2 = jnp.dot(fx2_bf, wm2_ref[...], preferred_element_type=jnp.float32) + bm2_ref[...]
    fxyz2_ref[...] = jnp.maximum(f2, 0.0).reshape(tn, k, c2).astype(fxyz2_ref.dtype)


def lfa_stage1(xyz_c, neigh_xyz, f_neigh, pp):
    m, k, _ = neigh_xyz.shape
    c2 = f_neigh.shape[-1]
    tn, m_pad = _pick_tile(m, MAX_TILE_ROWS_K)
    xc_p = _pad_rows(xyz_c, m_pad)
    xn_p = _pad_rows(neigh_xyz, m_pad)
    fn_p = _pad_rows(f_neigh, m_pad)

    def wspec(shape):
        return pl.BlockSpec(shape, lambda i: (0, 0))

    agg, fxyz2 = pl.pallas_call(
        _lfa_stage1_kernel,
        out_shape=(jax.ShapeDtypeStruct((m_pad, c2), jnp.bfloat16),
                   jax.ShapeDtypeStruct((m_pad, k, c2), jnp.bfloat16)),
        grid_spec=pltpu.PrefetchScalarGridSpec(
            num_scalar_prefetch=0,
            grid=(m_pad // tn,),
            in_specs=[
                pl.BlockSpec((tn, 3), lambda i: (i, 0)),
                pl.BlockSpec((tn, k, 3), lambda i: (i, 0, 0)),
                pl.BlockSpec((tn, k, c2), lambda i: (i, 0, 0)),
                wspec((1, c2)), wspec((3, c2)), wspec((3, c2)), wspec((3, c2)),
                wspec((1, c2)),
                wspec((c2, 2 * c2)), wspec((c2, 2 * c2)),
                wspec((c2, c2)), wspec((c2, c2)), wspec((1, c2)),
                wspec((c2, c2)), wspec((1, c2)),
            ],
            out_specs=[pl.BlockSpec((tn, c2), lambda i: (i, 0)),
                       pl.BlockSpec((tn, k, c2), lambda i: (i, 0, 0))],
        ),
        compiler_params=pltpu.CompilerParams(
            dimension_semantics=("parallel",),
            vmem_limit_bytes=_VMEM_LIMIT),
    )(xc_p, xn_p, fn_p,
      pp["bb1_w_dis"], pp["bb1_w_rel"], pp["bb1_w_ctr"], pp["bb1_w_ngh"], pp["bb1_b"],
      pp["att1_wfc_n"], pp["att1_wfc_x"],
      pp["att1_wmlp_n"], pp["att1_wmlp_x"], pp["att1_b"],
      pp["bb_mlp2_w"], pp["bb_mlp2_b"])
    return agg[:m], fxyz2[:m]


# ---------------------------------------------------------------------------
# Kernel 3 (fused Building_block stage 2 + residual head):
#   att_pooling_2 (merged-column fc, softmax over K, weighted sum, mlp BN+ReLU)
#   -> res mlp2 (BN, no act) + shortcut (BN, no act) -> leaky_relu(0.2)
# ---------------------------------------------------------------------------
def _lfa_stage2_res_kernel(fn_ref, fx_ref, fin_ref,
                           wfc_n_ref, wfc_x_ref,
                           wmlp_n_ref, wmlp_x_ref, batt_ref,
                           wres_ref, bres_ref, wsc_ref, bsc_ref,
                           o_ref):
    fn_bf = fn_ref[...]                  # (tn, K, C2) gathered f_pc_agg1 (bf16)
    fx_bf = fx_ref[...]                  # (tn, K, C2) f_xyz2 (bf16)
    tn, k, c2 = fn_bf.shape
    fn2 = fn_bf.reshape(tn * k, c2)
    fx2 = fx_bf.reshape(tn * k, c2)

    att = (jnp.dot(fn2, wfc_n_ref[...], preferred_element_type=jnp.float32)
           + jnp.dot(fx2, wfc_x_ref[...], preferred_element_type=jnp.float32)
           ).reshape(tn, k, 2 * c2)
    att_n = att[:, :, :c2]
    att_x = att[:, :, c2:]

    agg_n = jnp.sum(fn_bf.astype(jnp.float32) * _softmax_k(att_n), axis=1)  # (tn, C2)
    agg_x = jnp.sum(fx_bf.astype(jnp.float32) * _softmax_k(att_x), axis=1)  # (tn, C2)

    y = (jnp.dot(agg_n.astype(jnp.bfloat16), wmlp_n_ref[...],
                 preferred_element_type=jnp.float32)
         + jnp.dot(agg_x.astype(jnp.bfloat16), wmlp_x_ref[...],
                   preferred_element_type=jnp.float32)
         + batt_ref[...])
    y = jnp.maximum(y, 0.0)                                      # att2.mlp BN+ReLU

    z = (jnp.dot(y.astype(jnp.bfloat16), wres_ref[...],
                 preferred_element_type=jnp.float32) + bres_ref[...]
         + jnp.dot(fin_ref[...].astype(jnp.bfloat16), wsc_ref[...],
                   preferred_element_type=jnp.float32)
         + bsc_ref[...])
    o_ref[...] = jnp.where(z > 0, z, 0.2 * z).astype(o_ref.dtype)


def lfa_stage2_residual(f_neigh2, f_xyz2, f_in, pp, d_out):
    m, k, c2 = f_neigh2.shape
    d_in = f_in.shape[1]
    cout = 2 * d_out
    tn, m_pad = _pick_tile(m, MAX_TILE_ROWS_K)
    fn_p = _pad_rows(f_neigh2, m_pad)
    fx_p = _pad_rows(f_xyz2, m_pad)
    fin_p = _pad_rows(f_in, m_pad)

    def wspec(shape):
        return pl.BlockSpec(shape, lambda i: (0, 0))

    out = pl.pallas_call(
        _lfa_stage2_res_kernel,
        out_shape=jax.ShapeDtypeStruct((m_pad, cout), jnp.float32),
        grid_spec=pltpu.PrefetchScalarGridSpec(
            num_scalar_prefetch=0,
            grid=(m_pad // tn,),
            in_specs=[
                pl.BlockSpec((tn, k, c2), lambda i: (i, 0, 0)),
                pl.BlockSpec((tn, k, c2), lambda i: (i, 0, 0)),
                pl.BlockSpec((tn, d_in), lambda i: (i, 0)),
                wspec((c2, 2 * c2)), wspec((c2, 2 * c2)),
                wspec((c2, d_out)), wspec((c2, d_out)), wspec((1, d_out)),
                wspec((d_out, cout)), wspec((1, cout)),
                wspec((d_in, cout)), wspec((1, cout)),
            ],
            out_specs=pl.BlockSpec((tn, cout), lambda i: (i, 0)),
        ),
        compiler_params=pltpu.CompilerParams(
            dimension_semantics=("parallel",),
            vmem_limit_bytes=_VMEM_LIMIT),
    )(fn_p, fx_p, fin_p,
      pp["att2_wfc_n"], pp["att2_wfc_x"],
      pp["att2_wmlp_n"], pp["att2_wmlp_x"], pp["att2_b"],
      pp["mlp2_w"], pp["mlp2_b"], pp["sc_w"], pp["sc_b"])
    return out[:m]


# ---------------------------------------------------------------------------
# JAX glue: data-dependent neighbor gather (torch.gather equivalent).
# TODO(synk): fuse into the kernels via scalar-prefetched neigh_idx + DMA gather.
# ---------------------------------------------------------------------------
def gather_neighbour(pc, neigh_idx):
    # pc: (B, N, C); neigh_idx: (B, N, K) int32 -> (B, N, K, C)
    b, n, c = pc.shape
    k = neigh_idx.shape[-1]
    idx = neigh_idx.reshape(b, n * k)
    g = jnp.take_along_axis(pc, idx[:, :, None], axis=1)
    return g.reshape(b, n, k, c)


# ---------------------------------------------------------------------------
# Full Dilated_res_block forward
# ---------------------------------------------------------------------------
def dilated_res_block(pp, feature, xyz, neigh_idx, d_out):
    # feature: (B, d_in, N, 1) NCHW;  xyz: (B, N, 3);  neigh_idx: (B, N, K)
    b, d_in, n, _ = feature.shape
    k = neigh_idx.shape[-1]
    c2 = d_out // 2

    f = jnp.transpose(feature[..., 0], (0, 2, 1))                # (B, N, d_in)
    f_flat = f.reshape(b * n, d_in)

    # res-block mlp1: d_in -> d_out//2 (BN folded) + ReLU; bf16 out halves gather HBM
    f_pc = conv_bias_act(f_flat, pp["mlp1_w"], pp["mlp1_b"], act="relu",
                         out_dtype=jnp.bfloat16)                 # (B*N, C2) bf16

    # gathers (plain JAX); xyz_tile is NOT materialized (broadcast inside kernel)
    neigh_xyz = gather_neighbour(xyz, neigh_idx).reshape(b * n, k, 3)
    xyz_c = xyz.reshape(b * n, 3)
    f_neigh = gather_neighbour(f_pc.reshape(b, n, c2), neigh_idx).reshape(b * n, k, c2)

    # fused: relpos + bb.mlp1 + att_pool_1 + bb.mlp2  (bf16 outputs)
    f_pc_agg1, f_xyz2 = lfa_stage1(xyz_c, neigh_xyz, f_neigh, pp)

    f_neigh2 = gather_neighbour(f_pc_agg1.reshape(b, n, c2),
                                neigh_idx).reshape(b * n, k, c2)

    # fused: att_pool_2 + res mlp2 + shortcut + leaky_relu(0.2)
    out = lfa_stage2_residual(f_neigh2, f_xyz2, f_flat, pp, d_out)   # (B*N, 2*d_out)

    out = out.reshape(b, n, 2 * d_out)
    # TODO(synk): a lane-dense (B, 2*d_out, N) kernel output would avoid this transpose.
    return jnp.transpose(out, (0, 2, 1))[..., None]                  # (B, 2*d_out, N, 1)


# ---------------------------------------------------------------------------
# raw parameters (PyTorch-equivalent: conv weights as (Cin, Cout), BN stats)
# ---------------------------------------------------------------------------
def make_params(key, d_in, d_out):
    keys = list(jax.random.split(key, 64))
    it = iter(keys)

    def conv_w(cin, cout):
        return jax.random.normal(next(it), (cin, cout), jnp.float32) / np.sqrt(cin)

    def bn_fold(cout):
        gamma = 1.0 + 0.1 * jax.random.normal(next(it), (cout,), jnp.float32)
        beta = 0.1 * jax.random.normal(next(it), (cout,), jnp.float32)
        mean = 0.1 * jax.random.normal(next(it), (cout,), jnp.float32)
        var = jnp.abs(jax.random.normal(next(it), (cout,), jnp.float32)) + 0.5
        s = gamma / jnp.sqrt(var + 1e-5)
        bias = beta - mean * s
        return s.reshape(1, cout), bias.reshape(1, cout)

    p = {}
    p["mlp1_w"] = conv_w(d_in, d_out // 2)
    p["mlp1_s"], p["mlp1_b"] = bn_fold(d_out // 2)
    p["bb_mlp1_w"] = conv_w(10, d_out // 2)
    p["bb_mlp1_s"], p["bb_mlp1_b"] = bn_fold(d_out // 2)
    p["att1_wfc"] = conv_w(d_out, d_out)                 # bias=False, no BN
    p["att1_wmlp"] = conv_w(d_out, d_out // 2)
    p["att1_s"], p["att1_b"] = bn_fold(d_out // 2)
    p["bb_mlp2_w"] = conv_w(d_out // 2, d_out // 2)
    p["bb_mlp2_s"], p["bb_mlp2_b"] = bn_fold(d_out // 2)
    p["att2_wfc"] = conv_w(d_out, d_out)
    p["att2_wmlp"] = conv_w(d_out, d_out)
    p["att2_s"], p["att2_b"] = bn_fold(d_out)
    p["mlp2_w"] = conv_w(d_out, 2 * d_out)               # activation=None
    p["mlp2_s"], p["mlp2_b"] = bn_fold(2 * d_out)
    p["sc_w"] = conv_w(d_in, 2 * d_out)                  # activation=None
    p["sc_s"], p["sc_b"] = bn_fold(2 * d_out)
    return p


# ---------------------------------------------------------------------------
# parameter prep:
#  * BN scale folded into conv weights (kernels only add a bias)
#  * attention fc split by rows at the (f_neigh | f_xyz) concat boundary with
#    MERGED output columns (two (c2, 2c2) matmuls instead of four quadrants)
#  * bb.mlp1 weight pre-split by input group (dis | rel | center | neighbor)
#  * all big-matmul weights stored in bf16 (MXU-native), biases stay f32
# ---------------------------------------------------------------------------
def prepare_params(raw, d_in, d_out):
    c2 = d_out // 2
    bf16 = jnp.bfloat16

    def fold(w, s):
        return w * s          # (Cin, Cout) * (1, Cout)

    pp = {}
    pp["mlp1_w"] = fold(raw["mlp1_w"], raw["mlp1_s"]).astype(bf16)
    pp["mlp1_b"] = raw["mlp1_b"]

    w10 = fold(raw["bb_mlp1_w"], raw["bb_mlp1_s"])       # rows: [dis, rel, center, ngh]
    pp["bb1_w_dis"] = w10[0:1]
    pp["bb1_w_rel"] = w10[1:4]
    pp["bb1_w_ctr"] = w10[4:7]
    pp["bb1_w_ngh"] = w10[7:10]
    pp["bb1_b"] = raw["bb_mlp1_b"]

    wfc1 = raw["att1_wfc"]    # rows [:c2] act on f_neigh, [c2:] act on f_xyz
    pp["att1_wfc_n"] = wfc1[:c2, :].astype(bf16)         # (c2, 2c2) merged columns
    pp["att1_wfc_x"] = wfc1[c2:, :].astype(bf16)
    wm1 = fold(raw["att1_wmlp"], raw["att1_s"])
    pp["att1_wmlp_n"] = wm1[:c2].astype(bf16)
    pp["att1_wmlp_x"] = wm1[c2:].astype(bf16)
    pp["att1_b"] = raw["att1_b"]

    pp["bb_mlp2_w"] = fold(raw["bb_mlp2_w"], raw["bb_mlp2_s"]).astype(bf16)
    pp["bb_mlp2_b"] = raw["bb_mlp2_b"]

    wfc2 = raw["att2_wfc"]
    pp["att2_wfc_n"] = wfc2[:c2, :].astype(bf16)
    pp["att2_wfc_x"] = wfc2[c2:, :].astype(bf16)
    wm2 = fold(raw["att2_wmlp"], raw["att2_s"])
    pp["att2_wmlp_n"] = wm2[:c2].astype(bf16)
    pp["att2_wmlp_x"] = wm2[c2:].astype(bf16)
    pp["att2_b"] = raw["att2_b"]

    pp["mlp2_w"] = fold(raw["mlp2_w"], raw["mlp2_s"]).astype(bf16)
    pp["mlp2_b"] = raw["mlp2_b"]
    pp["sc_w"] = fold(raw["sc_w"], raw["sc_s"]).astype(bf16)
    pp["sc_b"] = raw["sc_b"]
    return pp


if __name__ == "__main__":
    B, N, K = 2, 16, 8
    d_in, d_out = 8, 16

    key = jax.random.PRNGKey(0)
    k_feat, k_xyz, k_idx, k_par = jax.random.split(key, 4)

    feature = jax.random.normal(k_feat, (B, d_in, N, 1), jnp.float32)   # NCHW
    xyz = jax.random.normal(k_xyz, (B, N, 3), jnp.float32)
    neigh_idx = jax.random.randint(k_idx, (B, N, K), 0, N, jnp.int32)

    raw_params = make_params(k_par, d_in, d_out)
    params = prepare_params(raw_params, d_in, d_out)

    fwd = jax.jit(functools.partial(dilated_res_block, d_out=d_out))
    out = fwd(params, feature, xyz, neigh_idx)
    jax.block_until_ready(out)

    assert out.shape == (B, 2 * d_out, N, 1), out.shape
    assert bool(jnp.all(jnp.isfinite(out)))
    print("KERNEL_OK")
</pallas_src>

<mosaic_0001>
module attributes {stable_mosaic.version = 11 : i64} {
  func.func @_conv_bias_act_kernel(%arg0: i32, %arg1: memref<16x8xf32, #tpu.memory_space<vmem>>, %arg2: memref<8x8xbf16, #tpu.memory_space<vmem>>, %arg3: memref<1x8xf32, #tpu.memory_space<vmem>>, %arg4: memref<16x8xbf16, #tpu.memory_space<vmem>>) attributes {dimension_semantics = [#tpu.dimension_semantics<parallel>], iteration_bounds = array<i64: 2>, scalar_prefetch = 0 : i64, scratch_operands = 0 : i64, tpu.core_type = #tpu.core_type<tc>, window_params = [{transform_indices = @transform_0, window_bounds = array<i64: 16, 8>}, {pipeline_mode = #tpu.pipeline_mode<synchronous>, transform_indices = @transform_1, window_bounds = array<i64: 8, 8>}, {pipeline_mode = #tpu.pipeline_mode<synchronous>, transform_indices = @transform_2, window_bounds = array<i64: 1, 8>}, {transform_indices = @transform_3, window_bounds = array<i64: 16, 8>}]} {
    %c0 = arith.constant 0 : index
    %c0_0 = arith.constant 0 : index
    %0 = vector.load %arg1[%c0, %c0_0] : memref<16x8xf32, #tpu.memory_space<vmem>>, vector<16x8xf32>
    %1 = arith.truncf %0 : vector<16x8xf32> to vector<16x8xbf16>
    %c0_1 = arith.constant 0 : index
    %c0_2 = arith.constant 0 : index
    %2 = vector.load %arg2[%c0_1, %c0_2] : memref<8x8xbf16, #tpu.memory_space<vmem>>, vector<8x8xbf16>
    %cst = arith.constant dense<0.000000e+00> : vector<16x8xf32>
    %3 = tpu.matmul %1, %2, %cst {dimension_numbers = #tpu.dot_dimension_numbers<[1], [0], [0], [1], [0, 0, 1, 1], [], []>} : vector<16x8xbf16>, vector<8x8xbf16>, vector<16x8xf32> -> vector<16x8xf32>
    %c0_3 = arith.constant 0 : index
    %c0_4 = arith.constant 0 : index
    %4 = vector.load %arg3[%c0_3, %c0_4] : memref<1x8xf32, #tpu.memory_space<vmem>>, vector<1x8xf32>
    %5 = vector.broadcast %4 : vector<1x8xf32> to vector<16x8xf32>
    %6 = arith.addf %3, %5 : vector<16x8xf32>
    %cst_5 = arith.constant 0.000000e+00 : f32
    %7 = vector.broadcast %cst_5 : f32 to vector<16x8xf32>
    %8 = arith.maximumf %6, %7 : vector<16x8xf32>
    %9 = arith.truncf %8 : vector<16x8xf32> to vector<16x8xbf16>
    %c0_6 = arith.constant 0 : index
    %c0_7 = arith.constant 0 : index
    %10 = vector.load %arg4[%c0_6, %c0_7] : memref<16x8xbf16, #tpu.memory_space<vmem>>, vector<16x8xbf16>
    tpu.vector_store %arg4[%c0_6, %c0_7], %9 {strides = array<i32>} : memref<16x8xbf16, #tpu.memory_space<vmem>>, vector<16x8xbf16>,
    return
  }
  func.func @transform_0(%arg0: i32) -> (i32, i32) {
    %c0_i32 = arith.constant 0 : i32
    %c0_i32_0 = arith.constant 0 : i32
    return %arg0, %c0_i32 : i32, i32
  }
  func.func @transform_1(%arg0: i32) -> (i32, i32) {
    %c0_i32 = arith.constant 0 : i32
    %c0_i32_0 = arith.constant 0 : i32
    %c0_i32_1 = arith.constant 0 : i32
    return %c0_i32, %c0_i32_0 : i32, i32
  }
  func.func @transform_2(%arg0: i32) -> (i32, i32) {
    %c0_i32 = arith.constant 0 : i32
    %c0_i32_0 = arith.constant 0 : i32
    %c0_i32_1 = arith.constant 0 : i32
    return %c0_i32, %c0_i32_0 : i32, i32
  }
  func.func @transform_3(%arg0: i32) -> (i32, i32) {
    %c0_i32 = arith.constant 0 : i32
    %c0_i32_0 = arith.constant 0 : i32
    return %arg0, %c0_i32 : i32, i32
  }
}

module attributes {stable_mosaic.version = 11 : i64} {
  func.func @_lfa_stage1_kernel(%arg0: i32, %arg1: memref<16x3xf32, #tpu.memory_space<vmem>>, %arg2: memref<16x8x3xf32, #tpu.memory_space<vmem>>, %arg3: memref<16x8x8xbf16, #tpu.memory_space<vmem>>, %arg4: memref<1x8xf32, #tpu.memory_space<vmem>>, %arg5: memref<3x8xf32, #tpu.memory_space<vmem>>, %arg6: memref<3x8xf32, #tpu.memory_space<vmem>>, %arg7: memref<3x8xf32, #tpu.memory_space<vmem>>, %arg8: memref<1x8xf32, #tpu.memory_space<vmem>>, %arg9: memref<8x16xbf16, #tpu.memory_space<vmem>>, %arg10: memref<8x16xbf16, #tpu.memory_space<vmem>>, %arg11: memref<8x8xbf16, #tpu.memory_space<vmem>>, %arg12: memref<8x8xbf16, #tpu.memory_space<vmem>>, %arg13: memref<1x8xf32, #tpu.memory_space<vmem>>, %arg14: memref<8x8xbf16, #tpu.memory_space<vmem>>, %arg15: memref<1x8xf32, #tpu.memory_space<vmem>>, %arg16: memref<16x8xbf16, #tpu.memory_space<vmem>>, %arg17: memref<16x8x8xbf16, #tpu.memory_space<vmem>>) attributes {dimension_semantics = [#tpu.dimension_semantics<parallel>], iteration_bounds = array<i64: 2>, scalar_prefetch = 0 : i64, scratch_operands = 0 : i64, tpu.core_type = #tpu.core_type<tc>, window_params = [{transform_indices = @transform_0, window_bounds = array<i64: 16, 3>}, {transform_indices = @transform_1, window_bounds = array<i64: 16, 8, 3>}, {transform_indices = @transform_2, window_bounds = array<i64: 16, 8, 8>}, {pipeline_mode = #tpu.pipeline_mode<synchronous>, transform_indices = @transform_3, window_bounds = array<i64: 1, 8>}, {pipeline_mode = #tpu.pipeline_mode<synchronous>, transform_indices = @transform_4, window_bounds = array<i64: 3, 8>}, {pipeline_mode = #tpu.pipeline_mode<synchronous>, transform_indices = @transform_5, window_bounds = array<i64: 3, 8>}, {pipeline_mode = #tpu.pipeline_mode<synchronous>, transform_indices = @transform_6, window_bounds = array<i64: 3, 8>}, {pipeline_mode = #tpu.pipeline_mode<synchronous>, transform_indices = @transform_7, window_bounds = array<i64: 1, 8>}, {pipeline_mode = #tpu.pipeline_mode<synchronous>, transform_indices = @transform_8, window_bounds = array<i64: 8, 16>}, {pipeline_mode = #tpu.pipeline_mode<synchronous>, transform_indices = @transform_9, window_bounds = array<i64: 8, 16>}, {pipeline_mode = #tpu.pipeline_mode<synchronous>, transform_indices = @transform_10, window_bounds = array<i64: 8, 8>}, {pipeline_mode = #tpu.pipeline_mode<synchronous>, transform_indices = @transform_11, window_bounds = array<i64: 8, 8>}, {pipeline_mode = #tpu.pipeline_mode<synchronous>, transform_indices = @transform_12, window_bounds = array<i64: 1, 8>}, {pipeline_mode = #tpu.pipeline_mode<synchronous>, transform_indices = @transform_13, window_bounds = array<i64: 8, 8>}, {pipeline_mode = #tpu.pipeline_mode<synchronous>, transform_indices = @transform_14, window_bounds = array<i64: 1, 8>}, {transform_indices = @transform_15, window_bounds = array<i64: 16, 8>}, {transform_indices = @transform_16, window_bounds = array<i64: 16, 8, 8>}]} {
    %c0 = arith.constant 0 : index
    %c0_0 = arith.constant 0 : index
    %0 = vector.load %arg1[%c0, %c0_0] : memref<16x3xf32, #tpu.memory_space<vmem>>, vector<16x3xf32>
    %c0_1 = arith.constant 0 : index
    %c0_2 = arith.constant 0 : index
    %c0_3 = arith.constant 0 : index
    %1 = vector.load %arg2[%c0_1, %c0_2, %c0_3] : memref<16x8x3xf32, #tpu.memory_space<vmem>>, vector<16x8x3xf32>
    %c0_4 = arith.constant 0 : index
    %c0_5 = arith.constant 0 : index
    %c0_6 = arith.constant 0 : index
    %2 = vector.load %arg3[%c0_4, %c0_5, %c0_6] : memref<16x8x8xbf16, #tpu.memory_space<vmem>>, vector<16x8x8xbf16>
    %3 = vector.shape_cast %0 : vector<16x3xf32> to vector<16x1x3xf32>
    %4 = vector.broadcast %3 : vector<16x1x3xf32> to vector<16x8x3xf32>
    %5 = arith.subf %4, %1 : vector<16x8x3xf32>
    %6 = arith.mulf %5, %5 : vector<16x8x3xf32>
    %cst = arith.constant dense<0.000000e+00> : vector<16x8xf32>
    %7 = vector.multi_reduction <add>, %6, %cst [2] : vector<16x8x3xf32> to vector<16x8xf32>
    %8 = vector.shape_cast %7 : vector<16x8xf32> to vector<16x8x1xf32>
    %9 = math.sqrt %8 : vector<16x8x1xf32>
    %10 = vector.shape_cast %5 : vector<16x8x3xf32> to vector<128x3xf32>
    %11 = vector.shape_cast %1 : vector<16x8x3xf32> to vector<128x3xf32>
    %12 = vector.shape_cast %9 : vector<16x8x1xf32> to vector<128x1xf32>
    %c0_7 = arith.constant 0 : index
    %c0_8 = arith.constant 0 : index
    %13 = vector.load %arg6[%c0_7, %c0_8] : memref<3x8xf32, #tpu.memory_space<vmem>>, vector<3x8xf32>
    %cst_9 = arith.constant dense<0.000000e+00> : vector<16x8xf32>
    %14 = tpu.matmul %0, %13, %cst_9 {dimension_numbers = #tpu.dot_dimension_numbers<[1], [0], [0], [1], [0, 0, 1, 1], [], []>} : vector<16x3xf32>, vector<3x8xf32>, vector<16x8xf32> -> vector<16x8xf32>
    %c0_10 = arith.constant 0 : index
    %c0_11 = arith.constant 0 : index
    %15 = vector.load %arg4[%c0_10, %c0_11] : memref<1x8xf32, #tpu.memory_space<vmem>>, vector<1x8xf32>
    %16 = vector.broadcast %12 : vector<128x1xf32> to vector<128x8xf32>
    %17 = vector.broadcast %15 : vector<1x8xf32> to vector<128x8xf32>
    %18 = arith.mulf %16, %17 : vector<128x8xf32>
    %c0_12 = arith.constant 0 : index
    %c0_13 = arith.constant 0 : index
    %19 = vector.load %arg5[%c0_12, %c0_13] : memref<3x8xf32, #tpu.memory_space<vmem>>, vector<3x8xf32>
    %cst_14 = arith.constant dense<0.000000e+00> : vector<128x8xf32>
    %20 = tpu.matmul %10, %19, %cst_14 {dimension_numbers = #tpu.dot_dimension_numbers<[1], [0], [0], [1], [0, 0, 1, 1], [], []>} : vector<128x3xf32>, vector<3x8xf32>, vector<128x8xf32> -> vector<128x8xf32>
    %21 = arith.addf %18, %20 : vector<128x8xf32>
    %c0_15 = arith.constant 0 : index
    %c0_16 = arith.constant 0 : index
    %22 = vector.load %arg7[%c0_15, %c0_16] : memref<3x8xf32, #tpu.memory_space<vmem>>, vector<3x8xf32>
    %cst_17 = arith.constant dense<0.000000e+00> : vector<128x8xf32>
    %23 = tpu.matmul %11, %22, %cst_17 {dimension_numbers = #tpu.dot_dimension_numbers<[1], [0], [0], [1], [0, 0, 1, 1], [], []>} : vector<128x3xf32>, vector<3x8xf32>, vector<128x8xf32> -> vector<128x8xf32>
    %24 = arith.addf %21, %23 : vector<128x8xf32>
    %25 = vector.shape_cast %24 : vector<128x8xf32> to vector<16x8x8xf32>
    %26 = vector.shape_cast %14 : vector<16x8xf32> to vector<16x1x8xf32>
    %27 = vector.broadcast %26 : vector<16x1x8xf32> to vector<16x8x8xf32>
    %28 = arith.addf %25, %27 : vector<16x8x8xf32>
    %c0_18 = arith.constant 0 : index
    %c0_19 = arith.constant 0 : index
    %29 = vector.load %arg8[%c0_18, %c0_19] : memref<1x8xf32, #tpu.memory_space<vmem>>, vector<1x8xf32>
    %30 = vector.shape_cast %29 : vector<1x8xf32> to vector<1x1x8xf32>
    %31 = vector.broadcast %30 : vector<1x1x8xf32> to vector<16x8x8xf32>
    %32 = arith.addf %28, %31 : vector<16x8x8xf32>
    %cst_20 = arith.constant 0.000000e+00 : f32
    %33 = vector.broadcast %cst_20 : f32 to vector<16x8x8xf32>
    %34 = arith.maximumf %32, %33 : vector<16x8x8xf32>
    %35 = vector.shape_cast %34 : vector<16x8x8xf32> to vector<128x8xf32>
    %36 = arith.truncf %35 : vector<128x8xf32> to vector<128x8xbf16>
    %37 = vector.shape_cast %2 : vector<16x8x8xbf16> to vector<128x8xbf16>
    %c0_21 = arith.constant 0 : index
    %c0_22 = arith.constant 0 : index
    %38 = vector.load %arg9[%c0_21, %c0_22] : memref<8x16xbf16, #tpu.memory_space<vmem>>, vector<8x16xbf16>
    %cst_23 = arith.constant dense<0.000000e+00> : vector<128x16xf32>
    %39 = tpu.matmul %37, %38, %cst_23 {dimension_numbers = #tpu.dot_dimension_numbers<[1], [0], [0], [1], [0, 0, 1, 1], [], []>} : vector<128x8xbf16>, vector<8x16xbf16>, vector<128x16xf32> -> vector<128x16xf32>
    %c0_24 = arith.constant 0 : index
    %c0_25 = arith.constant 0 : index
    %40 = vector.load %arg10[%c0_24, %c0_25] : memref<8x16xbf16, #tpu.memory_space<vmem>>, vector<8x16xbf16>
    %cst_26 = arith.constant dense<0.000000e+00> : vector<128x16xf32>
    %41 = tpu.matmul %36, %40, %cst_26 {dimension_numbers = #tpu.dot_dimension_numbers<[1], [0], [0], [1], [0, 0, 1, 1], [], []>} : vector<128x8xbf16>, vector<8x16xbf16>, vector<128x16xf32> -> vector<128x16xf32>
    %42 = arith.addf %39, %41 : vector<128x16xf32>
    %43 = vector.shape_cast %42 : vector<128x16xf32> to vector<16x8x16xf32>
    %44 = vector.extract_strided_slice %43 {offsets = [0, 0, 0], sizes = [16, 8, 8], strides = [1, 1, 1]} : vector<16x8x16xf32> to vector<16x8x8xf32>
    %45 = vector.extract_strided_slice %43 {offsets = [0, 0, 8], sizes = [16, 8, 8], strides = [1, 1, 1]} : vector<16x8x16xf32> to vector<16x8x8xf32>
    %46 = arith.extf %2 : vector<16x8x8xbf16> to vector<16x8x8xf32>
    %cst_27 = arith.constant dense<0xFF800000> : vector<16x8xf32>
    %47 = vector.multi_reduction <maximumf>, %44, %cst_27 [1] : vector<16x8x8xf32> to vector<16x8xf32>
    %48 = vector.shape_cast %47 : vector<16x8xf32> to vector<16x1x8xf32>
    %49 = vector.broadcast %48 : vector<16x1x8xf32> to vector<16x8x8xf32>
    %50 = arith.subf %44, %49 : vector<16x8x8xf32>
    %51 = math.exp %50 : vector<16x8x8xf32>
    %cst_28 = arith.constant dense<0.000000e+00> : vector<16x8xf32>
    %52 = vector.multi_reduction <add>, %51, %cst_28 [1] : vector<16x8x8xf32> to vector<16x8xf32>
    %53 = vector.shape_cast %52 : vector<16x8xf32> to vector<16x1x8xf32>
    %54 = tpu.reciprocal %53 {approx = true} : vector<16x1x8xf32> -> vector<16x1x8xf32>
    %55 = vector.broadcast %54 : vector<16x1x8xf32> to vector<16x8x8xf32>
    %56 = arith.mulf %51, %55 : vector<16x8x8xf32>
    %57 = arith.mulf %46, %56 : vector<16x8x8xf32>
    %cst_29 = arith.constant dense<0.000000e+00> : vector<16x8xf32>
    %58 = vector.multi_reduction <add>, %57, %cst_29 [1] : vector<16x8x8xf32> to vector<16x8xf32>
    %cst_30 = arith.constant dense<0xFF800000> : vector<16x8xf32>
    %59 = vector.multi_reduction <maximumf>, %45, %cst_30 [1] : vector<16x8x8xf32> to vector<16x8xf32>
    %60 = vector.shape_cast %59 : vector<16x8xf32> to vector<16x1x8xf32>
    %61 = vector.broadcast %60 : vector<16x1x8xf32> to vector<16x8x8xf32>
    %62 = arith.subf %45, %61 : vector<16x8x8xf32>
    %63 = math.exp %62 : vector<16x8x8xf32>
    %cst_31 = arith.constant dense<0.000000e+00> : vector<16x8xf32>
    %64 = vector.multi_reduction <add>, %63, %cst_31 [1] : vector<16x8x8xf32> to vector<16x8xf32>
    %65 = vector.shape_cast %64 : vector<16x8xf32> to vector<16x1x8xf32>
    %66 = tpu.reciprocal %65 {approx = true} : vector<16x1x8xf32> -> vector<16x1x8xf32>
    %67 = vector.broadcast %66 : vector<16x1x8xf32> to vector<16x8x8xf32>
    %68 = arith.mulf %63, %67 : vector<16x8x8xf32>
    %69 = arith.mulf %34, %68 : vector<16x8x8xf32>
    %cst_32 = arith.constant dense<0.000000e+00> : vector<16x8xf32>
    %70 = vector.multi_reduction <add>, %69, %cst_32 [1] : vector<16x8x8xf32> to vector<16x8xf32>
    %71 = arith.truncf %58 : vector<16x8xf32> to vector<16x8xbf16>
    %c0_33 = arith.constant 0 : index
    %c0_34 = arith.constant 0 : index
    %72 = vector.load %arg11[%c0_33, %c0_34] : memref<8x8xbf16, #tpu.memory_space<vmem>>, vector<8x8xbf16>
    %cst_35 = arith.constant dense<0.000000e+00> : vector<16x8xf32>
    %73 = tpu.matmul %71, %72, %cst_35 {dimension_numbers = #tpu.dot_dimension_numbers<[1], [0], [0], [1], [0, 0, 1, 1], [], []>} : vector<16x8xbf16>, vector<8x8xbf16>, vector<16x8xf32> -> vector<16x8xf32>
    %74 = arith.truncf %70 : vector<16x8xf32> to vector<16x8xbf16>
    %c0_36 = arith.constant 0 : index
    %c0_37 = arith.constant 0 : index
    %75 = vector.load %arg12[%c0_36, %c0_37] : memref<8x8xbf16, #tpu.memory_space<vmem>>, vector<8x8xbf16>
    %cst_38 = arith.constant dense<0.000000e+00> : vector<16x8xf32>
    %76 = tpu.matmul %74, %75, %cst_38 {dimension_numbers = #tpu.dot_dimension_numbers<[1], [0], [0], [1], [0, 0, 1, 1], [], []>} : vector<16x8xbf16>, vector<8x8xbf16>, vector<16x8xf32> -> vector<16x8xf32>
    %77 = arith.addf %73, %76 : vector<16x8xf32>
    %c0_39 = arith.constant 0 : index
    %c0_40 = arith.constant 0 : index
    %78 = vector.load %arg13[%c0_39, %c0_40] : memref<1x8xf32, #tpu.memory_space<vmem>>, vector<1x8xf32>
    %79 = vector.broadcast %78 : vector<1x8xf32> to vector<16x8xf32>
    %80 = arith.addf %77, %79 : vector<16x8xf32>
    %cst_41 = arith.constant 0.000000e+00 : f32
    %81 = vector.broadcast %cst_41 : f32 to vector<16x8xf32>
    %82 = arith.maximumf %80, %81 : vector<16x8xf32>
    %83 = arith.truncf %82 : vector<16x8xf32> to vector<16x8xbf16>
    %c0_42 = arith.constant 0 : index
    %c0_43 = arith.constant 0 : index
    %84 = vector.load %arg16[%c0_42, %c0_43] : memref<16x8xbf16, #tpu.memory_space<vmem>>, vector<16x8xbf16>
    tpu.vector_store %arg16[%c0_42, %c0_43], %83 {strides = array<i32>} : memref<16x8xbf16, #tpu.memory_space<vmem>>, vector<16x8xbf16>,
    %c0_44 = arith.constant 0 : index
    %c0_45 = arith.constant 0 : index
    %85 = vector.load %arg14[%c0_44, %c0_45] : memref<8x8xbf16, #tpu.memory_space<vmem>>, vector<8x8xbf16>
    %cst_46 = arith.constant dense<0.000000e+00> : vector<128x8xf32>
    %86 = tpu.matmul %36, %85, %cst_46 {dimension_numbers = #tpu.dot_dimension_numbers<[1], [0], [0], [1], [0, 0, 1, 1], [], []>} : vector<128x8xbf16>, vector<8x8xbf16>, vector<128x8xf32> -> vector<128x8xf32>
    %c0_47 = arith.constant 0 : index
    %c0_48 = arith.constant 0 : index
    %87 = vector.load %arg15[%c0_47, %c0_48] : memref<1x8xf32, #tpu.memory_space<vmem>>, vector<1x8xf32>
    %88 = vector.broadcast %87 : vector<1x8xf32> to vector<128x8xf32>
    %89 = arith.addf %86, %88 : vector<128x8xf32>
    %cst_49 = arith.constant 0.000000e+00 : f32
    %90 = vector.broadcast %cst_49 : f32 to vector<128x8xf32>
    %91 = arith.maximumf %89, %90 : vector<128x8xf32>
    %92 = vector.shape_cast %91 : vector<128x8xf32> to vector<16x8x8xf32>
    %93 = arith.truncf %92 : vector<16x8x8xf32> to vector<16x8x8xbf16>
    %c0_50 = arith.constant 0 : index
    %c0_51 = arith.constant 0 : index
    %c0_52 = arith.constant 0 : index
    %94 = vector.load %arg17[%c0_50, %c0_51, %c0_52] : memref<16x8x8xbf16, #tpu.memory_space<vmem>>, vector<16x8x8xbf16>
    tpu.vector_store %arg17[%c0_50, %c0_51, %c0_52], %93 {strides = array<i32>} : memref<16x8x8xbf16, #tpu.memory_space<vmem>>, vector<16x8x8xbf16>,
    return
  }
  func.func @transform_0(%arg0: i32) -> (i32, i32) {
    %c0_i32 = arith.constant 0 : i32
    %c0_i32_0 = arith.constant 0 : i32
    return %arg0, %c0_i32 : i32, i32
  }
  func.func @transform_1(%arg0: i32) -> (i32, i32, i32) {
    %c0_i32 = arith.constant 0 : i32
    %c0_i32_0 = arith.constant 0 : i32
    %c0_i32_1 = arith.constant 0 : i32
    return %arg0, %c0_i32, %c0_i32_0 : i32, i32, i32
  }
  func.func @transform_2(%arg0: i32) -> (i32, i32, i32) {
    %c0_i32 = arith.constant 0 : i32
    %c0_i32_0 = arith.constant 0 : i32
    %c0_i32_1 = arith.constant 0 : i32
    return %arg0, %c0_i32, %c0_i32_0 : i32, i32, i32
  }
  func.func @transform_3(%arg0: i32) -> (i32, i32) {
    %c0_i32 = arith.constant 0 : i32
    %c0_i32_0 = arith.constant 0 : i32
    %c0_i32_1 = arith.constant 0 : i32
    return %c0_i32, %c0_i32_0 : i32, i32
  }
  func.func @transform_4(%arg0: i32) -> (i32, i32) {
    %c0_i32 = arith.constant 0 : i32
    %c0_i32_0 = arith.constant 0 : i32
    %c0_i32_1 = arith.constant 0 : i32
    return %c0_i32, %c0_i32_0 : i32, i32
  }
  func.func @transform_5(%arg0: i32) -> (i32, i32) {
    %c0_i32 = arith.constant 0 : i32
    %c0_i32_0 = arith.constant 0 : i32
    %c0_i32_1 = arith.constant 0 : i32
    return %c0_i32, %c0_i32_0 : i32, i32
  }
  func.func @transform_6(%arg0: i32) -> (i32, i32) {
    %c0_i32 = arith.constant 0 : i32
    %c0_i32_0 = arith.constant 0 : i32
    %c0_i32_1 = arith.constant 0 : i32
    return %c0_i32, %c0_i32_0 : i32, i32
  }
  func.func @transform_7(%arg0: i32) -> (i32, i32) {
    %c0_i32 = arith.constant 0 : i32
    %c0_i32_0 = arith.constant 0 : i32
    %c0_i32_1 = arith.constant 0 : i32
    return %c0_i32, %c0_i32_0 : i32, i32
  }
  func.func @transform_8(%arg0: i32) -> (i32, i32) {
    %c0_i32 = arith.constant 0 : i32
    %c0_i32_0 = arith.constant 0 : i32
    %c0_i32_1 = arith.constant 0 : i32
    return %c0_i32, %c0_i32_0 : i32, i32
  }
  func.func @transform_9(%arg0: i32) -> (i32, i32) {
    %c0_i32 = arith.constant 0 : i32
    %c0_i32_0 = arith.constant 0 : i32
    %c0_i32_1 = arith.constant 0 : i32
    return %c0_i32, %c0_i32_0 : i32, i32
  }
  func.func @transform_10(%arg0: i32) -> (i32, i32) {
    %c0_i32 = arith.constant 0 : i32
    %c0_i32_0 = arith.constant 0 : i32
    %c0_i32_1 = arith.constant 0 : i32
    return %c0_i32, %c0_i32_0 : i32, i32
  }
  func.func @transform_11(%arg0: i32) -> (i32, i32) {
    %c0_i32 = arith.constant 0 : i32
    %c0_i32_0 = arith.constant 0 : i32
    %c0_i32_1 = arith.constant 0 : i32
    return %c0_i32, %c0_i32_0 : i32, i32
  }
  func.func @transform_12(%arg0: i32) -> (i32, i32) {
    %c0_i32 = arith.constant 0 : i32
    %c0_i32_0 = arith.constant 0 : i32
    %c0_i32_1 = arith.constant 0 : i32
    return %c0_i32, %c0_i32_0 : i32, i32
  }
  func.func @transform_13(%arg0: i32) -> (i32, i32) {
    %c0_i32 = arith.constant 0 : i32
    %c0_i32_0 = arith.constant 0 : i32
    %c0_i32_1 = arith.constant 0 : i32
    return %c0_i32, %c0_i32_0 : i32, i32
  }
  func.func @transform_14(%arg0: i32) -> (i32, i32) {
    %c0_i32 = arith.constant 0 : i32
    %c0_i32_0 = arith.constant 0 : i32
    %c0_i32_1 = arith.constant 0 : i32
    return %c0_i32, %c0_i32_0 : i32, i32
  }
  func.func @transform_15(%arg0: i32) -> (i32, i32) {
    %c0_i32 = arith.constant 0 : i32
    %c0_i32_0 = arith.constant 0 : i32
    return %arg0, %c0_i32 : i32, i32
  }
  func.func @transform_16(%arg0: i32) -> (i32, i32, i32) {
    %c0_i32 = arith.constant 0 : i32
    %c0_i32_0 = arith.constant 0 : i32
    %c0_i32_1 = arith.constant 0 : i32
    return %arg0, %c0_i32, %c0_i32_0 : i32, i32, i32
  }
}

module attributes {stable_mosaic.version = 11 : i64} {
  func.func @_lfa_stage2_res_kernel(%arg0: i32, %arg1: memref<16x8x8xbf16, #tpu.memory_space<vmem>>, %arg2: memref<16x8x8xbf16, #tpu.memory_space<vmem>>, %arg3: memref<16x8xf32, #tpu.memory_space<vmem>>, %arg4: memref<8x16xbf16, #tpu.memory_space<vmem>>, %arg5: memref<8x16xbf16, #tpu.memory_space<vmem>>, %arg6: memref<8x16xbf16, #tpu.memory_space<vmem>>, %arg7: memref<8x16xbf16, #tpu.memory_space<vmem>>, %arg8: memref<1x16xf32, #tpu.memory_space<vmem>>, %arg9: memref<16x32xbf16, #tpu.memory_space<vmem>>, %arg10: memref<1x32xf32, #tpu.memory_space<vmem>>, %arg11: memref<8x32xbf16, #tpu.memory_space<vmem>>, %arg12: memref<1x32xf32, #tpu.memory_space<vmem>>, %arg13: memref<16x32xf32, #tpu.memory_space<vmem>>) attributes {dimension_semantics = [#tpu.dimension_semantics<parallel>], iteration_bounds = array<i64: 2>, scalar_prefetch = 0 : i64, scratch_operands = 0 : i64, tpu.core_type = #tpu.core_type<tc>, window_params = [{transform_indices = @transform_0, window_bounds = array<i64: 16, 8, 8>}, {transform_indices = @transform_1, window_bounds = array<i64: 16, 8, 8>}, {transform_indices = @transform_2, window_bounds = array<i64: 16, 8>}, {pipeline_mode = #tpu.pipeline_mode<synchronous>, transform_indices = @transform_3, window_bounds = array<i64: 8, 16>}, {pipeline_mode = #tpu.pipeline_mode<synchronous>, transform_indices = @transform_4, window_bounds = array<i64: 8, 16>}, {pipeline_mode = #tpu.pipeline_mode<synchronous>, transform_indices = @transform_5, window_bounds = array<i64: 8, 16>}, {pipeline_mode = #tpu.pipeline_mode<synchronous>, transform_indices = @transform_6, window_bounds = array<i64: 8, 16>}, {pipeline_mode = #tpu.pipeline_mode<synchronous>, transform_indices = @transform_7, window_bounds = array<i64: 1, 16>}, {pipeline_mode = #tpu.pipeline_mode<synchronous>, transform_indices = @transform_8, window_bounds = array<i64: 16, 32>}, {pipeline_mode = #tpu.pipeline_mode<synchronous>, transform_indices = @transform_9, window_bounds = array<i64: 1, 32>}, {pipeline_mode = #tpu.pipeline_mode<synchronous>, transform_indices = @transform_10, window_bounds = array<i64: 8, 32>}, {pipeline_mode = #tpu.pipeline_mode<synchronous>, transform_indices = @transform_11, window_bounds = array<i64: 1, 32>}, {transform_indices = @transform_12, window_bounds = array<i64: 16, 32>}]} {
    %c0 = arith.constant 0 : index
    %c0_0 = arith.constant 0 : index
    %c0_1 = arith.constant 0 : index
    %0 = vector.load %arg1[%c0, %c0_0, %c0_1] : memref<16x8x8xbf16, #tpu.memory_space<vmem>>, vector<16x8x8xbf16>
    %c0_2 = arith.constant 0 : index
    %c0_3 = arith.constant 0 : index
    %c0_4 = arith.constant 0 : index
    %1 = vector.load %arg2[%c0_2, %c0_3, %c0_4] : memref<16x8x8xbf16, #tpu.memory_space<vmem>>, vector<16x8x8xbf16>
    %2 = vector.shape_cast %0 : vector<16x8x8xbf16> to vector<128x8xbf16>
    %3 = vector.shape_cast %1 : vector<16x8x8xbf16> to vector<128x8xbf16>
    %c0_5 = arith.constant 0 : index
    %c0_6 = arith.constant 0 : index
    %4 = vector.load %arg4[%c0_5, %c0_6] : memref<8x16xbf16, #tpu.memory_space<vmem>>, vector<8x16xbf16>
    %cst = arith.constant dense<0.000000e+00> : vector<128x16xf32>
    %5 = tpu.matmul %2, %4, %cst {dimension_numbers = #tpu.dot_dimension_numbers<[1], [0], [0], [1], [0, 0, 1, 1], [], []>} : vector<128x8xbf16>, vector<8x16xbf16>, vector<128x16xf32> -> vector<128x16xf32>
    %c0_7 = arith.constant 0 : index
    %c0_8 = arith.constant 0 : index
    %6 = vector.load %arg5[%c0_7, %c0_8] : memref<8x16xbf16, #tpu.memory_space<vmem>>, vector<8x16xbf16>
    %cst_9 = arith.constant dense<0.000000e+00> : vector<128x16xf32>
    %7 = tpu.matmul %3, %6, %cst_9 {dimension_numbers = #tpu.dot_dimension_numbers<[1], [0], [0], [1], [0, 0, 1, 1], [], []>} : vector<128x8xbf16>, vector<8x16xbf16>, vector<128x16xf32> -> vector<128x16xf32>
    %8 = arith.addf %5, %7 : vector<128x16xf32>
    %9 = vector.shape_cast %8 : vector<128x16xf32> to vector<16x8x16xf32>
    %10 = vector.extract_strided_slice %9 {offsets = [0, 0, 0], sizes = [16, 8, 8], strides = [1, 1, 1]} : vector<16x8x16xf32> to vector<16x8x8xf32>
    %11 = vector.extract_strided_slice %9 {offsets = [0, 0, 8], sizes = [16, 8, 8], strides = [1, 1, 1]} : vector<16x8x16xf32> to vector<16x8x8xf32>
    %12 = arith.extf %0 : vector<16x8x8xbf16> to vector<16x8x8xf32>
    %cst_10 = arith.constant dense<0xFF800000> : vector<16x8xf32>
    %13 = vector.multi_reduction <maximumf>, %10, %cst_10 [1] : vector<16x8x8xf32> to vector<16x8xf32>
    %14 = vector.shape_cast %13 : vector<16x8xf32> to vector<16x1x8xf32>
    %15 = vector.broadcast %14 : vector<16x1x8xf32> to vector<16x8x8xf32>
    %16 = arith.subf %10, %15 : vector<16x8x8xf32>
    %17 = math.exp %16 : vector<16x8x8xf32>
    %cst_11 = arith.constant dense<0.000000e+00> : vector<16x8xf32>
    %18 = vector.multi_reduction <add>, %17, %cst_11 [1] : vector<16x8x8xf32> to vector<16x8xf32>
    %19 = vector.shape_cast %18 : vector<16x8xf32> to vector<16x1x8xf32>
    %20 = tpu.reciprocal %19 {approx = true} : vector<16x1x8xf32> -> vector<16x1x8xf32>
    %21 = vector.broadcast %20 : vector<16x1x8xf32> to vector<16x8x8xf32>
    %22 = arith.mulf %17, %21 : vector<16x8x8xf32>
    %23 = arith.mulf %12, %22 : vector<16x8x8xf32>
    %cst_12 = arith.constant dense<0.000000e+00> : vector<16x8xf32>
    %24 = vector.multi_reduction <add>, %23, %cst_12 [1] : vector<16x8x8xf32> to vector<16x8xf32>
    %25 = arith.extf %1 : vector<16x8x8xbf16> to vector<16x8x8xf32>
    %cst_13 = arith.constant dense<0xFF800000> : vector<16x8xf32>
    %26 = vector.multi_reduction <maximumf>, %11, %cst_13 [1] : vector<16x8x8xf32> to vector<16x8xf32>
    %27 = vector.shape_cast %26 : vector<16x8xf32> to vector<16x1x8xf32>
    %28 = vector.broadcast %27 : vector<16x1x8xf32> to vector<16x8x8xf32>
    %29 = arith.subf %11, %28 : vector<16x8x8xf32>
    %30 = math.exp %29 : vector<16x8x8xf32>
    %cst_14 = arith.constant dense<0.000000e+00> : vector<16x8xf32>
    %31 = vector.multi_reduction <add>, %30, %cst_14 [1] : vector<16x8x8xf32> to vector<16x8xf32>
    %32 = vector.shape_cast %31 : vector<16x8xf32> to vector<16x1x8xf32>
    %33 = tpu.reciprocal %32 {approx = true} : vector<16x1x8xf32> -> vector<16x1x8xf32>
    %34 = vector.broadcast %33 : vector<16x1x8xf32> to vector<16x8x8xf32>
    %35 = arith.mulf %30, %34 : vector<16x8x8xf32>
    %36 = arith.mulf %25, %35 : vector<16x8x8xf32>
    %cst_15 = arith.constant dense<0.000000e+00> : vector<16x8xf32>
    %37 = vector.multi_reduction <add>, %36, %cst_15 [1] : vector<16x8x8xf32> to vector<16x8xf32>
    %38 = arith.truncf %24 : vector<16x8xf32> to vector<16x8xbf16>
    %c0_16 = arith.constant 0 : index
    %c0_17 = arith.constant 0 : index
    %39 = vector.load %arg6[%c0_16, %c0_17] : memref<8x16xbf16, #tpu.memory_space<vmem>>, vector<8x16xbf16>
    %cst_18 = arith.constant dense<0.000000e+00> : vector<16x16xf32>
    %40 = tpu.matmul %38, %39, %cst_18 {dimension_numbers = #tpu.dot_dimension_numbers<[1], [0], [0], [1], [0, 0, 1, 1], [], []>} : vector<16x8xbf16>, vector<8x16xbf16>, vector<16x16xf32> -> vector<16x16xf32>
    %41 = arith.truncf %37 : vector<16x8xf32> to vector<16x8xbf16>
    %c0_19 = arith.constant 0 : index
    %c0_20 = arith.constant 0 : index
    %42 = vector.load %arg7[%c0_19, %c0_20] : memref<8x16xbf16, #tpu.memory_space<vmem>>, vector<8x16xbf16>
    %cst_21 = arith.constant dense<0.000000e+00> : vector<16x16xf32>
    %43 = tpu.matmul %41, %42, %cst_21 {dimension_numbers = #tpu.dot_dimension_numbers<[1], [0], [0], [1], [0, 0, 1, 1], [], []>} : vector<16x8xbf16>, vector<8x16xbf16>, vector<16x16xf32> -> vector<16x16xf32>
    %44 = arith.addf %40, %43 : vector<16x16xf32>
    %c0_22 = arith.constant 0 : index
    %c0_23 = arith.constant 0 : index
    %45 = vector.load %arg8[%c0_22, %c0_23] : memref<1x16xf32, #tpu.memory_space<vmem>>, vector<1x16xf32>
    %46 = vector.broadcast %45 : vector<1x16xf32> to vector<16x16xf32>
    %47 = arith.addf %44, %46 : vector<16x16xf32>
    %cst_24 = arith.constant 0.000000e+00 : f32
    %48 = vector.broadcast %cst_24 : f32 to vector<16x16xf32>
    %49 = arith.maximumf %47, %48 : vector<16x16xf32>
    %50 = arith.truncf %49 : vector<16x16xf32> to vector<16x16xbf16>
    %c0_25 = arith.constant 0 : index
    %c0_26 = arith.constant 0 : index
    %51 = vector.load %arg9[%c0_25, %c0_26] : memref<16x32xbf16, #tpu.memory_space<vmem>>, vector<16x32xbf16>
    %cst_27 = arith.constant dense<0.000000e+00> : vector<16x32xf32>
    %52 = tpu.matmul %50, %51, %cst_27 {dimension_numbers = #tpu.dot_dimension_numbers<[1], [0], [0], [1], [0, 0, 1, 1], [], []>} : vector<16x16xbf16>, vector<16x32xbf16>, vector<16x32xf32> -> vector<16x32xf32>
    %c0_28 = arith.constant 0 : index
    %c0_29 = arith.constant 0 : index
    %53 = vector.load %arg10[%c0_28, %c0_29] : memref<1x32xf32, #tpu.memory_space<vmem>>, vector<1x32xf32>
    %54 = vector.broadcast %53 : vector<1x32xf32> to vector<16x32xf32>
    %55 = arith.addf %52, %54 : vector<16x32xf32>
    %c0_30 = arith.constant 0 : index
    %c0_31 = arith.constant 0 : index
    %56 = vector.load %arg3[%c0_30, %c0_31] : memref<16x8xf32, #tpu.memory_space<vmem>>, vector<16x8xf32>
    %57 = arith.truncf %56 : vector<16x8xf32> to vector<16x8xbf16>
    %c0_32 = arith.constant 0 : index
    %c0_33 = arith.constant 0 : index
    %58 = vector.load %arg11[%c0_32, %c0_33] : memref<8x32xbf16, #tpu.memory_space<vmem>>, vector<8x32xbf16>
    %cst_34 = arith.constant dense<0.000000e+00> : vector<16x32xf32>
    %59 = tpu.matmul %57, %58, %cst_34 {dimension_numbers = #tpu.dot_dimension_numbers<[1], [0], [0], [1], [0, 0, 1, 1], [], []>} : vector<16x8xbf16>, vector<8x32xbf16>, vector<16x32xf32> -> vector<16x32xf32>
    %60 = arith.addf %55, %59 : vector<16x32xf32>
    %c0_35 = arith.constant 0 : index
    %c0_36 = arith.constant 0 : index
    %61 = vector.load %arg12[%c0_35, %c0_36] : memref<1x32xf32, #tpu.memory_space<vmem>>, vector<1x32xf32>
    %62 = vector.broadcast %61 : vector<1x32xf32> to vector<16x32xf32>
    %63 = arith.addf %60, %62 : vector<16x32xf32>
    %cst_37 = arith.constant 0.000000e+00 : f32
    %64 = vector.broadcast %cst_37 : f32 to vector<16x32xf32>
    %65 = arith.cmpf ogt, %63, %64 : vector<16x32xf32>
    %cst_38 = arith.constant 2.000000e-01 : f32
    %66 = vector.broadcast %cst_38 : f32 to vector<16x32xf32>
    %67 = arith.mulf %66, %63 : vector<16x32xf32>
    %68 = arith.select %65, %63, %67 : vector<16x32xi1>, vector<16x32xf32>
    %c0_39 = arith.constant 0 : index
    %c0_40 = arith.constant 0 : index
    %69 = vector.load %arg13[%c0_39, %c0_40] : memref<16x32xf32, #tpu.memory_space<vmem>>, vector<16x32xf32>
    tpu.vector_store %arg13[%c0_39, %c0_40], %68 {strides = array<i32>} : memref<16x32xf32, #tpu.memory_space<vmem>>, vector<16x32xf32>,
    return
  }
  func.func @transform_0(%arg0: i32) -> (i32, i32, i32) {
    %c0_i32 = arith.constant 0 : i32
    %c0_i32_0 = arith.constant 0 : i32
    %c0_i32_1 = arith.constant 0 : i32
    return %arg0, %c0_i32, %c0_i32_0 : i32, i32, i32
  }
  func.func @transform_1(%arg0: i32) -> (i32, i32, i32) {
    %c0_i32 = arith.constant 0 : i32
    %c0_i32_0 = arith.constant 0 : i32
    %c0_i32_1 = arith.constant 0 : i32
    return %arg0, %c0_i32, %c0_i32_0 : i32, i32, i32
  }
  func.func @transform_2(%arg0: i32) -> (i32, i32) {
    %c0_i32 = arith.constant 0 : i32
    %c0_i32_0 = arith.constant 0 : i32
    return %arg0, %c0_i32 : i32, i32
  }
  func.func @transform_3(%arg0: i32) -> (i32, i32) {
    %c0_i32 = arith.constant 0 : i32
    %c0_i32_0 = arith.constant 0 : i32
    %c0_i32_1 = arith.constant 0 : i32
    return %c0_i32, %c0_i32_0 : i32, i32
  }
  func.func @transform_4(%arg0: i32) -> (i32, i32) {
    %c0_i32 = arith.constant 0 : i32
    %c0_i32_0 = arith.constant 0 : i32
    %c0_i32_1 = arith.constant 0 : i32
    return %c0_i32, %c0_i32_0 : i32, i32
  }
  func.func @transform_5(%arg0: i32) -> (i32, i32) {
    %c0_i32 = arith.constant 0 : i32
    %c0_i32_0 = arith.constant 0 : i32
    %c0_i32_1 = arith.constant 0 : i32
    return %c0_i32, %c0_i32_0 : i32, i32
  }
  func.func @transform_6(%arg0: i32) -> (i32, i32) {
    %c0_i32 = arith.constant 0 : i32
    %c0_i32_0 = arith.constant 0 : i32
    %c0_i32_1 = arith.constant 0 : i32
    return %c0_i32, %c0_i32_0 : i32, i32
  }
  func.func @transform_7(%arg0: i32) -> (i32, i32) {
    %c0_i32 = arith.constant 0 : i32
    %c0_i32_0 = arith.constant 0 : i32
    %c0_i32_1 = arith.constant 0 : i32
    return %c0_i32, %c0_i32_0 : i32, i32
  }
  func.func @transform_8(%arg0: i32) -> (i32, i32) {
    %c0_i32 = arith.constant 0 : i32
    %c0_i32_0 = arith.constant 0 : i32
    %c0_i32_1 = arith.constant 0 : i32
    return %c0_i32, %c0_i32_0 : i32, i32
  }
  func.func @transform_9(%arg0: i32) -> (i32, i32) {
    %c0_i32 = arith.constant 0 : i32
    %c0_i32_0 = arith.constant 0 : i32
    %c0_i32_1 = arith.constant 0 : i32
    return %c0_i32, %c0_i32_0 : i32, i32
  }
  func.func @transform_10(%arg0: i32) -> (i32, i32) {
    %c0_i32 = arith.constant 0 : i32
    %c0_i32_0 = arith.constant 0 : i32
    %c0_i32_1 = arith.constant 0 : i32
    return %c0_i32, %c0_i32_0 : i32, i32
  }
  func.func @transform_11(%arg0: i32) -> (i32, i32) {
    %c0_i32 = arith.constant 0 : i32
    %c0_i32_0 = arith.constant 0 : i32
    %c0_i32_1 = arith.constant 0 : i32
    return %c0_i32, %c0_i32_0 : i32, i32
  }
  func.func @transform_12(%arg0: i32) -> (i32, i32) {
    %c0_i32 = arith.constant 0 : i32
    %c0_i32_0 = arith.constant 0 : i32
    return %arg0, %c0_i32 : i32, i32
  }
}

</mosaic_0001>

<llo_original>
// kernel: dilated_res_block.3
$region0: #{dilated_res_block.3}
  #allocation0 [shape = 'u32[]', space=smem, size = 0x4, offset = 0x4, fixed_abs, tag = 'smem constant byte address 0x4 - core index']
  #allocation1 [shape = 'u32[144,128]{1,0:T(1,128)}', space=vmem, size = 0x12000, scoped, tag = 'internal scratch']
  %s0 = inlined_call_operand.vmem [shape: f32[32,8], index: 0, kind: input, shape index: {}]
  %s1 = inlined_call_operand.vmem [shape: bf16[8,8], index: 1, kind: input, shape index: {}]
  %s2 = inlined_call_operand.vmem [shape: f32[1,8], index: 2, kind: input, shape index: {}]
  %s3 = inlined_call_operand.vmem [shape: bf16[32,8], index: 3, kind: output, shape index: {}]
  %s4 = sld [smem:[#allocation0]]
  $region45: #{dilated_res_block.3} parent=0
    _
  %s6 = ssub.s32 1, %s4
  %s7 = scalar_select 0, %s6, %s4
  loop: start=0, step=1, limit=4
  $region2: #{dilated_res_block.3} parent=0 // loop_pre_header
    _
  $region3: #{dilated_res_block.3} parent=0 // loop_header
    %s9 = sphi 0, %s13
    %p10 = scmp.ge.s32.totalorder %s9, 4
    %s19 = sphi 0, %s21
    %s22 = sphi 0, %s19
    %s23 = sphi 0, %s22
    %s39 = sphi 0, %s23
    %s43 = sphi 0, %s43
    %s45 = sphi 0, %s43
    %s46 = sphi 0, %s45
    %s60 = sphi 0, %s46
    %s64 = sphi 0, %s64
    %s66 = sphi 0, %s64
    %s67 = sphi 0, %s66
    %s81 = sphi 0, %s67
    %s87 = sphi 0, %s89
    %s90 = sphi 0, %s87
    %s91 = sphi 0, %s90
    %s107 = sphi 0, %s91
  $region4: #{dilated_res_block.3} parent=0 // loop_header_branch
    %12 = sbr.rel (%p10) target = $region8
  $region5: #{dilated_res_block.3} parent=0 // loop_body
    %s14 = ssub.s32 %s9, 1
    %s15 = ssub.s32 %s9, 2
    %s16 = sadd.s32 %s9, 1
    %s17 = ssub.s32 %s9, %s16
    %p18 = scmp.eq.s32.totalorder %s17, 0
    %s20 = sadd.s32 %s19, 1
    %s21 = scalar_select %p18, %s19, %s20
    %p24 = pneg %p18
    %p25 = scmp.eq.s32.totalorder %s9, 1
    %p26 = por %p24, %p25
    %p27 = scmp.ne.s32.totalorder %s19, %s22
    %p28 = scmp.eq.s32.totalorder %s9, 0
    %p29 = por %p27, %p28
    %p30 = scmp.ne.s32.totalorder %s19, %s22
    %p31 = scmp.eq.s32.totalorder %s14, 1
    %p32 = por %p30, %p31
    %p33 = scmp.ne.s32.totalorder %s22, %s23
    %p34 = scmp.eq.s32.totalorder %s14, 0
    %p35 = por %p33, %p34
    %p36 = scmp.ne.s32.totalorder %s22, %s23
    %p37 = scmp.eq.s32.totalorder %s15, 1
    %p38 = por %p36, %p37
    %p40 = scmp.ne.s32.totalorder %s23, %s39
    %p41 = scmp.eq.s32.totalorder %s15, 0
    %p42 = por %p40, %p41
    %s44 = sadd.s32 %s43, 1
    %p47 = scmp.eq.s32.totalorder %s9, 1
    %p48 = scmp.ne.s32.totalorder %s43, %s45
    %p49 = scmp.eq.s32.totalorder %s9, 0
    %p50 = por %p48, %p49
    %p51 = scmp.ne.s32.totalorder %s43, %s45
    %p52 = scmp.eq.s32.totalorder %s14, 1
    %p53 = por %p51, %p52
    %p54 = scmp.ne.s32.totalorder %s45, %s46
    %p55 = scmp.eq.s32.totalorder %s14, 0
    %p56 = por %p54, %p55
    %p57 = scmp.ne.s32.totalorder %s45, %s46
    %p58 = scmp.eq.s32.totalorder %s15, 1
    %p59 = por %p57, %p58
    %p61 = scmp.ne.s32.totalorder %s46, %s60
    %p62 = scmp.eq.s32.totalorder %s15, 0
    %p63 = por %p61, %p62
    %s65 = sadd.s32 %s64, 1
    %p68 = scmp.eq.s32.totalorder %s9, 1
    %p69 = scmp.ne.s32.totalorder %s64, %s66
    %p70 = scmp.eq.s32.totalorder %s9, 0
    %p71 = por %p69, %p70
    %p72 = scmp.ne.s32.totalorder %s64, %s66
    %p73 = scmp.eq.s32.totalorder %s14, 1
    %p74 = por %p72, %p73
    %p75 = scmp.ne.s32.totalorder %s66, %s67
    %p76 = scmp.eq.s32.totalorder %s14, 0
    %p77 = por %p75, %p76
    %p78 = scmp.ne.s32.totalorder %s66, %s67
    %p79 = scmp.eq.s32.totalorder %s15, 1
    %p80 = por %p78, %p79
    %p82 = scmp.ne.s32.totalorder %s67, %s81
    %p83 = scmp.eq.s32.totalorder %s15, 0
    %p84 = por %p82, %p83
    %s85 = ssub.s32 %s9, %s16
    %p86 = scmp.eq.s32.totalorder %s85, 0
    %s88 = sadd.s32 %s87, 1
    %s89 = scalar_select %p86, %s87, %s88
    %p92 = pneg %p86
    %p93 = scmp.eq.s32.totalorder %s9, 1
    %p94 = por %p92, %p93
    %p95 = scmp.ne.s32.totalorder %s87, %s90
    %p96 = scmp.eq.s32.totalorder %s9, 0
    %p97 = por %p95, %p96
    %p98 = scmp.ne.s32.totalorder %s87, %s90
    %p99 = scmp.eq.s32.totalorder %s14, 1
    %p100 = por %p98, %p99
    %p101 = scmp.ne.s32.totalorder %s90, %s91
    %p102 = scmp.eq.s32.totalorder %s14, 0
    %p103 = por %p101, %p102
    %p104 = scmp.ne.s32.totalorder %s90, %s91
    %p105 = scmp.eq.s32.totalorder %s15, 1
    %p106 = por %p104, %p105
    %p108 = scmp.ne.s32.totalorder %s91, %s107
    %p109 = scmp.eq.s32.totalorder %s15, 0
    %p110 = por %p108, %p109
    %p111 = scmp.le.s32.totalorder 1, %s9
    %p112 = scmp.lt.s32.totalorder %s9, 3
    %p113 = pnand %p111, %p112
    %p114 = pneg %p113
    // Predicated region
    $region9: #{dilated_res_block.3} parent=5 // pred_check
      _
    $region10: #{dilated_res_block.3} parent=5 // pred_check_branch
      %116 = sbr.rel (%p113) target = $region12
    $region11: #{dilated_res_block.3} parent=5 // pred_region
      %s117 = ssub.s32 %s9, 1
      // Predicated region
      $region13: #{dilated_res_block.3} parent=11 // pred_check
        %p118 = pneg %p56
      $region14: #{dilated_res_block.3} parent=11 // pred_check_branch
        %120 = sbr.rel (%p118) target = $region16
      $region15: #{dilated_res_block.3} parent=11 // pred_region
        _
      $region16: #{dilated_res_block.3} parent=11 // pred_fallthru
        _
      // Predicated region
      $region17: #{dilated_res_block.3} parent=11 // pred_check
        %p121 = pneg %p77
      $region18: #{dilated_res_block.3} parent=11 // pred_check_branch
        %123 = sbr.rel (%p121) target = $region20
      $region19: #{dilated_res_block.3} parent=11 // pred_region
        _
      $region20: #{dilated_res_block.3} parent=11 // pred_fallthru
        _
    $region12: #{dilated_res_block.3} parent=5 // pred_fallthru
      _
    %p124 = scmp.lt.s32.totalorder %s9, 2
    // Predicated region
    $region21: #{dilated_res_block.3} parent=5 // pred_check
      %p125 = pneg %p124
    $region22: #{dilated_res_block.3} parent=5 // pred_check_branch
      %127 = sbr.rel (%p125) target = $region24
    $region23: #{dilated_res_block.3} parent=5 // pred_region
      // Predicated region
      $region25: #{dilated_res_block.3} parent=23 // pred_check
        %p128 = pneg %p29
      $region26: #{dilated_res_block.3} parent=23 // pred_check_branch
        %130 = sbr.rel (%p128) target = $region28
      $region27: #{dilated_res_block.3} parent=23 // pred_region
        %s131 = smul.u32 2, %s9
        %p132 = scmp.lt.s32.totalorder %s131, 3
        %s133 = scalar_select %p132, %s131, 3
        %s134 = smul.addr %s133, 8
        %s135 = scalar_lea.vmem %s0, %s134
        %s136 = smul.u32 2, %s9
      $region28: #{dilated_res_block.3} parent=23 // pred_fallthru
        _
    $region24: #{dilated_res_block.3} parent=5 // pred_fallthru
      _
    %p137 = scmp.le.s32.totalorder 1, %s9
    %p138 = scmp.lt.s32.totalorder %s9, 3
    %p139 = pnand %p137, %p138
    %p140 = pneg %p139
    // Predicated region
    $region29: #{dilated_res_block.3} parent=5 // pred_check
      _
    $region30: #{dilated_res_block.3} parent=5 // pred_check_branch
      %142 = sbr.rel (%p139) target = $region32
    $region31: #{dilated_res_block.3} parent=5 // pred_region
      %s143 = ssub.s32 %s9, 1
      %s144 = smul.u32 2, %s14
      %p145 = scmp.lt.s32.totalorder %s144, 3
      %s146 = scalar_select %p145, %s144, 3
      %s147 = smul.addr %s146, 8
      %s148 = scalar_lea.vmem %s0, %s147
      %p149 = pneg %p35
      %p150 = pneg %p32
      %p151 = pneg %p56
      %p152 = pneg %p53
      %p153 = pneg %p77
      %p154 = pneg %p74
      %p155 = pneg %p103
      %p156 = pneg %p100
      %s157 = smul.u32 2, %s14
      %p158 = scmp.lt.s32.totalorder %s157, 3
      %s159 = scalar_select %p158, %s157, 3
      %s160 = smul.addr %s159, 4
      %s161 = scalar_lea.vmem %s3, %s160
      %s162 = smul.u32 2, %s14
      %p163 = scmp.lt.s32.totalorder %s162, 3
      %s164 = scalar_select %p163, %s162, 3
      %s165 = smul.addr %s164, 8
      %s166 = scalar_lea.vmem %s0, %s165
      %s167 = smul.u32 2, %s14
      %s168 = smul.u32 2, %s14
      %p169 = scmp.lt.s32.totalorder %s168, 3
      %s170 = scalar_select %p169, %s168, 3
      %s171 = smul.addr %s170, 4
      %s172 = scalar_lea.vmem %s3, %s171
      %s173 = smul.u32 2, %s14
      %v175 = vld [vmem:[%s166] sm:$0xff]
      %v176 = vld [vmem:[%s166 + $0x8] sm:$0xff]
      %v177 = vpack.c.bf16 %v176, %v175
      %v178 = vld [vmem:[%s1] sm:$0xf]
      %v179 = vld [vmem:[%s2] sm:$0x1]
      %v181 = vlaneseq
      %v182 = vshrl.u32 %v181, 7
      %v183 = vsub.s32 0, %v182
      %v184 = vrot.slane %v179, %v183
      %vm186 = vcmask 64512
      %v188 = vsel %vm186, %v177, 0
      %vm190 = vcmask 1043456
      %v192 = vsel %vm190, %v178, 0
      %194 = vmatprep.subr.bf16.mxu0 0
      %195 = vmatpush1.bf16.msra.mxu0 0
      %196 = vmatprep.subr.bf16.mxu0 0
      %197 = vmatpush1.bf16.msra.mxu0 0
      %198 = vmatprep.subr.bf16.mxu0 0
      %199 = vmatpush1.bf16.msra.mxu0 0
      %200 = vmatprep.subr.bf16.mxu0 0
      %201 = vmatpush1.bf16.msra.mxu0 0
      %202 = vmatprep.subr.bf16.mxu0 0
      %203 = vmatpush1.bf16.msra.mxu0 0
      %204 = vmatprep.subr.bf16.mxu0 0
      %205 = vmatpush1.bf16.msra.mxu0 0
      %206 = vmatprep.subr.bf16.mxu0 0
      %207 = vmatpush1.bf16.msra.mxu0 0
      %208 = vmatprep.subr.bf16.mxu0 0
      %209 = vmatpush1.bf16.msra.mxu0 %v192
      %210 = vmatprep.subr.bf16.mxu0 0
      %211 = vmatpush2.bf16.msra.mxu0 0
      %212 = vmatprep.subr.bf16.mxu0 0
      %213 = vmatpush2.bf16.msra.mxu0 0
      %214 = vmatprep.subr.bf16.mxu0 0
      %215 = vmatpush2.bf16.msra.mxu0 0
      %216 = vmatprep.subr.bf16.mxu0 0
      %217 = vmatpush2.bf16.msra.mxu0 0
      %218 = vmatprep.subr.bf16.mxu0 0
      %219 = vmatpush2.bf16.msra.mxu0 0
      %220 = vmatprep.subr.bf16.mxu0 0
      %221 = vmatpush2.bf16.msra.mxu0 0
      %222 = vmatprep.subr.bf16.mxu0 0
      %223 = vmatpush2.bf16.msra.mxu0 0
      %224 = vmatprep.subr.bf16.mxu0 0
      %225 = vmatpush2.bf16.msra.mxu0 0
      %226 = vmatprep.mubr.bf16.mxu0 0
      %227 = vmatmul.mubr.bf16.gmra.mxu0 %v188
      %v228 = vpop.f32.mrf.mxu0
      %v229 = vadd.f32 %v184, %v228
      %v230 = vpop.f32.mrf.mxu0
      %v231 = vpop.f32.mrf.mxu0
      %v232 = vadd.f32 %v184, %v231
      %v233 = vpop.f32.mrf.mxu0
      %234 = vdwg.mxu0
      %v235 = vmax.f32 %v229, 0.0
      %v236 = vmax.f32 %v232, 0.0
      %v237 = vpack.c.bf16 %v236, %v235
      %v239 = vunpack.c.l.b16 %v237
      %v240 = vunpack.c.h.b16 %v237
      %v241 = vpack.c.b16 %v239, %v239
      %v242 = vpack.c.b16 %v240, %v240
      %vm245 = vcmask 60416
      %246 = vst.msk [vmem:[%s172] sm:$0xf] %vm245, %v241
      %247 = vst.msk [vmem:[%s172 + $0x4] sm:$0xf] %vm245, %v242
      %s248 = smul.u32 2, %s14
      %p249 = scmp.lt.s32.totalorder %s248, 3
      %s250 = scalar_select %p249, %s248, 3
      %s251 = smul.addr %s250, 4
      %s252 = scalar_lea.vmem %s3, %s251
      // Predicated region
      $region33: #{dilated_res_block.3} parent=31 // pred_check
        %p253 = pneg %p100
      $region34: #{dilated_res_block.3} parent=31 // pred_check_branch
        %255 = sbr.rel (%p253) target = $region36
      $region35: #{dilated_res_block.3} parent=31 // pred_region
        %s256 = smul.u32 2, %s14
      $region36: #{dilated_res_block.3} parent=31 // pred_fallthru
        _
    $region32: #{dilated_res_block.3} parent=5 // pred_fallthru
      _
    %p257 = scmp.le.s32.totalorder 2, %s9
    // Predicated region
    $region37: #{dilated_res_block.3} parent=5 // pred_check
      %p258 = pneg %p257
    $region38: #{dilated_res_block.3} parent=5 // pred_check_branch
      %260 = sbr.rel (%p258) target = $region40
    $region39: #{dilated_res_block.3} parent=5 // pred_region
      %s261 = ssub.s32 %s9, 2
      // Predicated region
      $region41: #{dilated_res_block.3} parent=39 // pred_check
        %p262 = pneg %p106
      $region42: #{dilated_res_block.3} parent=39 // pred_check_branch
        %264 = sbr.rel (%p262) target = $region44
      $region43: #{dilated_res_block.3} parent=39 // pred_region
        %s265 = smul.u32 2, %s15
        %p266 = scmp.lt.s32.totalorder %s265, 3
        %s267 = scalar_select %p266, %s265, 3
        %s268 = smul.addr %s267, 4
        %s269 = scalar_lea.vmem %s3, %s268
      $region44: #{dilated_res_block.3} parent=39 // pred_fallthru
        _
    $region40: #{dilated_res_block.3} parent=5 // pred_fallthru
      _
  $region6: #{dilated_res_block.3} parent=0 // loop_footer
    %s13 = sadd.s32 1, %s9
  $region7: #{dilated_res_block.3} parent=0 // loop_footer_branch
    %8 = sbr.rel target = $region3
  $region8: #{dilated_res_block.3} parent=0 // loop_exit
    _

// kernel: dilated_res_block.4
$region0: #{dilated_res_block.4}
  #allocation0 [shape = 'u32[]', space=smem, size = 0x4, offset = 0x4, fixed_abs, tag = 'smem constant byte address 0x4 - core index']
  #allocation1 [shape = 'u32[144,128]{1,0:T(1,128)}', space=vmem, size = 0x12000, scoped, tag = 'internal scratch']
  %s0 = inlined_call_operand.vmem [shape: f32[32,3], index: 0, kind: input, shape index: {}]
  %s1 = inlined_call_operand.vmem [shape: f32[32,8,3], index: 1, kind: input, shape index: {}]
  %s2 = inlined_call_operand.vmem [shape: bf16[32,8,8], index: 2, kind: input, shape index: {}]
  %s3 = inlined_call_operand.vmem [shape: f32[1,8], index: 3, kind: input, shape index: {}]
  %s4 = inlined_call_operand.vmem [shape: f32[3,8], index: 4, kind: input, shape index: {}]
  %s5 = inlined_call_operand.vmem [shape: f32[3,8], index: 5, kind: input, shape index: {}]
  %s6 = inlined_call_operand.vmem [shape: f32[3,8], index: 6, kind: input, shape index: {}]
  %s7 = inlined_call_operand.vmem [shape: f32[1,8], index: 7, kind: input, shape index: {}]
  %s8 = inlined_call_operand.vmem [shape: bf16[8,16], index: 8, kind: input, shape index: {}]
  %s9 = inlined_call_operand.vmem [shape: bf16[8,16], index: 9, kind: input, shape index: {}]
  %s10 = inlined_call_operand.vmem [shape: bf16[8,8], index: 10, kind: input, shape index: {}]
  %s11 = inlined_call_operand.vmem [shape: bf16[8,8], index: 11, kind: input, shape index: {}]
  %s12 = inlined_call_operand.vmem [shape: f32[1,8], index: 12, kind: input, shape index: {}]
  %s13 = inlined_call_operand.vmem [shape: bf16[8,8], index: 13, kind: input, shape index: {}]
  %s14 = inlined_call_operand.vmem [shape: f32[1,8], index: 14, kind: input, shape index: {}]
  %s15 = inlined_call_operand.vmem [shape: bf16[32,8], index: 15, kind: output, shape index: {0}]
  %s16 = inlined_call_operand.vmem [shape: bf16[32,8,8], index: 16, kind: output, shape index: {1}]
  %17 = xla_tuple %s15, %s16
  %s18 = sld [smem:[#allocation0]]
  $region101: #{dilated_res_block.4} parent=0
    _
  %s20 = ssub.s32 1, %s18
  %s21 = scalar_select 0, %s20, %s18
  loop: start=0, step=1, limit=4
  $region2: #{dilated_res_block.4} parent=0 // loop_pre_header
    _
  $region3: #{dilated_res_block.4} parent=0 // loop_header
    %s23 = sphi 0, %s27
    %p24 = scmp.ge.s32.totalorder %s23, 4
    %s33 = sphi 0, %s35
    %s36 = sphi 0, %s33
    %s37 = sphi 0, %s36
    %s53 = sphi 0, %s37
    %s59 = sphi 0, %s61
    %s62 = sphi 0, %s59
    %s63 = sphi 0, %s62
    %s79 = sphi 0, %s63
    %s85 = sphi 0, %s87
    %s88 = sphi 0, %s85
    %s89 = sphi 0, %s88
    %s105 = sphi 0, %s89
    %s109 = sphi 0, %s109
    %s111 = sphi 0, %s109
    %s112 = sphi 0, %s111
    %s126 = sphi 0, %s112
    %s130 = sphi 0, %s130
    %s132 = sphi 0, %s130
    %s133 = sphi 0, %s132
    %s147 = sphi 0, %s133
    %s151 = sphi 0, %s151
    %s153 = sphi 0, %s151
    %s154 = sphi 0, %s153
    %s168 = sphi 0, %s154
    %s172 = sphi 0, %s172
    %s174 = sphi 0, %s172
    %s175 = sphi 0, %s174
    %s189 = sphi 0, %s175
    %s193 = sphi 0, %s193
    %s195 = sphi 0, %s193
    %s196 = sphi 0, %s195
    %s210 = sphi 0, %s196
    %s214 = sphi 0, %s214
    %s216 = sphi 0, %s214
    %s217 = sphi 0, %s216
    %s231 = sphi 0, %s217
    %s235 = sphi 0, %s235
    %s237 = sphi 0, %s235
    %s238 = sphi 0, %s237
    %s252 = sphi 0, %s238
    %s256 = sphi 0, %s256
    %s258 = sphi 0, %s256
    %s259 = sphi 0, %s258
    %s273 = sphi 0, %s259
    %s277 = sphi 0, %s277
    %s279 = sphi 0, %s277
    %s280 = sphi 0, %s279
    %s294 = sphi 0, %s280
    %s298 = sphi 0, %s298
    %s300 = sphi 0, %s298
    %s301 = sphi 0, %s300
    %s315 = sphi 0, %s301
    %s319 = sphi 0, %s319
    %s321 = sphi 0, %s319
    %s322 = sphi 0, %s321
    %s336 = sphi 0, %s322
    %s340 = sphi 0, %s340
    %s342 = sphi 0, %s340
    %s343 = sphi 0, %s342
    %s357 = sphi 0, %s343
    %s363 = sphi 0, %s365
    %s366 = sphi 0, %s363
    %s367 = sphi 0, %s366
    %s383 = sphi 0, %s367
    %s389 = sphi 0, %s391
    %s392 = sphi 0, %s389
    %s393 = sphi 0, %s392
    %s409 = sphi 0, %s393
  $region4: #{dilated_res_block.4} parent=0 // loop_header_branch
    %26 = sbr.rel (%p24) target = $region8
  $region5: #{dilated_res_block.4} parent=0 // loop_body
    %s28 = ssub.s32 %s23, 1
    %s29 = ssub.s32 %s23, 2
    %s30 = sadd.s32 %s23, 1
    %s31 = ssub.s32 %s23, %s30
    %p32 = scmp.eq.s32.totalorder %s31, 0
    %s34 = sadd.s32 %s33, 1
    %s35 = scalar_select %p32, %s33, %s34
    %p38 = pneg %p32
    %p39 = scmp.eq.s32.totalorder %s23, 1
    %p40 = por %p38, %p39
    %p41 = scmp.ne.s32.totalorder %s33, %s36
    %p42 = scmp.eq.s32.totalorder %s23, 0
    %p43 = por %p41, %p42
    %p44 = scmp.ne.s32.totalorder %s33, %s36
    %p45 = scmp.eq.s32.totalorder %s28, 1
    %p46 = por %p44, %p45
    %p47 = scmp.ne.s32.totalorder %s36, %s37
    %p48 = scmp.eq.s32.totalorder %s28, 0
    %p49 = por %p47, %p48
    %p50 = scmp.ne.s32.totalorder %s36, %s37
    %p51 = scmp.eq.s32.totalorder %s29, 1
    %p52 = por %p50, %p51
    %p54 = scmp.ne.s32.totalorder %s37, %s53
    %p55 = scmp.eq.s32.totalorder %s29, 0
    %p56 = por %p54, %p55
    %s57 = ssub.s32 %s23, %s30
    %p58 = scmp.eq.s32.totalorder %s57, 0
    %s60 = sadd.s32 %s59, 1
    %s61 = scalar_select %p58, %s59, %s60
    %p64 = pneg %p58
    %p65 = scmp.eq.s32.totalorder %s23, 1
    %p66 = por %p64, %p65
    %p67 = scmp.ne.s32.totalorder %s59, %s62
    %p68 = scmp.eq.s32.totalorder %s23, 0
    %p69 = por %p67, %p68
    %p70 = scmp.ne.s32.totalorder %s59, %s62
    %p71 = scmp.eq.s32.totalorder %s28, 1
    %p72 = por %p70, %p71
    %p73 = scmp.ne.s32.totalorder %s62, %s63
    %p74 = scmp.eq.s32.totalorder %s28, 0
    %p75 = por %p73, %p74
    %p76 = scmp.ne.s32.totalorder %s62, %s63
    %p77 = scmp.eq.s32.totalorder %s29, 1
    %p78 = por %p76, %p77
    %p80 = scmp.ne.s32.totalorder %s63, %s79
    %p81 = scmp.eq.s32.totalorder %s29, 0
    %p82 = por %p80, %p81
    %s83 = ssub.s32 %s23, %s30
    %p84 = scmp.eq.s32.totalorder %s83, 0
    %s86 = sadd.s32 %s85, 1
    %s87 = scalar_select %p84, %s85, %s86
    %p90 = pneg %p84
    %p91 = scmp.eq.s32.totalorder %s23, 1
    %p92 = por %p90, %p91
    %p93 = scmp.ne.s32.totalorder %s85, %s88
    %p94 = scmp.eq.s32.totalorder %s23, 0
    %p95 = por %p93, %p94
    %p96 = scmp.ne.s32.totalorder %s85, %s88
    %p97 = scmp.eq.s32.totalorder %s28, 1
    %p98 = por %p96, %p97
    %p99 = scmp.ne.s32.totalorder %s88, %s89
    %p100 = scmp.eq.s32.totalorder %s28, 0
    %p101 = por %p99, %p100
    %p102 = scmp.ne.s32.totalorder %s88, %s89
    %p103 = scmp.eq.s32.totalorder %s29, 1
    %p104 = por %p102, %p103
    %p106 = scmp.ne.s32.totalorder %s89, %s105
    %p107 = scmp.eq.s32.totalorder %s29, 0
    %p108 = por %p106, %p107
    %s110 = sadd.s32 %s109, 1
    %p113 = scmp.eq.s32.totalorder %s23, 1
    %p114 = scmp.ne.s32.totalorder %s109, %s111
    %p115 = scmp.eq.s32.totalorder %s23, 0
    %p116 = por %p114, %p115
    %p117 = scmp.ne.s32.totalorder %s109, %s111
    %p118 = scmp.eq.s32.totalorder %s28, 1
    %p119 = por %p117, %p118
    %p120 = scmp.ne.s32.totalorder %s111, %s112
    %p121 = scmp.eq.s32.totalorder %s28, 0
    %p122 = por %p120, %p121
    %p123 = scmp.ne.s32.totalorder %s111, %s112
    %p124 = scmp.eq.s32.totalorder %s29, 1
    %p125 = por %p123, %p124
    %p127 = scmp.ne.s32.totalorder %s112, %s126
    %p128 = scmp.eq.s32.totalorder %s29, 0
    %p129 = por %p127, %p128
    %s131 = sadd.s32 %s130, 1
    %p134 = scmp.eq.s32.totalorder %s23, 1
    %p135 = scmp.ne.s32.totalorder %s130, %s132
    %p136 = scmp.eq.s32.totalorder %s23, 0
    %p137 = por %p135, %p136
    %p138 = scmp.ne.s32.totalorder %s130, %s132
    %p139 = scmp.eq.s32.totalorder %s28, 1
    %p140 = por %p138, %p139
    %p141 = scmp.ne.s32.totalorder %s132, %s133
    %p142 = scmp.eq.s32.totalorder %s28, 0
    %p143 = por %p141, %p142
    %p144 = scmp.ne.s32.totalorder %s132, %s133
    %p145 = scmp.eq.s32.totalorder %s29, 1
    %p146 = por %p144, %p145
    %p148 = scmp.ne.s32.totalorder %s133, %s147
    %p149 = scmp.eq.s32.totalorder %s29, 0
    %p150 = por %p148, %p149
    %s152 = sadd.s32 %s151, 1
    %p155 = scmp.eq.s32.totalorder %s23, 1
    %p156 = scmp.ne.s32.totalorder %s151, %s153
    %p157 = scmp.eq.s32.totalorder %s23, 0
    %p158 = por %p156, %p157
    %p159 = scmp.ne.s32.totalorder %s151, %s153
    %p160 = scmp.eq.s32.totalorder %s28, 1
    %p161 = por %p159, %p160
    %p162 = scmp.ne.s32.totalorder %s153, %s154
    %p163 = scmp.eq.s32.totalorder %s28, 0
    %p164 = por %p162, %p163
    %p165 = scmp.ne.s32.totalorder %s153, %s154
    %p166 = scmp.eq.s32.totalorder %s29, 1
    %p167 = por %p165, %p166
    %p169 = scmp.ne.s32.totalorder %s154, %s168
    %p170 = scmp.eq.s32.totalorder %s29, 0
    %p171 = por %p169, %p170
    %s173 = sadd.s32 %s172, 1
    %p176 = scmp.eq.s32.totalorder %s23, 1
    %p177 = scmp.ne.s32.totalorder %s172, %s174
    %p178 = scmp.eq.s32.totalorder %s23, 0
    %p179 = por %p177, %p178
    %p180 = scmp.ne.s32.totalorder %s172, %s174
    %p181 = scmp.eq.s32.totalorder %s28, 1
    %p182 = por %p180, %p181
    %p183 = scmp.ne.s32.totalorder %s174, %s175
    %p184 = scmp.eq.s32.totalorder %s28, 0
    %p185 = por %p183, %p184
    %p186 = scmp.ne.s32.totalorder %s174, %s175
    %p187 = scmp.eq.s32.totalorder %s29, 1
    %p188 = por %p186, %p187
    %p190 = scmp.ne.s32.totalorder %s175, %s189
    %p191 = scmp.eq.s32.totalorder %s29, 0
    %p192 = por %p190, %p191
    %s194 = sadd.s32 %s193, 1
    %p197 = scmp.eq.s32.totalorder %s23, 1
    %p198 = scmp.ne.s32.totalorder %s193, %s195
    %p199 = scmp.eq.s32.totalorder %s23, 0
    %p200 = por %p198, %p199
    %p201 = scmp.ne.s32.totalorder %s193, %s195
    %p202 = scmp.eq.s32.totalorder %s28, 1
    %p203 = por %p201, %p202
    %p204 = scmp.ne.s32.totalorder %s195, %s196
    %p205 = scmp.eq.s32.totalorder %s28, 0
    %p206 = por %p204, %p205
    %p207 = scmp.ne.s32.totalorder %s195, %s196
    %p208 = scmp.eq.s32.totalorder %s29, 1
    %p209 = por %p207, %p208
    %p211 = scmp.ne.s32.totalorder %s196, %s210
    %p212 = scmp.eq.s32.totalorder %s29, 0
    %p213 = por %p211, %p212
    %s215 = sadd.s32 %s214, 1
    %p218 = scmp.eq.s32.totalorder %s23, 1
    %p219 = scmp.ne.s32.totalorder %s214, %s216
    %p220 = scmp.eq.s32.totalorder %s23, 0
    %p221 = por %p219, %p220
    %p222 = scmp.ne.s32.totalorder %s214, %s216
    %p223 = scmp.eq.s32.totalorder %s28, 1
    %p224 = por %p222, %p223
    %p225 = scmp.ne.s32.totalorder %s216, %s217
    %p226 = scmp.eq.s32.totalorder %s28, 0
    %p227 = por %p225, %p226
    %p228 = scmp.ne.s32.totalorder %s216, %s217
    %p229 = scmp.eq.s32.totalorder %s29, 1
    %p230 = por %p228, %p229
    %p232 = scmp.ne.s32.totalorder %s217, %s231
    %p233 = scmp.eq.s32.totalorder %s29, 0
    %p234 = por %p232, %p233
    %s236 = sadd.s32 %s235, 1
    %p239 = scmp.eq.s32.totalorder %s23, 1
    %p240 = scmp.ne.s32.totalorder %s235, %s237
    %p241 = scmp.eq.s32.totalorder %s23, 0
    %p242 = por %p240, %p241
    %p243 = scmp.ne.s32.totalorder %s235, %s237
    %p244 = scmp.eq.s32.totalorder %s28, 1
    %p245 = por %p243, %p244
    %p246 = scmp.ne.s32.totalorder %s237, %s238
    %p247 = scmp.eq.s32.totalorder %s28, 0
    %p248 = por %p246, %p247
    %p249 = scmp.ne.s32.totalorder %s237, %s238
    %p250 = scmp.eq.s32.totalorder %s29, 1
    %p251 = por %p249, %p250
    %p253 = scmp.ne.s32.totalorder %s238, %s252
    %p254 = scmp.eq.s32.totalorder %s29, 0
    %p255 = por %p253, %p254
    %s257 = sadd.s32 %s256, 1
    %p260 = scmp.eq.s32.totalorder %s23, 1
    %p261 = scmp.ne.s32.totalorder %s256, %s258
    %p262 = scmp.eq.s32.totalorder %s23, 0
    %p263 = por %p261, %p262
    %p264 = scmp.ne.s32.totalorder %s256, %s258
    %p265 = scmp.eq.s32.totalorder %s28, 1
    %p266 = por %p264, %p265
    %p267 = scmp.ne.s32.totalorder %s258, %s259
    %p268 = scmp.eq.s32.totalorder %s28, 0
    %p269 = por %p267, %p268
    %p270 = scmp.ne.s32.totalorder %s258, %s259
    %p271 = scmp.eq.s32.totalorder %s29, 1
    %p272 = por %p270, %p271
    %p274 = scmp.ne.s32.totalorder %s259, %s273
    %p275 = scmp.eq.s32.totalorder %s29, 0
    %p276 = por %p274, %p275
    %s278 = sadd.s32 %s277, 1
    %p281 = scmp.eq.s32.totalorder %s23, 1
    %p282 = scmp.ne.s32.totalorder %s277, %s279
    %p283 = scmp.eq.s32.totalorder %s23, 0
    %p284 = por %p282, %p283
    %p285 = scmp.ne.s32.totalorder %s277, %s279
    %p286 = scmp.eq.s32.totalorder %s28, 1
    %p287 = por %p285, %p286
    %p288 = scmp.ne.s32.totalorder %s279, %s280
    %p289 = scmp.eq.s32.totalorder %s28, 0
    %p290 = por %p288, %p289
    %p291 = scmp.ne.s32.totalorder %s279, %s280
    %p292 = scmp.eq.s32.totalorder %s29, 1
    %p293 = por %p291, %p292
    %p295 = scmp.ne.s32.totalorder %s280, %s294
    %p296 = scmp.eq.s32.totalorder %s29, 0
    %p297 = por %p295, %p296
    %s299 = sadd.s32 %s298, 1
    %p302 = scmp.eq.s32.totalorder %s23, 1
    %p303 = scmp.ne.s32.totalorder %s298, %s300
    %p304 = scmp.eq.s32.totalorder %s23, 0
    %p305 = por %p303, %p304
    %p306 = scmp.ne.s32.totalorder %s298, %s300
    %p307 = scmp.eq.s32.totalorder %s28, 1
    %p308 = por %p306, %p307
    %p309 = scmp.ne.s32.totalorder %s300, %s301
    %p310 = scmp.eq.s32.totalorder %s28, 0
    %p311 = por %p309, %p310
    %p312 = scmp.ne.s32.totalorder %s300, %s301
    %p313 = scmp.eq.s32.totalorder %s29, 1
    %p314 = por %p312, %p313
    %p316 = scmp.ne.s32.totalorder %s301, %s315
    %p317 = scmp.eq.s32.totalorder %s29, 0
    %p318 = por %p316, %p317
    %s320 = sadd.s32 %s319, 1
    %p323 = scmp.eq.s32.totalorder %s23, 1
    %p324 = scmp.ne.s32.totalorder %s319, %s321
    %p325 = scmp.eq.s32.totalorder %s23, 0
    %p326 = por %p324, %p325
    %p327 = scmp.ne.s32.totalorder %s319, %s321
    %p328 = scmp.eq.s32.totalorder %s28, 1
    %p329 = por %p327, %p328
    %p330 = scmp.ne.s32.totalorder %s321, %s322
    %p331 = scmp.eq.s32.totalorder %s28, 0
    %p332 = por %p330, %p331
    %p333 = scmp.ne.s32.totalorder %s321, %s322
    %p334 = scmp.eq.s32.totalorder %s29, 1
    %p335 = por %p333, %p334
    %p337 = scmp.ne.s32.totalorder %s322, %s336
    %p338 = scmp.eq.s32.totalorder %s29, 0
    %p339 = por %p337, %p338
    %s341 = sadd.s32 %s340, 1
    %p344 = scmp.eq.s32.totalorder %s23, 1
    %p345 = scmp.ne.s32.totalorder %s340, %s342
    %p346 = scmp.eq.s32.totalorder %s23, 0
    %p347 = por %p345, %p346
    %p348 = scmp.ne.s32.totalorder %s340, %s342
    %p349 = scmp.eq.s32.totalorder %s28, 1
    %p350 = por %p348, %p349
    %p351 = scmp.ne.s32.totalorder %s342, %s343
    %p352 = scmp.eq.s32.totalorder %s28, 0
    %p353 = por %p351, %p352
    %p354 = scmp.ne.s32.totalorder %s342, %s343
    %p355 = scmp.eq.s32.totalorder %s29, 1
    %p356 = por %p354, %p355
    %p358 = scmp.ne.s32.totalorder %s343, %s357
    %p359 = scmp.eq.s32.totalorder %s29, 0
    %p360 = por %p358, %p359
    %s361 = ssub.s32 %s23, %s30
    %p362 = scmp.eq.s32.totalorder %s361, 0
    %s364 = sadd.s32 %s363, 1
    %s365 = scalar_select %p362, %s363, %s364
    %p368 = pneg %p362
    %p369 = scmp.eq.s32.totalorder %s23, 1
    %p370 = por %p368, %p369
    %p371 = scmp.ne.s32.totalorder %s363, %s366
    %p372 = scmp.eq.s32.totalorder %s23, 0
    %p373 = por %p371, %p372
    %p374 = scmp.ne.s32.totalorder %s363, %s366
    %p375 = scmp.eq.s32.totalorder %s28, 1
    %p376 = por %p374, %p375
    %p377 = scmp.ne.s32.totalorder %s366, %s367
    %p378 = scmp.eq.s32.totalorder %s28, 0
    %p379 = por %p377, %p378
    %p380 = scmp.ne.s32.totalorder %s366, %s367
    %p381 = scmp.eq.s32.totalorder %s29, 1
    %p382 = por %p380, %p381
    %p384 = scmp.ne.s32.totalorder %s367, %s383
    %p385 = scmp.eq.s32.totalorder %s29, 0
    %p386 = por %p384, %p385
    %s387 = ssub.s32 %s23, %s30
    %p388 = scmp.eq.s32.totalorder %s387, 0
    %s390 = sadd.s32 %s389, 1
    %s391 = scalar_select %p388, %s389, %s390
    %p394 = pneg %p388
    %p395 = scmp.eq.s32.totalorder %s23, 1
    %p396 = por %p394, %p395
    %p397 = scmp.ne.s32.totalorder %s389, %s392
    %p398 = scmp.eq.s32.totalorder %s23, 0
    %p399 = por %p397, %p398
    %p400 = scmp.ne.s32.totalorder %s389, %s392
    %p401 = scmp.eq.s32.totalorder %s28, 1
    %p402 = por %p400, %p401
    %p403 = scmp.ne.s32.totalorder %s392, %s393
    %p404 = scmp.eq.s32.totalorder %s28, 0
    %p405 = por %p403, %p404
    %p406 = scmp.ne.s32.totalorder %s392, %s393
    %p407 = scmp.eq.s32.totalorder %s29, 1
    %p408 = por %p406, %p407
    %p410 = scmp.ne.s32.totalorder %s393, %s409
    %p411 = scmp.eq.s32.totalorder %s29, 0
    %p412 = por %p410, %p411
    %p413 = scmp.le.s32.totalorder 1, %s23
    %p414 = scmp.lt.s32.totalorder %s23, 3
    %p415 = pnand %p413, %p414
    %p416 = pneg %p415
    // Predicated region
    $region9: #{dilated_res_block.4} parent=5 // pred_check
      _
    $region10: #{dilated_res_block.4} parent=5 // pred_check_branch
      %418 = sbr.rel (%p415) target = $region12
    $region11: #{dilated_res_block.4} parent=5 // pred_region
      %s419 = ssub.s32 %s23, 1
      // Predicated region
      $region13: #{dilated_res_block.4} parent=11 // pred_check
        %p420 = pneg %p122
      $region14: #{dilated_res_block.4} parent=11 // pred_check_branch
        %422 = sbr.rel (%p420) target = $region16
      $region15: #{dilated_res_block.4} parent=11 // pred_region
        _
      $region16: #{dilated_res_block.4} parent=11 // pred_fallthru
        _
      // Predicated region
      $region17: #{dilated_res_block.4} parent=11 // pred_check
        %p423 = pneg %p143
      $region18: #{dilated_res_block.4} parent=11 // pred_check_branch
        %425 = sbr.rel (%p423) target = $region20
      $region19: #{dilated_res_block.4} parent=11 // pred_region
        _
      $region20: #{dilated_res_block.4} parent=11 // pred_fallthru
        _
      // Predicated region
      $region21: #{dilated_res_block.4} parent=11 // pred_check
        %p426 = pneg %p164
      $region22: #{dilated_res_block.4} parent=11 // pred_check_branch
        %428 = sbr.rel (%p426) target = $region24
      $region23: #{dilated_res_block.4} parent=11 // pred_region
        _
      $region24: #{dilated_res_block.4} parent=11 // pred_fallthru
        _
      // Predicated region
      $region25: #{dilated_res_block.4} parent=11 // pred_check
        %p429 = pneg %p185
      $region26: #{dilated_res_block.4} parent=11 // pred_check_branch
        %431 = sbr.rel (%p429) target = $region28
      $region27: #{dilated_res_block.4} parent=11 // pred_region
        _
      $region28: #{dilated_res_block.4} parent=11 // pred_fallthru
        _
      // Predicated region
      $region29: #{dilated_res_block.4} parent=11 // pred_check
        %p432 = pneg %p206
      $region30: #{dilated_res_block.4} parent=11 // pred_check_branch
        %434 = sbr.rel (%p432) target = $region32
      $region31: #{dilated_res_block.4} parent=11 // pred_region
        _
      $region32: #{dilated_res_block.4} parent=11 // pred_fallthru
        _
      // Predicated region
      $region33: #{dilated_res_block.4} parent=11 // pred_check
        %p435 = pneg %p227
      $region34: #{dilated_res_block.4} parent=11 // pred_check_branch
        %437 = sbr.rel (%p435) target = $region36
      $region35: #{dilated_res_block.4} parent=11 // pred_region
        _
      $region36: #{dilated_res_block.4} parent=11 // pred_fallthru
        _
      // Predicated region
      $region37: #{dilated_res_block.4} parent=11 // pred_check
        %p438 = pneg %p248
      $region38: #{dilated_res_block.4} parent=11 // pred_check_branch
        %440 = sbr.rel (%p438) target = $region40
      $region39: #{dilated_res_block.4} parent=11 // pred_region
        _
      $region40: #{dilated_res_block.4} parent=11 // pred_fallthru
        _
      // Predicated region
      $region41: #{dilated_res_block.4} parent=11 // pred_check
        %p441 = pneg %p269
      $region42: #{dilated_res_block.4} parent=11 // pred_check_branch
        %443 = sbr.rel (%p441) target = $region44
      $region43: #{dilated_res_block.4} parent=11 // pred_region
        _
      $region44: #{dilated_res_block.4} parent=11 // pred_fallthru
        _
      // Predicated region
      $region45: #{dilated_res_block.4} parent=11 // pred_check
        %p444 = pneg %p290
      $region46: #{dilated_res_block.4} parent=11 // pred_check_branch
        %446 = sbr.rel (%p444) target = $region48
      $region47: #{dilated_res_block.4} parent=11 // pred_region
        _
      $region48: #{dilated_res_block.4} parent=11 // pred_fallthru
        _
      // Predicated region
      $region49: #{dilated_res_block.4} parent=11 // pred_check
        %p447 = pneg %p311
      $region50: #{dilated_res_block.4} parent=11 // pred_check_branch
        %449 = sbr.rel (%p447) target = $region52
      $region51: #{dilated_res_block.4} parent=11 // pred_region
        _
      $region52: #{dilated_res_block.4} parent=11 // pred_fallthru
        _
      // Predicated region
      $region53: #{dilated_res_block.4} parent=11 // pred_check
        %p450 = pneg %p332
      $region54: #{dilated_res_block.4} parent=11 // pred_check_branch
        %452 = sbr.rel (%p450) target = $region56
      $region55: #{dilated_res_block.4} parent=11 // pred_region
        _
      $region56: #{dilated_res_block.4} parent=11 // pred_fallthru
        _
      // Predicated region
      $region57: #{dilated_res_block.4} parent=11 // pred_check
        %p453 = pneg %p353
      $region58: #{dilated_res_block.4} parent=11 // pred_check_branch
        %455 = sbr.rel (%p453) target = $region60
      $region59: #{dilated_res_block.4} parent=11 // pred_region
        _
      $region60: #{dilated_res_block.4} parent=11 // pred_fallthru
        _
    $region12: #{dilated_res_block.4} parent=5 // pred_fallthru
      _
    %p456 = scmp.lt.s32.totalorder %s23, 2
    // Predicated region
    $region61: #{dilated_res_block.4} parent=5 // pred_check
      %p457 = pneg %p456
    $region62: #{dilated_res_block.4} parent=5 // pred_check_branch
      %459 = sbr.rel (%p457) target = $region64
    $region63: #{dilated_res_block.4} parent=5 // pred_region
      // Predicated region
      $region65: #{dilated_res_block.4} parent=63 // pred_check
        %p460 = pneg %p43
      $region66: #{dilated_res_block.4} parent=63 // pred_check_branch
        %462 = sbr.rel (%p460) target = $region68
      $region67: #{dilated_res_block.4} parent=63 // pred_region
        %s463 = smul.u32 2, %s23
        %p464 = scmp.lt.s32.totalorder %s463, 3
        %s465 = scalar_select %p464, %s463, 3
        %s466 = smul.addr %s465, 8
        %s467 = scalar_lea.vmem %s0, %s466
        %s468 = smul.u32 2, %s23
      $region68: #{dilated_res_block.4} parent=63 // pred_fallthru
        _
      // Predicated region
      $region69: #{dilated_res_block.4} parent=63 // pred_check
        %p469 = pneg %p69
      $region70: #{dilated_res_block.4} parent=63 // pred_check_branch
        %471 = sbr.rel (%p469) target = $region72
      $region71: #{dilated_res_block.4} parent=63 // pred_region
        %s472 = smul.u32 16, %s23
        %p473 = scmp.lt.s32.totalorder %s472, 31
        %s474 = scalar_select %p473, %s472, 31
        %s475 = smul.addr %s474, 8
        %s476 = scalar_lea.vmem %s1, %s475
        %s477 = smul.u32 16, %s23
      $region72: #{dilated_res_block.4} parent=63 // pred_fallthru
        _
      // Predicated region
      $region73: #{dilated_res_block.4} parent=63 // pred_check
        %p478 = pneg %p95
      $region74: #{dilated_res_block.4} parent=63 // pred_check_branch
        %480 = sbr.rel (%p478) target = $region76
      $region75: #{dilated_res_block.4} parent=63 // pred_region
        %s481 = smul.u32 16, %s23
        %p482 = scmp.lt.s32.totalorder %s481, 31
        %s483 = scalar_select %p482, %s481, 31
        %s484 = smul.addr %s483, 4
        %s485 = scalar_lea.vmem %s2, %s484
        %s486 = smul.u32 16, %s23
      $region76: #{dilated_res_block.4} parent=63 // pred_fallthru
        _
    $region64: #{dilated_res_block.4} parent=5 // pred_fallthru
      _
    %p487 = scmp.le.s32.totalorder 1, %s23
    %p488 = scmp.lt.s32.totalorder %s23, 3
    %p489 = pnand %p487, %p488
    %p490 = pneg %p489
    // Predicated region
    $region77: #{dilated_res_block.4} parent=5 // pred_check
      _
    $region78: #{dilated_res_block.4} parent=5 // pred_check_branch
      %492 = sbr.rel (%p489) target = $region80
    $region79: #{dilated_res_block.4} parent=5 // pred_region
      %s493 = ssub.s32 %s23, 1
      %s494 = smul.u32 2, %s28
      %p495 = scmp.lt.s32.totalorder %s494, 3
      %s496 = scalar_select %p495, %s494, 3
      %s497 = smul.addr %s496, 8
      %s498 = scalar_lea.vmem %s0, %s497
      %p499 = pneg %p49
      %p500 = pneg %p46
      %s501 = smul.u32 16, %s28
      %p502 = scmp.lt.s32.totalorder %s501, 31
      %s503 = scalar_select %p502, %s501, 31
      %s504 = smul.addr %s503, 8
      %s505 = scalar_lea.vmem %s1, %s504
      %p506 = pneg %p75
      %p507 = pneg %p72
      %s508 = smul.u32 16, %s28
      %p509 = scmp.lt.s32.totalorder %s508, 31
      %s510 = scalar_select %p509, %s508, 31
      %s511 = smul.addr %s510, 4
      %s512 = scalar_lea.vmem %s2, %s511
      %p513 = pneg %p101
      %p514 = pneg %p98
      %p515 = pneg %p122
      %p516 = pneg %p119
      %p517 = pneg %p143
      %p518 = pneg %p140
      %p519 = pneg %p164
      %p520 = pneg %p161
      %p521 = pneg %p185
      %p522 = pneg %p182
      %p523 = pneg %p206
      %p524 = pneg %p203
      %p525 = pneg %p227
      %p526 = pneg %p224
      %p527 = pneg %p248
      %p528 = pneg %p245
      %p529 = pneg %p269
      %p530 = pneg %p266
      %p531 = pneg %p290
      %p532 = pneg %p287
      %p533 = pneg %p311
      %p534 = pneg %p308
      %p535 = pneg %p332
      %p536 = pneg %p329
      %p537 = pneg %p353
      %p538 = pneg %p350
      %p539 = pneg %p379
      %p540 = pneg %p376
      %s541 = smul.u32 2, %s28
      %p542 = scmp.lt.s32.totalorder %s541, 3
      %s543 = scalar_select %p542, %s541, 3
      %s544 = smul.addr %s543, 4
      %s545 = scalar_lea.vmem %s15, %s544
      %p546 = pneg %p405
      %p547 = pneg %p402
      %s548 = smul.u32 16, %s28
      %p549 = scmp.lt.s32.totalorder %s548, 31
      %s550 = scalar_select %p549, %s548, 31
      %s551 = smul.addr %s550, 4
      %s552 = scalar_lea.vmem %s16, %s551
      %s553 = smul.u32 2, %s28
      %p554 = scmp.lt.s32.totalorder %s553, 3
      %s555 = scalar_select %p554, %s553, 3
      %s556 = smul.addr %s555, 8
      %s557 = scalar_lea.vmem %s0, %s556
      %s558 = smul.u32 2, %s28
      %s559 = smul.u32 16, %s28
      %p560 = scmp.lt.s32.totalorder %s559, 31
      %s561 = scalar_select %p560, %s559, 31
      %s562 = smul.addr %s561, 8
      %s563 = scalar_lea.vmem %s1, %s562
      %s564 = smul.u32 16, %s28
      %s565 = smul.u32 16, %s28
      %p566 = scmp.lt.s32.totalorder %s565, 31
      %s567 = scalar_select %p566, %s565, 31
      %s568 = smul.addr %s567, 4
      %s569 = scalar_lea.vmem %s2, %s568
      %s570 = smul.u32 16, %s28
      %s571 = smul.u32 2, %s28
      %p572 = scmp.lt.s32.totalorder %s571, 3
      %s573 = scalar_select %p572, %s571, 3
      %s574 = smul.addr %s573, 4
      %s575 = scalar_lea.vmem %s15, %s574
      %s576 = smul.u32 2, %s28
      %s577 = smul.u32 16, %s28
      %p578 = scmp.lt.s32.totalorder %s577, 31
      %s579 = scalar_select %p578, %s577, 31
      %s580 = smul.addr %s579, 4
      %s581 = scalar_lea.vmem %s16, %s580
      %s582 = smul.u32 16, %s28
      %v584 = vld [vmem:[%s557] sm:$0xff]
      %v585 = vld [vmem:[%s557 + $0x8] sm:$0xff]
      %v586 = vld [vmem:[%s563] sm:$0xff]
      %v587 = vld [vmem:[%s563 + $0x8] sm:$0xff]
      %v588 = vld [vmem:[%s563 + $0x10] sm:$0xff]
      %v589 = vld [vmem:[%s563 + $0x18] sm:$0xff]
      %v590 = vld [vmem:[%s563 + $0x20] sm:$0xff]
      %v591 = vld [vmem:[%s563 + $0x28] sm:$0xff]
      %v592 = vld [vmem:[%s563 + $0x30] sm:$0xff]
      %v593 = vld [vmem:[%s563 + $0x38] sm:$0xff]
      %v594 = vld [vmem:[%s563 + $0x40] sm:$0xff]
      %v595 = vld [vmem:[%s563 + $0x48] sm:$0xff]
      %v596 = vld [vmem:[%s563 + $0x50] sm:$0xff]
      %v597 = vld [vmem:[%s563 + $0x58] sm:$0xff]
      %v598 = vld [vmem:[%s563 + $0x60] sm:$0xff]
      %v599 = vld [vmem:[%s563 + $0x68] sm:$0xff]
      %v600 = vld [vmem:[%s563 + $0x70] sm:$0xff]
      %v601 = vld [vmem:[%s563 + $0x78] sm:$0xff]
      %v602 = vld [vmem:[%s569] sm:$0xf]
      %v603 = vld [vmem:[%s569 + $0x4] sm:$0xf]
      %v604 = vld [vmem:[%s569 + $0x8] sm:$0xf]
      %v605 = vld [vmem:[%s569 + $0xc] sm:$0xf]
      %v606 = vld [vmem:[%s569 + $0x10] sm:$0xf]
      %v607 = vld [vmem:[%s569 + $0x14] sm:$0xf]
      %v608 = vld [vmem:[%s569 + $0x18] sm:$0xf]
      %v609 = vld [vmem:[%s569 + $0x1c] sm:$0xf]
      %v610 = vld [vmem:[%s569 + $0x20] sm:$0xf]
      %v611 = vld [vmem:[%s569 + $0x24] sm:$0xf]
      %v612 = vld [vmem:[%s569 + $0x28] sm:$0xf]
      %v613 = vld [vmem:[%s569 + $0x2c] sm:$0xf]
      %v614 = vld [vmem:[%s569 + $0x30] sm:$0xf]
      %v615 = vld [vmem:[%s569 + $0x34] sm:$0xf]
      %v616 = vld [vmem:[%s569 + $0x38] sm:$0xf]
      %v617 = vld [vmem:[%s569 + $0x3c] sm:$0xf]
      %v620 = vcombine.high %v584, %v584
      %v622 = vunpack.c.l.s4 1966171168
      %v623 = vunpack.c.0.s8 %v622
      %v624 = vlaneseq
      %v625 = vshrl.u32 %v624, 7
      %v626 = vsub.s32 %v623, %v625
      %v627 = vrot.slane %v584, %v626
      %v629 = vunpack.c.l.s4 1966171168
      %v630 = vunpack.c.0.s8 %v629
      %v631 = vlaneseq
      %v632 = vshrl.u32 %v631, 7
      %v633 = vsub.s32 %v630, %v632
      %v634 = vrot.slane %v620, %v633
      %v635 = vcombine.high %v627, %v627
      %v636 = vcombine.high %v634, %v634
      %v638 = vunpack.c.l.s4 1966171168
      %v639 = vunpack.c.0.s8 %v638
      %v640 = vlaneseq
      %v641 = vshrl.u32 %v640, 7
      %v642 = vsub.s32 %v639, %v641
      %v643 = vrot.slane %v627, %v642
      %v645 = vunpack.c.l.s4 1966171168
      %v646 = vunpack.c.0.s8 %v645
      %v647 = vlaneseq
      %v648 = vshrl.u32 %v647, 7
      %v649 = vsub.s32 %v646, %v648
      %v650 = vrot.slane %v634, %v649
      %v652 = vunpack.c.l.s4 1966171168
      %v653 = vunpack.c.0.s8 %v652
      %v654 = vlaneseq
      %v655 = vshrl.u32 %v654, 7
      %v656 = vsub.s32 %v653, %v655
      %v657 = vrot.slane %v635, %v656
      %v659 = vunpack.c.l.s4 1966171168
      %v660 = vunpack.c.0.s8 %v659
      %v661 = vlaneseq
      %v662 = vshrl.u32 %v661, 7
      %v663 = vsub.s32 %v660, %v662
      %v664 = vrot.slane %v636, %v663
      %v665 = vcombine.high %v643, %v643
      %v666 = vcombine.high %v650, %v650
      %v667 = vcombine.high %v657, %v657
      %v668 = vcombine.high %v664, %v664
      %v669 = vcombine.high %v585, %v585
      %v671 = vunpack.c.l.s4 1966171168
      %v672 = vunpack.c.0.s8 %v671
      %v673 = vlaneseq
      %v674 = vshrl.u32 %v673, 7
      %v675 = vsub.s32 %v672, %v674
      %v676 = vrot.slane %v585, %v675
      %v678 = vunpack.c.l.s4 1966171168
      %v679 = vunpack.c.0.s8 %v678
      %v680 = vlaneseq
      %v681 = vshrl.u32 %v680, 7
      %v682 = vsub.s32 %v679, %v681
      %v683 = vrot.slane %v669, %v682
      %v684 = vcombine.high %v676, %v676
      %v685 = vcombine.high %v683, %v683
      %v687 = vunpack.c.l.s4 1966171168
      %v688 = vunpack.c.0.s8 %v687
      %v689 = vlaneseq
      %v690 = vshrl.u32 %v689, 7
      %v691 = vsub.s32 %v688, %v690
      %v692 = vrot.slane %v676, %v691
      %v694 = vunpack.c.l.s4 1966171168
      %v695 = vunpack.c.0.s8 %v694
      %v696 = vlaneseq
      %v697 = vshrl.u32 %v696, 7
      %v698 = vsub.s32 %v695, %v697
      %v699 = vrot.slane %v683, %v698
      %v701 = vunpack.c.l.s4 1966171168
      %v702 = vunpack.c.0.s8 %v701
      %v703 = vlaneseq
      %v704 = vshrl.u32 %v703, 7
      %v705 = vsub.s32 %v702, %v704
      %v706 = vrot.slane %v684, %v705
      %v708 = vunpack.c.l.s4 1966171168
      %v709 = vunpack.c.0.s8 %v708
      %v710 = vlaneseq
      %v711 = vshrl.u32 %v710, 7
      %v712 = vsub.s32 %v709, %v711
      %v713 = vrot.slane %v685, %v712
      %v714 = vcombine.high %v692, %v692
      %v715 = vcombine.high %v699, %v699
      %v716 = vcombine.high %v706, %v706
      %v717 = vcombine.high %v713, %v713
      %v718 = vlaneseq
      %v719 = vshrl.u32 %v718, 7
      %v720 = vsub.s32 0, %v719
      %v721 = vrot.slane %v643, %v720
      %v722 = vlaneseq
      %v723 = vshrl.u32 %v722, 7
      %v724 = vsub.s32 0, %v723
      %v725 = vrot.slane %v657, %v724
      %v726 = vlaneseq
      %v727 = vshrl.u32 %v726, 7
      %v728 = vsub.s32 0, %v727
      %v729 = vrot.slane %v665, %v728
      %v730 = vlaneseq
      %v731 = vshrl.u32 %v730, 7
      %v732 = vsub.s32 0, %v731
      %v733 = vrot.slane %v667, %v732
      %v734 = vlaneseq
      %v735 = vshrl.u32 %v734, 7
      %v736 = vsub.s32 0, %v735
      %v737 = vrot.slane %v650, %v736
      %v738 = vlaneseq
      %v739 = vshrl.u32 %v738, 7
      %v740 = vsub.s32 0, %v739
      %v741 = vrot.slane %v664, %v740
      %v742 = vlaneseq
      %v743 = vshrl.u32 %v742, 7
      %v744 = vsub.s32 0, %v743
      %v745 = vrot.slane %v666, %v744
      %v746 = vlaneseq
      %v747 = vshrl.u32 %v746, 7
      %v748 = vsub.s32 0, %v747
      %v749 = vrot.slane %v668, %v748
      %v750 = vlaneseq
      %v751 = vshrl.u32 %v750, 7
      %v752 = vsub.s32 0, %v751
      %v753 = vrot.slane %v692, %v752
      %v754 = vlaneseq
      %v755 = vshrl.u32 %v754, 7
      %v756 = vsub.s32 0, %v755
      %v757 = vrot.slane %v706, %v756
      %v758 = vlaneseq
      %v759 = vshrl.u32 %v758, 7
      %v760 = vsub.s32 0, %v759
      %v761 = vrot.slane %v714, %v760
      %v762 = vlaneseq
      %v763 = vshrl.u32 %v762, 7
      %v764 = vsub.s32 0, %v763
      %v765 = vrot.slane %v716, %v764
      %v766 = vlaneseq
      %v767 = vshrl.u32 %v766, 7
      %v768 = vsub.s32 0, %v767
      %v769 = vrot.slane %v699, %v768
      %v770 = vlaneseq
      %v771 = vshrl.u32 %v770, 7
      %v772 = vsub.s32 0, %v771
      %v773 = vrot.slane %v713, %v772
      %v774 = vlaneseq
      %v775 = vshrl.u32 %v774, 7
      %v776 = vsub.s32 0, %v775
      %v777 = vrot.slane %v715, %v776
      %v778 = vlaneseq
      %v779 = vshrl.u32 %v778, 7
      %v780 = vsub.s32 0, %v779
      %v781 = vrot.slane %v717, %v780
      %v798 = vsub.f32 %v721, %v586
      %v799 = vsub.f32 %v725, %v587
      %v800 = vsub.f32 %v729, %v588
      %v801 = vsub.f32 %v733, %v589
      %v802 = vsub.f32 %v737, %v590
      %v803 = vsub.f32 %v741, %v591
      %v804 = vsub.f32 %v745, %v592
      %v805 = vsub.f32 %v749, %v593
      %v806 = vsub.f32 %v753, %v594
      %v807 = vsub.f32 %v757, %v595
      %v808 = vsub.f32 %v761, %v596
      %v809 = vsub.f32 %v765, %v597
      %v810 = vsub.f32 %v769, %v598
      %v811 = vsub.f32 %v773, %v599
      %v812 = vsub.f32 %v777, %v600
      %v813 = vsub.f32 %v781, %v601
      %v814 = vmul.f32 %v798, %v798
      %v815 = vmul.f32 %v799, %v799
      %v816 = vmul.f32 %v800, %v800
      %v817 = vmul.f32 %v801, %v801
      %v818 = vmul.f32 %v802, %v802
      %v819 = vmul.f32 %v803, %v803
      %v820 = vmul.f32 %v804, %v804
      %v821 = vmul.f32 %v805, %v805
      %v822 = vmul.f32 %v806, %v806
      %v823 = vmul.f32 %v807, %v807
      %v824 = vmul.f32 %v808, %v808
      %v825 = vmul.f32 %v809, %v809
      %v826 = vmul.f32 %v810, %v810
      %v827 = vmul.f32 %v811, %v811
      %v828 = vmul.f32 %v812, %v812
      %v829 = vmul.f32 %v813, %v813
      %vm830 = vcmask 23552
      %v831 = vsel %vm830, %v814, 0.0
      %832 = vadd.xlane.f32.xlu0 %v831
      %v833 = vpop.xlane.xlu0 %832
      %v834 = vsel %vm830, %v815, 0.0
      %835 = vadd.xlane.f32.xlu0 %v834
      %v836 = vpop.xlane.xlu0 %835
      %v837 = vsel %vm830, %v816, 0.0
      %838 = vadd.xlane.f32.xlu0 %v837
      %v839 = vpop.xlane.xlu0 %838
      %v840 = vsel %vm830, %v817, 0.0
      %841 = vadd.xlane.f32.xlu0 %v840
      %v842 = vpop.xlane.xlu0 %841
      %v843 = vsel %vm830, %v818, 0.0
      %844 = vadd.xlane.f32.xlu0 %v843
      %v845 = vpop.xlane.xlu0 %844
      %v846 = vsel %vm830, %v819, 0.0
      %847 = vadd.xlane.f32.xlu0 %v846
      %v848 = vpop.xlane.xlu0 %847
      %v849 = vsel %vm830, %v820, 0.0
      %850 = vadd.xlane.f32.xlu0 %v849
      %v851 = vpop.xlane.xlu0 %850
      %v852 = vsel %vm830, %v821, 0.0
      %853 = vadd.xlane.f32.xlu0 %v852
      %v854 = vpop.xlane.xlu0 %853
      %v855 = vsel %vm830, %v822, 0.0
      %856 = vadd.xlane.f32.xlu0 %v855
      %v857 = vpop.xlane.xlu0 %856
      %v858 = vsel %vm830, %v823, 0.0
      %859 = vadd.xlane.f32.xlu0 %v858
      %v860 = vpop.xlane.xlu0 %859
      %v861 = vsel %vm830, %v824, 0.0
      %862 = vadd.xlane.f32.xlu0 %v861
      %v863 = vpop.xlane.xlu0 %862
      %v864 = vsel %vm830, %v825, 0.0
      %865 = vadd.xlane.f32.xlu0 %v864
      %v866 = vpop.xlane.xlu0 %865
      %v867 = vsel %vm830, %v826, 0.0
      %868 = vadd.xlane.f32.xlu0 %v867
      %v869 = vpop.xlane.xlu0 %868
      %v870 = vsel %vm830, %v827, 0.0
      %871 = vadd.xlane.f32.xlu0 %v870
      %v872 = vpop.xlane.xlu0 %871
      %v873 = vsel %vm830, %v828, 0.0
      %874 = vadd.xlane.f32.xlu0 %v873
      %v875 = vpop.xlane.xlu0 %874
      %v876 = vsel %vm830, %v829, 0.0
      %877 = vadd.xlane.f32.xlu0 %v876
      %v878 = vpop.xlane.xlu0 %877
      %v879 = vrsqrt.pop %v833
      %v880 = vmul.f32 %v833, %v879
      %vm881 = vcmp.eq.f32.partialorder %v833, inf
      %v882 = vsel %vm881, %v833, %v880
      %vm883 = vcmp.eq.f32.partialorder %v833, 0.0
      %v884 = vand.u32 %v833, 2147483648
      %v885 = vsel %vm883, %v884, %v882
      %v886 = vrsqrt.pop %v836
      %v887 = vmul.f32 %v836, %v886
      %vm888 = vcmp.eq.f32.partialorder %v836, inf
      %v889 = vsel %vm888, %v836, %v887
      %vm890 = vcmp.eq.f32.partialorder %v836, 0.0
      %v891 = vand.u32 %v836, 2147483648
      %v892 = vsel %vm890, %v891, %v889
      %v893 = vrsqrt.pop %v839
      %v894 = vmul.f32 %v839, %v893
      %vm895 = vcmp.eq.f32.partialorder %v839, inf
      %v896 = vsel %vm895, %v839, %v894
      %vm897 = vcmp.eq.f32.partialorder %v839, 0.0
      %v898 = vand.u32 %v839, 2147483648
      %v899 = vsel %vm897, %v898, %v896
      %v900 = vrsqrt.pop %v842
      %v901 = vmul.f32 %v842, %v900
      %vm902 = vcmp.eq.f32.partialorder %v842, inf
      %v903 = vsel %vm902, %v842, %v901
      %vm904 = vcmp.eq.f32.partialorder %v842, 0.0
      %v905 = vand.u32 %v842, 2147483648
      %v906 = vsel %vm904, %v905, %v903
      %v907 = vrsqrt.pop %v845
      %v908 = vmul.f32 %v845, %v907
      %vm909 = vcmp.eq.f32.partialorder %v845, inf
      %v910 = vsel %vm909, %v845, %v908
      %vm911 = vcmp.eq.f32.partialorder %v845, 0.0
      %v912 = vand.u32 %v845, 2147483648
      %v913 = vsel %vm911, %v912, %v910
      %v914 = vrsqrt.pop %v848
      %v915 = vmul.f32 %v848, %v914
      %vm916 = vcmp.eq.f32.partialorder %v848, inf
      %v917 = vsel %vm916, %v848, %v915
      %vm918 = vcmp.eq.f32.partialorder %v848, 0.0
      %v919 = vand.u32 %v848, 2147483648
      %v920 = vsel %vm918, %v919, %v917
      %v921 = vrsqrt.pop %v851
      %v922 = vmul.f32 %v851, %v921
      %vm923 = vcmp.eq.f32.partialorder %v851, inf
      %v924 = vsel %vm923, %v851, %v922
      %vm925 = vcmp.eq.f32.partialorder %v851, 0.0
      %v926 = vand.u32 %v851, 2147483648
      %v927 = vsel %vm925, %v926, %v924
      %v928 = vrsqrt.pop %v854
      %v929 = vmul.f32 %v854, %v928
      %vm930 = vcmp.eq.f32.partialorder %v854, inf
      %v931 = vsel %vm930, %v854, %v929
      %vm932 = vcmp.eq.f32.partialorder %v854, 0.0
      %v933 = vand.u32 %v854, 2147483648
      %v934 = vsel %vm932, %v933, %v931
      %v935 = vrsqrt.pop %v857
      %v936 = vmul.f32 %v857, %v935
      %vm937 = vcmp.eq.f32.partialorder %v857, inf
      %v938 = vsel %vm937, %v857, %v936
      %vm939 = vcmp.eq.f32.partialorder %v857, 0.0
      %v940 = vand.u32 %v857, 2147483648
      %v941 = vsel %vm939, %v940, %v938
      %v942 = vrsqrt.pop %v860
      %v943 = vmul.f32 %v860, %v942
      %vm944 = vcmp.eq.f32.partialorder %v860, inf
      %v945 = vsel %vm944, %v860, %v943
      %vm946 = vcmp.eq.f32.partialorder %v860, 0.0
      %v947 = vand.u32 %v860, 2147483648
      %v948 = vsel %vm946, %v947, %v945
      %v949 = vrsqrt.pop %v863
      %v950 = vmul.f32 %v863, %v949
      %vm951 = vcmp.eq.f32.partialorder %v863, inf
      %v952 = vsel %vm951, %v863, %v950
      %vm953 = vcmp.eq.f32.partialorder %v863, 0.0
      %v954 = vand.u32 %v863, 2147483648
      %v955 = vsel %vm953, %v954, %v952
      %v956 = vrsqrt.pop %v866
      %v957 = vmul.f32 %v866, %v956
      %vm958 = vcmp.eq.f32.partialorder %v866, inf
      %v959 = vsel %vm958, %v866, %v957
      %vm960 = vcmp.eq.f32.partialorder %v866, 0.0
      %v961 = vand.u32 %v866, 2147483648
      %v962 = vsel %vm960, %v961, %v959
      %v963 = vrsqrt.pop %v869
      %v964 = vmul.f32 %v869, %v963
      %vm965 = vcmp.eq.f32.partialorder %v869, inf
      %v966 = vsel %vm965, %v869, %v964
      %vm967 = vcmp.eq.f32.partialorder %v869, 0.0
      %v968 = vand.u32 %v869, 2147483648
      %v969 = vsel %vm967, %v968, %v966
      %v970 = vrsqrt.pop %v872
      %v971 = vmul.f32 %v872, %v970
      %vm972 = vcmp.eq.f32.partialorder %v872, inf
      %v973 = vsel %vm972, %v872, %v971
      %vm974 = vcmp.eq.f32.partialorder %v872, 0.0
      %v975 = vand.u32 %v872, 2147483648
      %v976 = vsel %vm974, %v975, %v973
      %v977 = vrsqrt.pop %v875
      %v978 = vmul.f32 %v875, %v977
      %vm979 = vcmp.eq.f32.partialorder %v875, inf
      %v980 = vsel %vm979, %v875, %v978
      %vm981 = vcmp.eq.f32.partialorder %v875, 0.0
      %v982 = vand.u32 %v875, 2147483648
      %v983 = vsel %vm981, %v982, %v980
      %v984 = vrsqrt.pop %v878
      %v985 = vmul.f32 %v878, %v984
      %vm986 = vcmp.eq.f32.partialorder %v878, inf
      %v987 = vsel %vm986, %v878, %v985
      %vm988 = vcmp.eq.f32.partialorder %v878, 0.0
      %v989 = vand.u32 %v878, 2147483648
      %v990 = vsel %vm988, %v989, %v987
      %v991 = vld [vmem:[%s5] sm:$0x7]
      %v992 = vsel %vm830, %v584, 0
      %v994 = vsel %vm830, %v585, 0
      %vm996 = vcmask 1042432
      %v998 = vsel %vm996, %v991, 0
      %1000 = vmatprep.subr.mxu0 0.0
      %1001 = vmatpush1.msra.mxu0 0.0
      %1002 = vmatprep.subr.mxu0 0.0
      %1003 = vmatpush1.msra.mxu0 0.0
      %1004 = vmatprep.subr.mxu0 0.0
      %1005 = vmatpush1.msra.mxu0 0.0
      %1006 = vmatprep.subr.mxu0 0.0
      %1007 = vmatpush1.msra.mxu0 0.0
      %1008 = vmatprep.subr.mxu0 0.0
      %1009 = vmatpush1.msra.mxu0 0.0
      %1010 = vmatprep.subr.mxu0 0.0
      %1011 = vmatpush1.msra.mxu0 0.0
      %1012 = vmatprep.subr.mxu0 0.0
      %1013 = vmatpush1.msra.mxu0 0.0
      %1014 = vmatprep.subr.mxu0 0.0
      %1015 = vmatpush1.msra.mxu0 0.0
      %1016 = vmatprep.subr.mxu0 0.0
      %1017 = vmatpush1.msra.mxu0 0.0
      %1018 = vmatprep.subr.mxu0 0.0
      %1019 = vmatpush1.msra.mxu0 0.0
      %1020 = vmatprep.subr.mxu0 0.0
      %1021 = vmatpush1.msra.mxu0 0.0
      %1022 = vmatprep.subr.mxu0 0.0
      %1023 = vmatpush1.msra.mxu0 0.0
      %1024 = vmatprep.subr.mxu0 0.0
      %1025 = vmatpush1.msra.mxu0 0.0
      %1026 = vmatprep.subr.mxu0 0.0
      %1027 = vmatpush1.msra.mxu0 0.0
      %1028 = vmatprep.subr.mxu0 0.0
      %1029 = vmatpush1.msra.mxu0 0.0
      %1030 = vmatprep.subr.mxu0 0.0
      %1031 = vmatpush1.msra.mxu0 %v998
      %1032 = vmatprep.subr.mxu0 0.0
      %1033 = vmatpush2.msra.mxu0 0.0
      %1034 = vmatprep.subr.mxu0 0.0
      %1035 = vmatpush2.msra.mxu0 0.0
      %1036 = vmatprep.subr.mxu0 0.0
      %1037 = vmatpush2.msra.mxu0 0.0
      %1038 = vmatprep.subr.mxu0 0.0
      %1039 = vmatpush2.msra.mxu0 0.0
      %1040 = vmatprep.subr.mxu0 0.0
      %1041 = vmatpush2.msra.mxu0 0.0
      %1042 = vmatprep.subr.mxu0 0.0
      %1043 = vmatpush2.msra.mxu0 0.0
      %1044 = vmatprep.subr.mxu0 0.0
      %1045 = vmatpush2.msra.mxu0 0.0
      %1046 = vmatprep.subr.mxu0 0.0
      %1047 = vmatpush2.msra.mxu0 0.0
      %1048 = vmatprep.subr.mxu0 0.0
      %1049 = vmatpush2.msra.mxu0 0.0
      %1050 = vmatprep.subr.mxu0 0.0
      %1051 = vmatpush2.msra.mxu0 0.0
      %1052 = vmatprep.subr.mxu0 0.0
      %1053 = vmatpush2.msra.mxu0 0.0
      %1054 = vmatprep.subr.mxu0 0.0
      %1055 = vmatpush2.msra.mxu0 0.0
      %1056 = vmatprep.subr.mxu0 0.0
      %1057 = vmatpush2.msra.mxu0 0.0
      %1058 = vmatprep.subr.mxu0 0.0
      %1059 = vmatpush2.msra.mxu0 0.0
      %1060 = vmatprep.subr.mxu0 0.0
      %1061 = vmatpush2.msra.mxu0 0.0
      %1062 = vmatprep.subr.mxu0 0.0
      %1063 = vmatpush2.msra.mxu0 0.0
      %1064 = vmatprep.mubr.f32.mxu0 0.0
      %1065 = vmatmul.mubr.f32.gmra.mxu0 %v992
      %v1066 = vpop.f32.mrf.mxu0
      %v1067 = vadd.f32 0.0, %v1066
      %v1068 = vpop.f32.mrf.mxu0
      %1069 = vmatprep.mubr.f32.mxu0 0.0
      %1070 = vmatmul.mubr.f32.gmra.mxu0 %v994
      %v1071 = vpop.f32.mrf.mxu0
      %v1072 = vadd.f32 0.0, %v1071
      %v1073 = vpop.f32.mrf.mxu0
      %1074 = vdwg.mxu0
      %v1075 = vld [vmem:[%s3] sm:$0x1]
      %v1077 = vlaneseq
      %v1078 = vshrl.u32 %v1077, 7
      %v1079 = vsub.s32 0, %v1078
      %v1080 = vrot.slane %v1075, %v1079
      %v1082 = vmul.f32 %v885, %v1080
      %v1083 = vmul.f32 %v892, %v1080
      %v1084 = vmul.f32 %v899, %v1080
      %v1085 = vmul.f32 %v906, %v1080
      %v1086 = vmul.f32 %v913, %v1080
      %v1087 = vmul.f32 %v920, %v1080
      %v1088 = vmul.f32 %v927, %v1080
      %v1089 = vmul.f32 %v934, %v1080
      %v1090 = vmul.f32 %v941, %v1080
      %v1091 = vmul.f32 %v948, %v1080
      %v1092 = vmul.f32 %v955, %v1080
      %v1093 = vmul.f32 %v962, %v1080
      %v1094 = vmul.f32 %v969, %v1080
      %v1095 = vmul.f32 %v976, %v1080
      %v1096 = vmul.f32 %v983, %v1080
      %v1097 = vmul.f32 %v990, %v1080
      %v1098 = vld [vmem:[%s4] sm:$0x7]
      %v1100 = vsel %vm830, %v798, 0
      %v1103 = vsel %vm830, %v799, 0
      %v1106 = vsel %vm830, %v800, 0
      %v1109 = vsel %vm830, %v801, 0
      %v1112 = vsel %vm830, %v802, 0
      %v1115 = vsel %vm830, %v803, 0
      %v1118 = vsel %vm830, %v804, 0
      %v1121 = vsel %vm830, %v805, 0
      %v1124 = vsel %vm830, %v806, 0
      %v1127 = vsel %vm830, %v807, 0
      %v1130 = vsel %vm830, %v808, 0
      %v1133 = vsel %vm830, %v809, 0
      %v1136 = vsel %vm830, %v810, 0
      %v1139 = vsel %vm830, %v811, 0
      %v1142 = vsel %vm830, %v812, 0
      %v1145 = vsel %vm830, %v813, 0
      %v1148 = vsel %vm996, %v1098, 0
      %1150 = vmatprep.subr.mxu0 0.0
      %1151 = vmatpush1.msra.mxu0 0.0
      %1152 = vmatprep.subr.mxu0 0.0
      %1153 = vmatpush1.msra.mxu0 0.0
      %1154 = vmatprep.subr.mxu0 0.0
      %1155 = vmatpush1.msra.mxu0 0.0
      %1156 = vmatprep.subr.mxu0 0.0
      %1157 = vmatpush1.msra.mxu0 0.0
      %1158 = vmatprep.subr.mxu0 0.0
      %1159 = vmatpush1.msra.mxu0 0.0
      %1160 = vmatprep.subr.mxu0 0.0
      %1161 = vmatpush1.msra.mxu0 0.0
      %1162 = vmatprep.subr.mxu0 0.0
      %1163 = vmatpush1.msra.mxu0 0.0
      %1164 = vmatprep.subr.mxu0 0.0
      %1165 = vmatpush1.msra.mxu0 0.0
      %1166 = vmatprep.subr.mxu0 0.0
      %1167 = vmatpush1.msra.mxu0 0.0
      %1168 = vmatprep.subr.mxu0 0.0
      %1169 = vmatpush1.msra.mxu0 0.0
      %1170 = vmatprep.subr.mxu0 0.0
      %1171 = vmatpush1.msra.mxu0 0.0
      %1172 = vmatprep.subr.mxu0 0.0
      %1173 = vmatpush1.msra.mxu0 0.0
      %1174 = vmatprep.subr.mxu0 0.0
      %1175 = vmatpush1.msra.mxu0 0.0
      %1176 = vmatprep.subr.mxu0 0.0
      %1177 = vmatpush1.msra.mxu0 0.0
      %1178 = vmatprep.subr.mxu0 0.0
      %1179 = vmatpush1.msra.mxu0 0.0
      %1180 = vmatprep.subr.mxu0 0.0
      %1181 = vmatpush1.msra.mxu0 %v1148
      %1182 = vmatprep.subr.mxu0 0.0
      %1183 = vmatpush2.msra.mxu0 0.0
      %1184 = vmatprep.subr.mxu0 0.0
      %1185 = vmatpush2.msra.mxu0 0.0
      %1186 = vmatprep.subr.mxu0 0.0
      %1187 = vmatpush2.msra.mxu0 0.0
      %1188 = vmatprep.subr.mxu0 0.0
      %1189 = vmatpush2.msra.mxu0 0.0
      %1190 = vmatprep.subr.mxu0 0.0
      %1191 = vmatpush2.msra.mxu0 0.0
      %1192 = vmatprep.subr.mxu0 0.0
      %1193 = vmatpush2.msra.mxu0 0.0
      %1194 = vmatprep.subr.mxu0 0.0
      %1195 = vmatpush2.msra.mxu0 0.0
      %1196 = vmatprep.subr.mxu0 0.0
      %1197 = vmatpush2.msra.mxu0 0.0
      %1198 = vmatprep.subr.mxu0 0.0
      %1199 = vmatpush2.msra.mxu0 0.0
      %1200 = vmatprep.subr.mxu0 0.0
      %1201 = vmatpush2.msra.mxu0 0.0
      %1202 = vmatprep.subr.mxu0 0.0
      %1203 = vmatpush2.msra.mxu0 0.0
      %1204 = vmatprep.subr.mxu0 0.0
      %1205 = vmatpush2.msra.mxu0 0.0
      %1206 = vmatprep.subr.mxu0 0.0
      %1207 = vmatpush2.msra.mxu0 0.0
      %1208 = vmatprep.subr.mxu0 0.0
      %1209 = vmatpush2.msra.mxu0 0.0
      %1210 = vmatprep.subr.mxu0 0.0
      %1211 = vmatpush2.msra.mxu0 0.0
      %1212 = vmatprep.subr.mxu0 0.0
      %1213 = vmatpush2.msra.mxu0 0.0
      %1214 = vmatprep.mubr.f32.mxu0 0.0
      %1215 = vmatmul.mubr.f32.gmra.mxu0 %v1100
      %v1216 = vpop.f32.mrf.mxu0
      %v1217 = vadd.f32 0.0, %v1216
      %v1218 = vpop.f32.mrf.mxu0
      %1219 = vmatprep.mubr.f32.mxu0 0.0
      %1220 = vmatmul.mubr.f32.gmra.mxu0 %v1103
      %v1221 = vpop.f32.mrf.mxu0
      %v1222 = vadd.f32 0.0, %v1221
      %v1223 = vpop.f32.mrf.mxu0
      %1224 = vmatprep.mubr.f32.mxu0 0.0
      %1225 = vmatmul.mubr.f32.gmra.mxu0 %v1106
      %v1226 = vpop.f32.mrf.mxu0
      %v1227 = vadd.f32 0.0, %v1226
      %v1228 = vpop.f32.mrf.mxu0
      %1229 = vmatprep.mubr.f32.mxu0 0.0
      %1230 = vmatmul.mubr.f32.gmra.mxu0 %v1109
      %v1231 = vpop.f32.mrf.mxu0
      %v1232 = vadd.f32 0.0, %v1231
      %v1233 = vpop.f32.mrf.mxu0
      %1234 = vmatprep.mubr.f32.mxu0 0.0
      %1235 = vmatmul.mubr.f32.gmra.mxu0 %v1112
      %v1236 = vpop.f32.mrf.mxu0
      %v1237 = vadd.f32 0.0, %v1236
      %v1238 = vpop.f32.mrf.mxu0
      %1239 = vmatprep.mubr.f32.mxu0 0.0
      %1240 = vmatmul.mubr.f32.gmra.mxu0 %v1115
      %v1241 = vpop.f32.mrf.mxu0
      %v1242 = vadd.f32 0.0, %v1241
      %v1243 = vpop.f32.mrf.mxu0
      %1244 = vmatprep.mubr.f32.mxu0 0.0
      %1245 = vmatmul.mubr.f32.gmra.mxu0 %v1118
      %v1246 = vpop.f32.mrf.mxu0
      %v1247 = vadd.f32 0.0, %v1246
      %v1248 = vpop.f32.mrf.mxu0
      %1249 = vmatprep.mubr.f32.mxu0 0.0
      %1250 = vmatmul.mubr.f32.gmra.mxu0 %v1121
      %v1251 = vpop.f32.mrf.mxu0
      %v1252 = vadd.f32 0.0, %v1251
      %v1253 = vpop.f32.mrf.mxu0
      %1254 = vmatprep.mubr.f32.mxu0 0.0
      %1255 = vmatmul.mubr.f32.gmra.mxu0 %v1124
      %v1256 = vpop.f32.mrf.mxu0
      %v1257 = vadd.f32 0.0, %v1256
      %v1258 = vpop.f32.mrf.mxu0
      %1259 = vmatprep.mubr.f32.mxu0 0.0
      %1260 = vmatmul.mubr.f32.gmra.mxu0 %v1127
      %v1261 = vpop.f32.mrf.mxu0
      %v1262 = vadd.f32 0.0, %v1261
      %v1263 = vpop.f32.mrf.mxu0
      %1264 = vmatprep.mubr.f32.mxu0 0.0
      %1265 = vmatmul.mubr.f32.gmra.mxu0 %v1130
      %v1266 = vpop.f32.mrf.mxu0
      %v1267 = vadd.f32 0.0, %v1266
      %v1268 = vpop.f32.mrf.mxu0
      %1269 = vmatprep.mubr.f32.mxu0 0.0
      %1270 = vmatmul.mubr.f32.gmra.mxu0 %v1133
      %v1271 = vpop.f32.mrf.mxu0
      %v1272 = vadd.f32 0.0, %v1271
      %v1273 = vpop.f32.mrf.mxu0
      %1274 = vmatprep.mubr.f32.mxu0 0.0
      %1275 = vmatmul.mubr.f32.gmra.mxu0 %v1136
      %v1276 = vpop.f32.mrf.mxu0
      %v1277 = vadd.f32 0.0, %v1276
      %v1278 = vpop.f32.mrf.mxu0
      %1279 = vmatprep.mubr.f32.mxu0 0.0
      %1280 = vmatmul.mubr.f32.gmra.mxu0 %v1139
      %v1281 = vpop.f32.mrf.mxu0
      %v1282 = vadd.f32 0.0, %v1281
      %v1283 = vpop.f32.mrf.mxu0
      %1284 = vmatprep.mubr.f32.mxu0 0.0
      %1285 = vmatmul.mubr.f32.gmra.mxu0 %v1142
      %v1286 = vpop.f32.mrf.mxu0
      %v1287 = vadd.f32 0.0, %v1286
      %v1288 = vpop.f32.mrf.mxu0
      %1289 = vmatprep.mubr.f32.mxu0 0.0
      %1290 = vmatmul.mubr.f32.gmra.mxu0 %v1145
      %v1291 = vpop.f32.mrf.mxu0
      %v1292 = vadd.f32 0.0, %v1291
      %v1293 = vpop.f32.mrf.mxu0
      %1294 = vdwg.mxu0
      %v1295 = vadd.f32 %v1082, %v1217
      %v1296 = vadd.f32 %v1083, %v1222
      %v1297 = vadd.f32 %v1084, %v1227
      %v1298 = vadd.f32 %v1085, %v1232
      %v1299 = vadd.f32 %v1086, %v1237
      %v1300 = vadd.f32 %v1087, %v1242
      %v1301 = vadd.f32 %v1088, %v1247
      %v1302 = vadd.f32 %v1089, %v1252
      %v1303 = vadd.f32 %v1090, %v1257
      %v1304 = vadd.f32 %v1091, %v1262
      %v1305 = vadd.f32 %v1092, %v1267
      %v1306 = vadd.f32 %v1093, %v1272
      %v1307 = vadd.f32 %v1094, %v1277
      %v1308 = vadd.f32 %v1095, %v1282
      %v1309 = vadd.f32 %v1096, %v1287
      %v1310 = vadd.f32 %v1097, %v1292
      %v1311 = vld [vmem:[%s6] sm:$0x7]
      %v1313 = vsel %vm830, %v586, 0
      %v1316 = vsel %vm830, %v587, 0
      %v1319 = vsel %vm830, %v588, 0
      %v1322 = vsel %vm830, %v589, 0
      %v1325 = vsel %vm830, %v590, 0
      %v1328 = vsel %vm830, %v591, 0
      %v1331 = vsel %vm830, %v592, 0
      %v1334 = vsel %vm830, %v593, 0
      %v1337 = vsel %vm830, %v594, 0
      %v1340 = vsel %vm830, %v595, 0
      %v1343 = vsel %vm830, %v596, 0
      %v1346 = vsel %vm830, %v597, 0
      %v1349 = vsel %vm830, %v598, 0
      %v1352 = vsel %vm830, %v599, 0
      %v1355 = vsel %vm830, %v600, 0
      %v1358 = vsel %vm830, %v601, 0
      %v1361 = vsel %vm996, %v1311, 0
      %1363 = vmatprep.subr.mxu0 0.0
      %1364 = vmatpush1.msra.mxu0 0.0
      %1365 = vmatprep.subr.mxu0 0.0
      %1366 = vmatpush1.msra.mxu0 0.0
      %1367 = vmatprep.subr.mxu0 0.0
      %1368 = vmatpush1.msra.mxu0 0.0
      %1369 = vmatprep.subr.mxu0 0.0
      %1370 = vmatpush1.msra.mxu0 0.0
      %1371 = vmatprep.subr.mxu0 0.0
      %1372 = vmatpush1.msra.mxu0 0.0
      %1373 = vmatprep.subr.mxu0 0.0
      %1374 = vmatpush1.msra.mxu0 0.0
      %1375 = vmatprep.subr.mxu0 0.0
      %1376 = vmatpush1.msra.mxu0 0.0
      %1377 = vmatprep.subr.mxu0 0.0
      %1378 = vmatpush1.msra.mxu0 0.0
      %1379 = vmatprep.subr.mxu0 0.0
      %1380 = vmatpush1.msra.mxu0 0.0
      %1381 = vmatprep.subr.mxu0 0.0
      %1382 = vmatpush1.msra.mxu0 0.0
      %1383 = vmatprep.subr.mxu0 0.0
      %1384 = vmatpush1.msra.mxu0 0.0
      %1385 = vmatprep.subr.mxu0 0.0
      %1386 = vmatpush1.msra.mxu0 0.0
      %1387 = vmatprep.subr.mxu0 0.0
      %1388 = vmatpush1.msra.mxu0 0.0
      %1389 = vmatprep.subr.mxu0 0.0
      %1390 = vmatpush1.msra.mxu0 0.0
      %1391 = vmatprep.subr.mxu0 0.0
      %1392 = vmatpush1.msra.mxu0 0.0
      %1393 = vmatprep.subr.mxu0 0.0
      %1394 = vmatpush1.msra.mxu0 %v1361
      %1395 = vmatprep.subr.mxu0 0.0
      %1396 = vmatpush2.msra.mxu0 0.0
      %1397 = vmatprep.subr.mxu0 0.0
      %1398 = vmatpush2.msra.mxu0 0.0
      %1399 = vmatprep.subr.mxu0 0.0
      %1400 = vmatpush2.msra.mxu0 0.0
      %1401 = vmatprep.subr.mxu0 0.0
      %1402 = vmatpush2.msra.mxu0 0.0
      %1403 = vmatprep.subr.mxu0 0.0
      %1404 = vmatpush2.msra.mxu0 0.0
      %1405 = vmatprep.subr.mxu0 0.0
      %1406 = vmatpush2.msra.mxu0 0.0
      %1407 = vmatprep.subr.mxu0 0.0
      %1408 = vmatpush2.msra.mxu0 0.0
      %1409 = vmatprep.subr.mxu0 0.0
      %1410 = vmatpush2.msra.mxu0 0.0
      %1411 = vmatprep.subr.mxu0 0.0
      %1412 = vmatpush2.msra.mxu0 0.0
      %1413 = vmatprep.subr.mxu0 0.0
      %1414 = vmatpush2.msra.mxu0 0.0
      %1415 = vmatprep.subr.mxu0 0.0
      %1416 = vmatpush2.msra.mxu0 0.0
      %1417 = vmatprep.subr.mxu0 0.0
      %1418 = vmatpush2.msra.mxu0 0.0
      %1419 = vmatprep.subr.mxu0 0.0
      %1420 = vmatpush2.msra.mxu0 0.0
      %1421 = vmatprep.subr.mxu0 0.0
      %1422 = vmatpush2.msra.mxu0 0.0
      %1423 = vmatprep.subr.mxu0 0.0
      %1424 = vmatpush2.msra.mxu0 0.0
      %1425 = vmatprep.subr.mxu0 0.0
      %1426 = vmatpush2.msra.mxu0 0.0
      %1427 = vmatprep.mubr.f32.mxu0 0.0
      %1428 = vmatmul.mubr.f32.gmra.mxu0 %v1313
      %v1429 = vpop.f32.mrf.mxu0
      %v1430 = vadd.f32 0.0, %v1429
      %v1431 = vpop.f32.mrf.mxu0
      %1432 = vmatprep.mubr.f32.mxu0 0.0
      %1433 = vmatmul.mubr.f32.gmra.mxu0 %v1316
      %v1434 = vpop.f32.mrf.mxu0
      %v1435 = vadd.f32 0.0, %v1434
      %v1436 = vpop.f32.mrf.mxu0
      %1437 = vmatprep.mubr.f32.mxu0 0.0
      %1438 = vmatmul.mubr.f32.gmra.mxu0 %v1319
      %v1439 = vpop.f32.mrf.mxu0
      %v1440 = vadd.f32 0.0, %v1439
      %v1441 = vpop.f32.mrf.mxu0
      %1442 = vmatprep.mubr.f32.mxu0 0.0
      %1443 = vmatmul.mubr.f32.gmra.mxu0 %v1322
      %v1444 = vpop.f32.mrf.mxu0
      %v1445 = vadd.f32 0.0, %v1444
      %v1446 = vpop.f32.mrf.mxu0
      %1447 = vmatprep.mubr.f32.mxu0 0.0
      %1448 = vmatmul.mubr.f32.gmra.mxu0 %v1325
      %v1449 = vpop.f32.mrf.mxu0
      %v1450 = vadd.f32 0.0, %v1449
      %v1451 = vpop.f32.mrf.mxu0
      %1452 = vmatprep.mubr.f32.mxu0 0.0
      %1453 = vmatmul.mubr.f32.gmra.mxu0 %v1328
      %v1454 = vpop.f32.mrf.mxu0
      %v1455 = vadd.f32 0.0, %v1454
      %v1456 = vpop.f32.mrf.mxu0
      %1457 = vmatprep.mubr.f32.mxu0 0.0
      %1458 = vmatmul.mubr.f32.gmra.mxu0 %v1331
      %v1459 = vpop.f32.mrf.mxu0
      %v1460 = vadd.f32 0.0, %v1459
      %v1461 = vpop.f32.mrf.mxu0
      %1462 = vmatprep.mubr.f32.mxu0 0.0
      %1463 = vmatmul.mubr.f32.gmra.mxu0 %v1334
      %v1464 = vpop.f32.mrf.mxu0
      %v1465 = vadd.f32 0.0, %v1464
      %v1466 = vpop.f32.mrf.mxu0
      %1467 = vmatprep.mubr.f32.mxu0 0.0
      %1468 = vmatmul.mubr.f32.gmra.mxu0 %v1337
      %v1469 = vpop.f32.mrf.mxu0
      %v1470 = vadd.f32 0.0, %v1469
      %v1471 = vpop.f32.mrf.mxu0
      %1472 = vmatprep.mubr.f32.mxu0 0.0
      %1473 = vmatmul.mubr.f32.gmra.mxu0 %v1340
      %v1474 = vpop.f32.mrf.mxu0
      %v1475 = vadd.f32 0.0, %v1474
      %v1476 = vpop.f32.mrf.mxu0
      %1477 = vmatprep.mubr.f32.mxu0 0.0
      %1478 = vmatmul.mubr.f32.gmra.mxu0 %v1343
      %v1479 = vpop.f32.mrf.mxu0
      %v1480 = vadd.f32 0.0, %v1479
      %v1481 = vpop.f32.mrf.mxu0
      %1482 = vmatprep.mubr.f32.mxu0 0.0
      %1483 = vmatmul.mubr.f32.gmra.mxu0 %v1346
      %v1484 = vpop.f32.mrf.mxu0
      %v1485 = vadd.f32 0.0, %v1484
      %v1486 = vpop.f32.mrf.mxu0
      %1487 = vmatprep.mubr.f32.mxu0 0.0
      %1488 = vmatmul.mubr.f32.gmra.mxu0 %v1349
      %v1489 = vpop.f32.mrf.mxu0
      %v1490 = vadd.f32 0.0, %v1489
      %v1491 = vpop.f32.mrf.mxu0
      %1492 = vmatprep.mubr.f32.mxu0 0.0
      %1493 = vmatmul.mubr.f32.gmra.mxu0 %v1352
      %v1494 = vpop.f32.mrf.mxu0
      %v1495 = vadd.f32 0.0, %v1494
      %v1496 = vpop.f32.mrf.mxu0
      %1497 = vmatprep.mubr.f32.mxu0 0.0
      %1498 = vmatmul.mubr.f32.gmra.mxu0 %v1355
      %v1499 = vpop.f32.mrf.mxu0
      %v1500 = vadd.f32 0.0, %v1499
      %v1501 = vpop.f32.mrf.mxu0
      %1502 = vmatprep.mubr.f32.mxu0 0.0
      %1503 = vmatmul.mubr.f32.gmra.mxu0 %v1358
      %v1504 = vpop.f32.mrf.mxu0
      %v1505 = vadd.f32 0.0, %v1504
      %v1506 = vpop.f32.mrf.mxu0
      %1507 = vdwg.mxu0
      %v1508 = vadd.f32 %v1295, %v1430
      %v1509 = vadd.f32 %v1296, %v1435
      %v1510 = vadd.f32 %v1297, %v1440
      %v1511 = vadd.f32 %v1298, %v1445
      %v1512 = vadd.f32 %v1299, %v1450
      %v1513 = vadd.f32 %v1300, %v1455
      %v1514 = vadd.f32 %v1301, %v1460
      %v1515 = vadd.f32 %v1302, %v1465
      %v1516 = vadd.f32 %v1303, %v1470
      %v1517 = vadd.f32 %v1304, %v1475
      %v1518 = vadd.f32 %v1305, %v1480
      %v1519 = vadd.f32 %v1306, %v1485
      %v1520 = vadd.f32 %v1307, %v1490
      %v1521 = vadd.f32 %v1308, %v1495
      %v1522 = vadd.f32 %v1309, %v1500
      %v1523 = vadd.f32 %v1310, %v1505
      %v1526 = vcombine.high %v1067, %v1067
      %v1528 = vunpack.c.l.s4 1966171168
      %v1529 = vunpack.c.0.s8 %v1528
      %v1530 = vlaneseq
      %v1531 = vshrl.u32 %v1530, 7
      %v1532 = vsub.s32 %v1529, %v1531
      %v1533 = vrot.slane %v1067, %v1532
      %v1535 = vunpack.c.l.s4 1966171168
      %v1536 = vunpack.c.0.s8 %v1535
      %v1537 = vlaneseq
      %v1538 = vshrl.u32 %v1537, 7
      %v1539 = vsub.s32 %v1536, %v1538
      %v1540 = vrot.slane %v1526, %v1539
      %v1541 = vcombine.high %v1533, %v1533
      %v1542 = vcombine.high %v1540, %v1540
      %v1544 = vunpack.c.l.s4 1966171168
      %v1545 = vunpack.c.0.s8 %v1544
      %v1546 = vlaneseq
      %v1547 = vshrl.u32 %v1546, 7
      %v1548 = vsub.s32 %v1545, %v1547
      %v1549 = vrot.slane %v1533, %v1548
      %v1551 = vunpack.c.l.s4 1966171168
      %v1552 = vunpack.c.0.s8 %v1551
      %v1553 = vlaneseq
      %v1554 = vshrl.u32 %v1553, 7
      %v1555 = vsub.s32 %v1552, %v1554
      %v1556 = vrot.slane %v1540, %v1555
      %v1558 = vunpack.c.l.s4 1966171168
      %v1559 = vunpack.c.0.s8 %v1558
      %v1560 = vlaneseq
      %v1561 = vshrl.u32 %v1560, 7
      %v1562 = vsub.s32 %v1559, %v1561
      %v1563 = vrot.slane %v1541, %v1562
      %v1565 = vunpack.c.l.s4 1966171168
      %v1566 = vunpack.c.0.s8 %v1565
      %v1567 = vlaneseq
      %v1568 = vshrl.u32 %v1567, 7
      %v1569 = vsub.s32 %v1566, %v1568
      %v1570 = vrot.slane %v1542, %v1569
      %v1571 = vcombine.high %v1549, %v1549
      %v1572 = vcombine.high %v1556, %v1556
      %v1573 = vcombine.high %v1563, %v1563
      %v1574 = vcombine.high %v1570, %v1570
      %v1575 = vcombine.high %v1072, %v1072
      %v1577 = vunpack.c.l.s4 1966171168
      %v1578 = vunpack.c.0.s8 %v1577
      %v1579 = vlaneseq
      %v1580 = vshrl.u32 %v1579, 7
      %v1581 = vsub.s32 %v1578, %v1580
      %v1582 = vrot.slane %v1072, %v1581
      %v1584 = vunpack.c.l.s4 1966171168
      %v1585 = vunpack.c.0.s8 %v1584
      %v1586 = vlaneseq
      %v1587 = vshrl.u32 %v1586, 7
      %v1588 = vsub.s32 %v1585, %v1587
      %v1589 = vrot.slane %v1575, %v1588
      %v1590 = vcombine.high %v1582, %v1582
      %v1591 = vcombine.high %v1589, %v1589
      %v1593 = vunpack.c.l.s4 1966171168
      %v1594 = vunpack.c.0.s8 %v1593
      %v1595 = vlaneseq
      %v1596 = vshrl.u32 %v1595, 7
      %v1597 = vsub.s32 %v1594, %v1596
      %v1598 = vrot.slane %v1582, %v1597
      %v1600 = vunpack.c.l.s4 1966171168
      %v1601 = vunpack.c.0.s8 %v1600
      %v1602 = vlaneseq
      %v1603 = vshrl.u32 %v1602, 7
      %v1604 = vsub.s32 %v1601, %v1603
      %v1605 = vrot.slane %v1589, %v1604
      %v1607 = vunpack.c.l.s4 1966171168
      %v1608 = vunpack.c.0.s8 %v1607
      %v1609 = vlaneseq
      %v1610 = vshrl.u32 %v1609, 7
      %v1611 = vsub.s32 %v1608, %v1610
      %v1612 = vrot.slane %v1590, %v1611
      %v1614 = vunpack.c.l.s4 1966171168
      %v1615 = vunpack.c.0.s8 %v1614
      %v1616 = vlaneseq
      %v1617 = vshrl.u32 %v1616, 7
      %v1618 = vsub.s32 %v1615, %v1617
      %v1619 = vrot.slane %v1591, %v1618
      %v1620 = vcombine.high %v1598, %v1598
      %v1621 = vcombine.high %v1605, %v1605
      %v1622 = vcombine.high %v1612, %v1612
      %v1623 = vcombine.high %v1619, %v1619
      %v1624 = vlaneseq
      %v1625 = vshrl.u32 %v1624, 7
      %v1626 = vsub.s32 0, %v1625
      %v1627 = vrot.slane %v1549, %v1626
      %v1628 = vlaneseq
      %v1629 = vshrl.u32 %v1628, 7
      %v1630 = vsub.s32 0, %v1629
      %v1631 = vrot.slane %v1563, %v1630
      %v1632 = vlaneseq
      %v1633 = vshrl.u32 %v1632, 7
      %v1634 = vsub.s32 0, %v1633
      %v1635 = vrot.slane %v1571, %v1634
      %v1636 = vlaneseq
      %v1637 = vshrl.u32 %v1636, 7
      %v1638 = vsub.s32 0, %v1637
      %v1639 = vrot.slane %v1573, %v1638
      %v1640 = vlaneseq
      %v1641 = vshrl.u32 %v1640, 7
      %v1642 = vsub.s32 0, %v1641
      %v1643 = vrot.slane %v1556, %v1642
      %v1644 = vlaneseq
      %v1645 = vshrl.u32 %v1644, 7
      %v1646 = vsub.s32 0, %v1645
      %v1647 = vrot.slane %v1570, %v1646
      %v1648 = vlaneseq
      %v1649 = vshrl.u32 %v1648, 7
      %v1650 = vsub.s32 0, %v1649
      %v1651 = vrot.slane %v1572, %v1650
      %v1652 = vlaneseq
      %v1653 = vshrl.u32 %v1652, 7
      %v1654 = vsub.s32 0, %v1653
      %v1655 = vrot.slane %v1574, %v1654
      %v1656 = vlaneseq
      %v1657 = vshrl.u32 %v1656, 7
      %v1658 = vsub.s32 0, %v1657
      %v1659 = vrot.slane %v1598, %v1658
      %v1660 = vlaneseq
      %v1661 = vshrl.u32 %v1660, 7
      %v1662 = vsub.s32 0, %v1661
      %v1663 = vrot.slane %v1612, %v1662
      %v1664 = vlaneseq
      %v1665 = vshrl.u32 %v1664, 7
      %v1666 = vsub.s32 0, %v1665
      %v1667 = vrot.slane %v1620, %v1666
      %v1668 = vlaneseq
      %v1669 = vshrl.u32 %v1668, 7
      %v1670 = vsub.s32 0, %v1669
      %v1671 = vrot.slane %v1622, %v1670
      %v1672 = vlaneseq
      %v1673 = vshrl.u32 %v1672, 7
      %v1674 = vsub.s32 0, %v1673
      %v1675 = vrot.slane %v1605, %v1674
      %v1676 = vlaneseq
      %v1677 = vshrl.u32 %v1676, 7
      %v1678 = vsub.s32 0, %v1677
      %v1679 = vrot.slane %v1619, %v1678
      %v1680 = vlaneseq
      %v1681 = vshrl.u32 %v1680, 7
      %v1682 = vsub.s32 0, %v1681
      %v1683 = vrot.slane %v1621, %v1682
      %v1684 = vlaneseq
      %v1685 = vshrl.u32 %v1684, 7
      %v1686 = vsub.s32 0, %v1685
      %v1687 = vrot.slane %v1623, %v1686
      %v1704 = vadd.f32 %v1508, %v1627
      %v1705 = vadd.f32 %v1509, %v1631
      %v1706 = vadd.f32 %v1510, %v1635
      %v1707 = vadd.f32 %v1511, %v1639
      %v1708 = vadd.f32 %v1512, %v1643
      %v1709 = vadd.f32 %v1513, %v1647
      %v1710 = vadd.f32 %v1514, %v1651
      %v1711 = vadd.f32 %v1515, %v1655
      %v1712 = vadd.f32 %v1516, %v1659
      %v1713 = vadd.f32 %v1517, %v1663
      %v1714 = vadd.f32 %v1518, %v1667
      %v1715 = vadd.f32 %v1519, %v1671
      %v1716 = vadd.f32 %v1520, %v1675
      %v1717 = vadd.f32 %v1521, %v1679
      %v1718 = vadd.f32 %v1522, %v1683
      %v1719 = vadd.f32 %v1523, %v1687
      %v1720 = vld [vmem:[%s7] sm:$0x1]
      %v1722 = vlaneseq
      %v1723 = vshrl.u32 %v1722, 7
      %v1724 = vsub.s32 0, %v1723
      %v1725 = vrot.slane %v1720, %v1724
      %v1727 = vadd.f32 %v1704, %v1725
      %v1728 = vadd.f32 %v1705, %v1725
      %v1729 = vadd.f32 %v1706, %v1725
      %v1730 = vadd.f32 %v1707, %v1725
      %v1731 = vadd.f32 %v1708, %v1725
      %v1732 = vadd.f32 %v1709, %v1725
      %v1733 = vadd.f32 %v1710, %v1725
      %v1734 = vadd.f32 %v1711, %v1725
      %v1735 = vadd.f32 %v1712, %v1725
      %v1736 = vadd.f32 %v1713, %v1725
      %v1737 = vadd.f32 %v1714, %v1725
      %v1738 = vadd.f32 %v1715, %v1725
      %v1739 = vadd.f32 %v1716, %v1725
      %v1740 = vadd.f32 %v1717, %v1725
      %v1741 = vadd.f32 %v1718, %v1725
      %v1742 = vadd.f32 %v1719, %v1725
      %v1743 = vmax.f32 %v1727, 0.0
      %v1744 = vmax.f32 %v1728, 0.0
      %v1745 = vmax.f32 %v1729, 0.0
      %v1746 = vmax.f32 %v1730, 0.0
      %v1747 = vmax.f32 %v1731, 0.0
      %v1748 = vmax.f32 %v1732, 0.0
      %v1749 = vmax.f32 %v1733, 0.0
      %v1750 = vmax.f32 %v1734, 0.0
      %v1751 = vmax.f32 %v1735, 0.0
      %v1752 = vmax.f32 %v1736, 0.0
      %v1753 = vmax.f32 %v1737, 0.0
      %v1754 = vmax.f32 %v1738, 0.0
      %v1755 = vmax.f32 %v1739, 0.0
      %v1756 = vmax.f32 %v1740, 0.0
      %v1757 = vmax.f32 %v1741, 0.0
      %v1758 = vmax.f32 %v1742, 0.0
      %v1759 = vpack.c.bf16 %v1744, %v1743
      %v1760 = vpack.c.bf16 %v1746, %v1745
      %v1761 = vpack.c.bf16 %v1748, %v1747
      %v1762 = vpack.c.bf16 %v1750, %v1749
      %v1763 = vpack.c.bf16 %v1752, %v1751
      %v1764 = vpack.c.bf16 %v1754, %v1753
      %v1765 = vpack.c.bf16 %v1756, %v1755
      %v1766 = vpack.c.bf16 %v1758, %v1757
      %v1767 = vld [vmem:[%s8] sm:$0xf]
      %v1768 = vld [vmem:[%s9] sm:$0xf]
      %vm1769 = vcmask 64512
      %v1771 = vsel %vm1769, %v1759, 0
      %v1774 = vsel %vm1769, %v1760, 0
      %v1777 = vsel %vm1769, %v1761, 0
      %v1780 = vsel %vm1769, %v1762, 0
      %v1783 = vsel %vm1769, %v1763, 0
      %v1786 = vsel %vm1769, %v1764, 0
      %v1789 = vsel %vm1769, %v1765, 0
      %v1792 = vsel %vm1769, %v1766, 0
      %vm1794 = vcmask 1043456
      %v1796 = vsel %vm1794, %v1768, 0
      %1798 = vmatprep.subr.bf16.mxu0 0
      %1799 = vmatpush1.bf16.msra.mxu0 0
      %1800 = vmatprep.subr.bf16.mxu0 0
      %1801 = vmatpush1.bf16.msra.mxu0 0
      %1802 = vmatprep.subr.bf16.mxu0 0
      %1803 = vmatpush1.bf16.msra.mxu0 0
      %1804 = vmatprep.subr.bf16.mxu0 0
      %1805 = vmatpush1.bf16.msra.mxu0 0
      %1806 = vmatprep.subr.bf16.mxu0 0
      %1807 = vmatpush1.bf16.msra.mxu0 0
      %1808 = vmatprep.subr.bf16.mxu0 0
      %1809 = vmatpush1.bf16.msra.mxu0 0
      %1810 = vmatprep.subr.bf16.mxu0 0
      %1811 = vmatpush1.bf16.msra.mxu0 0
      %1812 = vmatprep.subr.bf16.mxu0 0
      %1813 = vmatpush1.bf16.msra.mxu0 %v1796
      %1814 = vmatprep.subr.bf16.mxu0 0
      %1815 = vmatpush2.bf16.msra.mxu0 0
      %1816 = vmatprep.subr.bf16.mxu0 0
      %1817 = vmatpush2.bf16.msra.mxu0 0
      %1818 = vmatprep.subr.bf16.mxu0 0
      %1819 = vmatpush2.bf16.msra.mxu0 0
      %1820 = vmatprep.subr.bf16.mxu0 0
      %1821 = vmatpush2.bf16.msra.mxu0 0
      %1822 = vmatprep.subr.bf16.mxu0 0
      %1823 = vmatpush2.bf16.msra.mxu0 0
      %1824 = vmatprep.subr.bf16.mxu0 0
      %1825 = vmatpush2.bf16.msra.mxu0 0
      %1826 = vmatprep.subr.bf16.mxu0 0
      %1827 = vmatpush2.bf16.msra.mxu0 0
      %1828 = vmatprep.subr.bf16.mxu0 0
      %1829 = vmatpush2.bf16.msra.mxu0 0
      %1830 = vmatprep.mubr.bf16.mxu0 0
      %1831 = vmatmul.mubr.bf16.gmra.mxu0 %v1771
      %v1832 = vpop.f32.mrf.mxu0
      %v1833 = vadd.f32 0.0, %v1832
      %v1834 = vpop.f32.mrf.mxu0
      %v1835 = vpop.f32.mrf.mxu0
      %v1836 = vadd.f32 0.0, %v1835
      %v1837 = vpop.f32.mrf.mxu0
      %1838 = vmatprep.mubr.bf16.mxu0 0
      %1839 = vmatmul.mubr.bf16.gmra.mxu0 %v1774
      %v1840 = vpop.f32.mrf.mxu0
      %v1841 = vadd.f32 0.0, %v1840
      %v1842 = vpop.f32.mrf.mxu0
      %v1843 = vpop.f32.mrf.mxu0
      %v1844 = vadd.f32 0.0, %v1843
      %v1845 = vpop.f32.mrf.mxu0
      %1846 = vmatprep.mubr.bf16.mxu0 0
      %1847 = vmatmul.mubr.bf16.gmra.mxu0 %v1777
      %v1848 = vpop.f32.mrf.mxu0
      %v1849 = vadd.f32 0.0, %v1848
      %v1850 = vpop.f32.mrf.mxu0
      %v1851 = vpop.f32.mrf.mxu0
      %v1852 = vadd.f32 0.0, %v1851
      %v1853 = vpop.f32.mrf.mxu0
      %1854 = vmatprep.mubr.bf16.mxu0 0
      %1855 = vmatmul.mubr.bf16.gmra.mxu0 %v1780
      %v1856 = vpop.f32.mrf.mxu0
      %v1857 = vadd.f32 0.0, %v1856
      %v1858 = vpop.f32.mrf.mxu0
      %v1859 = vpop.f32.mrf.mxu0
      %v1860 = vadd.f32 0.0, %v1859
      %v1861 = vpop.f32.mrf.mxu0
      %1862 = vmatprep.mubr.bf16.mxu0 0
      %1863 = vmatmul.mubr.bf16.gmra.mxu0 %v1783
      %v1864 = vpop.f32.mrf.mxu0
      %v1865 = vadd.f32 0.0, %v1864
      %v1866 = vpop.f32.mrf.mxu0
      %v1867 = vpop.f32.mrf.mxu0
      %v1868 = vadd.f32 0.0, %v1867
      %v1869 = vpop.f32.mrf.mxu0
      %1870 = vmatprep.mubr.bf16.mxu0 0
      %1871 = vmatmul.mubr.bf16.gmra.mxu0 %v1786
      %v1872 = vpop.f32.mrf.mxu0
      %v1873 = vadd.f32 0.0, %v1872
      %v1874 = vpop.f32.mrf.mxu0
      %v1875 = vpop.f32.mrf.mxu0
      %v1876 = vadd.f32 0.0, %v1875
      %v1877 = vpop.f32.mrf.mxu0
      %1878 = vmatprep.mubr.bf16.mxu0 0
      %1879 = vmatmul.mubr.bf16.gmra.mxu0 %v1789
      %v1880 = vpop.f32.mrf.mxu0
      %v1881 = vadd.f32 0.0, %v1880
      %v1882 = vpop.f32.mrf.mxu0
      %v1883 = vpop.f32.mrf.mxu0
      %v1884 = vadd.f32 0.0, %v1883
      %v1885 = vpop.f32.mrf.mxu0
      %1886 = vmatprep.mubr.bf16.mxu0 0
      %1887 = vmatmul.mubr.bf16.gmra.mxu0 %v1792
      %v1888 = vpop.f32.mrf.mxu0
      %v1889 = vadd.f32 0.0, %v1888
      %v1890 = vpop.f32.mrf.mxu0
      %v1891 = vpop.f32.mrf.mxu0
      %v1892 = vadd.f32 0.0, %v1891
      %v1893 = vpop.f32.mrf.mxu0
      %1894 = vdwg.mxu0
      %v1911 = vunpack.c.l.b16 %v602
      %v1912 = vunpack.c.l.b16 %v603
      %v1913 = vunpack.c.l.b16 %v604
      %v1914 = vunpack.c.l.b16 %v605
      %v1915 = vunpack.c.l.b16 %v606
      %v1916 = vunpack.c.l.b16 %v607
      %v1917 = vunpack.c.l.b16 %v608
      %v1918 = vunpack.c.l.b16 %v609
      %v1919 = vunpack.c.l.b16 %v610
      %v1920 = vunpack.c.l.b16 %v611
      %v1921 = vunpack.c.l.b16 %v612
      %v1922 = vunpack.c.l.b16 %v613
      %v1923 = vunpack.c.l.b16 %v614
      %v1924 = vunpack.c.l.b16 %v615
      %v1925 = vunpack.c.l.b16 %v616
      %v1926 = vunpack.c.l.b16 %v617
      %v1927 = vpack.c.b16 %v1912, %v1911
      %v1928 = vpack.c.b16 %v1914, %v1913
      %v1929 = vpack.c.b16 %v1916, %v1915
      %v1930 = vpack.c.b16 %v1918, %v1917
      %v1931 = vpack.c.b16 %v1920, %v1919
      %v1932 = vpack.c.b16 %v1922, %v1921
      %v1933 = vpack.c.b16 %v1924, %v1923
      %v1934 = vpack.c.b16 %v1926, %v1925
      %v1936 = vsel %vm1769, %v1927, 0
      %v1939 = vsel %vm1769, %v1928, 0
      %v1942 = vsel %vm1769, %v1929, 0
      %v1945 = vsel %vm1769, %v1930, 0
      %v1948 = vsel %vm1769, %v1931, 0
      %v1951 = vsel %vm1769, %v1932, 0
      %v1954 = vsel %vm1769, %v1933, 0
      %v1957 = vsel %vm1769, %v1934, 0
      %v1960 = vsel %vm1794, %v1767, 0
      %1962 = vmatprep.subr.bf16.mxu0 0
      %1963 = vmatpush1.bf16.msra.mxu0 0
      %1964 = vmatprep.subr.bf16.mxu0 0
      %1965 = vmatpush1.bf16.msra.mxu0 0
      %1966 = vmatprep.subr.bf16.mxu0 0
      %1967 = vmatpush1.bf16.msra.mxu0 0
      %1968 = vmatprep.subr.bf16.mxu0 0
      %1969 = vmatpush1.bf16.msra.mxu0 0
      %1970 = vmatprep.subr.bf16.mxu0 0
      %1971 = vmatpush1.bf16.msra.mxu0 0
      %1972 = vmatprep.subr.bf16.mxu0 0
      %1973 = vmatpush1.bf16.msra.mxu0 0
      %1974 = vmatprep.subr.bf16.mxu0 0
      %1975 = vmatpush1.bf16.msra.mxu0 0
      %1976 = vmatprep.subr.bf16.mxu0 0
      %1977 = vmatpush1.bf16.msra.mxu0 %v1960
      %1978 = vmatprep.subr.bf16.mxu0 0
      %1979 = vmatpush2.bf16.msra.mxu0 0
      %1980 = vmatprep.subr.bf16.mxu0 0
      %1981 = vmatpush2.bf16.msra.mxu0 0
      %1982 = vmatprep.subr.bf16.mxu0 0
      %1983 = vmatpush2.bf16.msra.mxu0 0
      %1984 = vmatprep.subr.bf16.mxu0 0
      %1985 = vmatpush2.bf16.msra.mxu0 0
      %1986 = vmatprep.subr.bf16.mxu0 0
      %1987 = vmatpush2.bf16.msra.mxu0 0
      %1988 = vmatprep.subr.bf16.mxu0 0
      %1989 = vmatpush2.bf16.msra.mxu0 0
      %1990 = vmatprep.subr.bf16.mxu0 0
      %1991 = vmatpush2.bf16.msra.mxu0 0
      %1992 = vmatprep.subr.bf16.mxu0 0
      %1993 = vmatpush2.bf16.msra.mxu0 0
      %1994 = vmatprep.mubr.bf16.mxu0 0
      %1995 = vmatmul.mubr.bf16.gmra.mxu0 %v1936
      %v1996 = vpop.f32.mrf.mxu0
      %v1997 = vadd.f32 %v1833, %v1996
      %v1998 = vpop.f32.mrf.mxu0
      %v1999 = vpop.f32.mrf.mxu0
      %v2000 = vadd.f32 %v1836, %v1999
      %v2001 = vpop.f32.mrf.mxu0
      %2002 = vmatprep.mubr.bf16.mxu0 0
      %2003 = vmatmul.mubr.bf16.gmra.mxu0 %v1939
      %v2004 = vpop.f32.mrf.mxu0
      %v2005 = vadd.f32 %v1841, %v2004
      %v2006 = vpop.f32.mrf.mxu0
      %v2007 = vpop.f32.mrf.mxu0
      %v2008 = vadd.f32 %v1844, %v2007
      %v2009 = vpop.f32.mrf.mxu0
      %2010 = vmatprep.mubr.bf16.mxu0 0
      %2011 = vmatmul.mubr.bf16.gmra.mxu0 %v1942
      %v2012 = vpop.f32.mrf.mxu0
      %v2013 = vadd.f32 %v1849, %v2012
      %v2014 = vpop.f32.mrf.mxu0
      %v2015 = vpop.f32.mrf.mxu0
      %v2016 = vadd.f32 %v1852, %v2015
      %v2017 = vpop.f32.mrf.mxu0
      %2018 = vmatprep.mubr.bf16.mxu0 0
      %2019 = vmatmul.mubr.bf16.gmra.mxu0 %v1945
      %v2020 = vpop.f32.mrf.mxu0
      %v2021 = vadd.f32 %v1857, %v2020
      %v2022 = vpop.f32.mrf.mxu0
      %v2023 = vpop.f32.mrf.mxu0
      %v2024 = vadd.f32 %v1860, %v2023
      %v2025 = vpop.f32.mrf.mxu0
      %2026 = vmatprep.mubr.bf16.mxu0 0
      %2027 = vmatmul.mubr.bf16.gmra.mxu0 %v1948
      %v2028 = vpop.f32.mrf.mxu0
      %v2029 = vadd.f32 %v1865, %v2028
      %v2030 = vpop.f32.mrf.mxu0
      %v2031 = vpop.f32.mrf.mxu0
      %v2032 = vadd.f32 %v1868, %v2031
      %v2033 = vpop.f32.mrf.mxu0
      %2034 = vmatprep.mubr.bf16.mxu0 0
      %2035 = vmatmul.mubr.bf16.gmra.mxu0 %v1951
      %v2036 = vpop.f32.mrf.mxu0
      %v2037 = vadd.f32 %v1873, %v2036
      %v2038 = vpop.f32.mrf.mxu0
      %v2039 = vpop.f32.mrf.mxu0
      %v2040 = vadd.f32 %v1876, %v2039
      %v2041 = vpop.f32.mrf.mxu0
      %2042 = vmatprep.mubr.bf16.mxu0 0
      %2043 = vmatmul.mubr.bf16.gmra.mxu0 %v1954
      %v2044 = vpop.f32.mrf.mxu0
      %v2045 = vadd.f32 %v1881, %v2044
      %v2046 = vpop.f32.mrf.mxu0
      %v2047 = vpop.f32.mrf.mxu0
      %v2048 = vadd.f32 %v1884, %v2047
      %v2049 = vpop.f32.mrf.mxu0
      %2050 = vmatprep.mubr.bf16.mxu0 0
      %2051 = vmatmul.mubr.bf16.gmra.mxu0 %v1957
      %v2052 = vpop.f32.mrf.mxu0
      %v2053 = vadd.f32 %v1889, %v2052
      %v2054 = vpop.f32.mrf.mxu0
      %v2055 = vpop.f32.mrf.mxu0
      %v2056 = vadd.f32 %v1892, %v2055
      %v2057 = vpop.f32.mrf.mxu0
      %2058 = vdwg.mxu0
      %v2059 = vunpack.c.l.bf16 %v602
      %v2060 = vunpack.c.l.bf16 %v603
      %v2061 = vunpack.c.l.bf16 %v604
      %v2062 = vunpack.c.l.bf16 %v605
      %v2063 = vunpack.c.l.bf16 %v606
      %v2064 = vunpack.c.l.bf16 %v607
      %v2065 = vunpack.c.l.bf16 %v608
      %v2066 = vunpack.c.l.bf16 %v609
      %v2067 = vunpack.c.l.bf16 %v610
      %v2068 = vunpack.c.l.bf16 %v611
      %v2069 = vunpack.c.l.bf16 %v612
      %v2070 = vunpack.c.l.bf16 %v613
      %v2071 = vunpack.c.l.bf16 %v614
      %v2072 = vunpack.c.l.bf16 %v615
      %v2073 = vunpack.c.l.bf16 %v616
      %v2074 = vunpack.c.l.bf16 %v617
      %v2075 = vsel %vm1769, %v1997, -inf
      %v2076 = vrot.slane %v2075, 4
      %v2077 = vmax.f32 %v2075, %v2076
      %v2078 = vrot.slane %v2077, 2
      %v2079 = vmax.f32 %v2077, %v2078
      %v2080 = vrot.slane %v2079, 1
      %v2081 = vmax.f32 %v2079, %v2080
      %v2082 = vsel %vm1769, %v2000, -inf
      %v2083 = vrot.slane %v2082, 4
      %v2084 = vmax.f32 %v2082, %v2083
      %v2085 = vrot.slane %v2084, 2
      %v2086 = vmax.f32 %v2084, %v2085
      %v2087 = vrot.slane %v2086, 1
      %v2088 = vmax.f32 %v2086, %v2087
      %v2089 = vsel %vm1769, %v2005, -inf
      %v2090 = vrot.slane %v2089, 4
      %v2091 = vmax.f32 %v2089, %v2090
      %v2092 = vrot.slane %v2091, 2
      %v2093 = vmax.f32 %v2091, %v2092
      %v2094 = vrot.slane %v2093, 1
      %v2095 = vmax.f32 %v2093, %v2094
      %v2096 = vsel %vm1769, %v2008, -inf
      %v2097 = vrot.slane %v2096, 4
      %v2098 = vmax.f32 %v2096, %v2097
      %v2099 = vrot.slane %v2098, 2
      %v2100 = vmax.f32 %v2098, %v2099
      %v2101 = vrot.slane %v2100, 1
      %v2102 = vmax.f32 %v2100, %v2101
      %v2103 = vsel %vm1769, %v2013, -inf
      %v2104 = vrot.slane %v2103, 4
      %v2105 = vmax.f32 %v2103, %v2104
      %v2106 = vrot.slane %v2105, 2
      %v2107 = vmax.f32 %v2105, %v2106
      %v2108 = vrot.slane %v2107, 1
      %v2109 = vmax.f32 %v2107, %v2108
      %v2110 = vsel %vm1769, %v2016, -inf
      %v2111 = vrot.slane %v2110, 4
      %v2112 = vmax.f32 %v2110, %v2111
      %v2113 = vrot.slane %v2112, 2
      %v2114 = vmax.f32 %v2112, %v2113
      %v2115 = vrot.slane %v2114, 1
      %v2116 = vmax.f32 %v2114, %v2115
      %v2117 = vsel %vm1769, %v2021, -inf
      %v2118 = vrot.slane %v2117, 4
      %v2119 = vmax.f32 %v2117, %v2118
      %v2120 = vrot.slane %v2119, 2
      %v2121 = vmax.f32 %v2119, %v2120
      %v2122 = vrot.slane %v2121, 1
      %v2123 = vmax.f32 %v2121, %v2122
      %v2124 = vsel %vm1769, %v2024, -inf
      %v2125 = vrot.slane %v2124, 4
      %v2126 = vmax.f32 %v2124, %v2125
      %v2127 = vrot.slane %v2126, 2
      %v2128 = vmax.f32 %v2126, %v2127
      %v2129 = vrot.slane %v2128, 1
      %v2130 = vmax.f32 %v2128, %v2129
      %v2131 = vsel %vm1769, %v2029, -inf
      %v2132 = vrot.slane %v2131, 4
      %v2133 = vmax.f32 %v2131, %v2132
      %v2134 = vrot.slane %v2133, 2
      %v2135 = vmax.f32 %v2133, %v2134
      %v2136 = vrot.slane %v2135, 1
      %v2137 = vmax.f32 %v2135, %v2136
      %v2138 = vsel %vm1769, %v2032, -inf
      %v2139 = vrot.slane %v2138, 4
      %v2140 = vmax.f32 %v2138, %v2139
      %v2141 = vrot.slane %v2140, 2
      %v2142 = vmax.f32 %v2140, %v2141
      %v2143 = vrot.slane %v2142, 1
      %v2144 = vmax.f32 %v2142, %v2143
      %v2145 = vsel %vm1769, %v2037, -inf
      %v2146 = vrot.slane %v2145, 4
      %v2147 = vmax.f32 %v2145, %v2146
      %v2148 = vrot.slane %v2147, 2
      %v2149 = vmax.f32 %v2147, %v2148
      %v2150 = vrot.slane %v2149, 1
      %v2151 = vmax.f32 %v2149, %v2150
      %v2152 = vsel %vm1769, %v2040, -inf
      %v2153 = vrot.slane %v2152, 4
      %v2154 = vmax.f32 %v2152, %v2153
      %v2155 = vrot.slane %v2154, 2
      %v2156 = vmax.f32 %v2154, %v2155
      %v2157 = vrot.slane %v2156, 1
      %v2158 = vmax.f32 %v2156, %v2157
      %v2159 = vsel %vm1769, %v2045, -inf
      %v2160 = vrot.slane %v2159, 4
      %v2161 = vmax.f32 %v2159, %v2160
      %v2162 = vrot.slane %v2161, 2
      %v2163 = vmax.f32 %v2161, %v2162
      %v2164 = vrot.slane %v2163, 1
      %v2165 = vmax.f32 %v2163, %v2164
      %v2166 = vsel %vm1769, %v2048, -inf
      %v2167 = vrot.slane %v2166, 4
      %v2168 = vmax.f32 %v2166, %v2167
      %v2169 = vrot.slane %v2168, 2
      %v2170 = vmax.f32 %v2168, %v2169
      %v2171 = vrot.slane %v2170, 1
      %v2172 = vmax.f32 %v2170, %v2171
      %v2173 = vsel %vm1769, %v2053, -inf
      %v2174 = vrot.slane %v2173, 4
      %v2175 = vmax.f32 %v2173, %v2174
      %v2176 = vrot.slane %v2175, 2
      %v2177 = vmax.f32 %v2175, %v2176
      %v2178 = vrot.slane %v2177, 1
      %v2179 = vmax.f32 %v2177, %v2178
      %v2180 = vsel %vm1769, %v2056, -inf
      %v2181 = vrot.slane %v2180, 4
      %v2182 = vmax.f32 %v2180, %v2181
      %v2183 = vrot.slane %v2182, 2
      %v2184 = vmax.f32 %v2182, %v2183
      %v2185 = vrot.slane %v2184, 1
      %v2186 = vmax.f32 %v2184, %v2185
      %v2187 = vsub.f32 %v1997, %v2081
      %v2188 = vsub.f32 %v2000, %v2088
      %v2189 = vsub.f32 %v2005, %v2095
      %v2190 = vsub.f32 %v2008, %v2102
      %v2191 = vsub.f32 %v2013, %v2109
      %v2192 = vsub.f32 %v2016, %v2116
      %v2193 = vsub.f32 %v2021, %v2123
      %v2194 = vsub.f32 %v2024, %v2130
      %v2195 = vsub.f32 %v2029, %v2137
      %v2196 = vsub.f32 %v2032, %v2144
      %v2197 = vsub.f32 %v2037, %v2151
      %v2198 = vsub.f32 %v2040, %v2158
      %v2199 = vsub.f32 %v2045, %v2165
      %v2200 = vsub.f32 %v2048, %v2172
      %v2201 = vsub.f32 %v2053, %v2179
      %v2202 = vsub.f32 %v2056, %v2186
      %v2203 = vmul.f32 %v2187, 1.442695
      %v2204 = vpow.pop %v2203
      %v2205 = vmul.f32 %v2188, 1.442695
      %v2206 = vpow.pop %v2205
      %v2207 = vmul.f32 %v2189, 1.442695
      %v2208 = vpow.pop %v2207
      %v2209 = vmul.f32 %v2190, 1.442695
      %v2210 = vpow.pop %v2209
      %v2211 = vmul.f32 %v2191, 1.442695
      %v2212 = vpow.pop %v2211
      %v2213 = vmul.f32 %v2192, 1.442695
      %v2214 = vpow.pop %v2213
      %v2215 = vmul.f32 %v2193, 1.442695
      %v2216 = vpow.pop %v2215
      %v2217 = vmul.f32 %v2194, 1.442695
      %v2218 = vpow.pop %v2217
      %v2219 = vmul.f32 %v2195, 1.442695
      %v2220 = vpow.pop %v2219
      %v2221 = vmul.f32 %v2196, 1.442695
      %v2222 = vpow.pop %v2221
      %v2223 = vmul.f32 %v2197, 1.442695
      %v2224 = vpow.pop %v2223
      %v2225 = vmul.f32 %v2198, 1.442695
      %v2226 = vpow.pop %v2225
      %v2227 = vmul.f32 %v2199, 1.442695
      %v2228 = vpow.pop %v2227
      %v2229 = vmul.f32 %v2200, 1.442695
      %v2230 = vpow.pop %v2229
      %v2231 = vmul.f32 %v2201, 1.442695
      %v2232 = vpow.pop %v2231
      %v2233 = vmul.f32 %v2202, 1.442695
      %v2234 = vpow.pop %v2233
      %v2235 = vsel %vm1769, %v2204, 0.0
      %v2236 = vrot.slane %v2235, 4
      %v2237 = vadd.f32 %v2235, %v2236
      %v2238 = vrot.slane %v2237, 2
      %v2239 = vadd.f32 %v2237, %v2238
      %v2240 = vrot.slane %v2239, 1
      %v2241 = vadd.f32 %v2239, %v2240
      %v2242 = vsel %vm1769, %v2206, 0.0
      %v2243 = vrot.slane %v2242, 4
      %v2244 = vadd.f32 %v2242, %v2243
      %v2245 = vrot.slane %v2244, 2
      %v2246 = vadd.f32 %v2244, %v2245
      %v2247 = vrot.slane %v2246, 1
      %v2248 = vadd.f32 %v2246, %v2247
      %v2249 = vsel %vm1769, %v2208, 0.0
      %v2250 = vrot.slane %v2249, 4
      %v2251 = vadd.f32 %v2249, %v2250
      %v2252 = vrot.slane %v2251, 2
      %v2253 = vadd.f32 %v2251, %v2252
      %v2254 = vrot.slane %v2253, 1
      %v2255 = vadd.f32 %v2253, %v2254
      %v2256 = vsel %vm1769, %v2210, 0.0
      %v2257 = vrot.slane %v2256, 4
      %v2258 = vadd.f32 %v2256, %v2257
      %v2259 = vrot.slane %v2258, 2
      %v2260 = vadd.f32 %v2258, %v2259
      %v2261 = vrot.slane %v2260, 1
      %v2262 = vadd.f32 %v2260, %v2261
      %v2263 = vsel %vm1769, %v2212, 0.0
      %v2264 = vrot.slane %v2263, 4
      %v2265 = vadd.f32 %v2263, %v2264
      %v2266 = vrot.slane %v2265, 2
      %v2267 = vadd.f32 %v2265, %v2266
      %v2268 = vrot.slane %v2267, 1
      %v2269 = vadd.f32 %v2267, %v2268
      %v2270 = vsel %vm1769, %v2214, 0.0
      %v2271 = vrot.slane %v2270, 4
      %v2272 = vadd.f32 %v2270, %v2271
      %v2273 = vrot.slane %v2272, 2
      %v2274 = vadd.f32 %v2272, %v2273
      %v2275 = vrot.slane %v2274, 1
      %v2276 = vadd.f32 %v2274, %v2275
      %v2277 = vsel %vm1769, %v2216, 0.0
      %v2278 = vrot.slane %v2277, 4
      %v2279 = vadd.f32 %v2277, %v2278
      %v2280 = vrot.slane %v2279, 2
      %v2281 = vadd.f32 %v2279, %v2280
      %v2282 = vrot.slane %v2281, 1
      %v2283 = vadd.f32 %v2281, %v2282
      %v2284 = vsel %vm1769, %v2218, 0.0
      %v2285 = vrot.slane %v2284, 4
      %v2286 = vadd.f32 %v2284, %v2285
      %v2287 = vrot.slane %v2286, 2
      %v2288 = vadd.f32 %v2286, %v2287
      %v2289 = vrot.slane %v2288, 1
      %v2290 = vadd.f32 %v2288, %v2289
      %v2291 = vsel %vm1769, %v2220, 0.0
      %v2292 = vrot.slane %v2291, 4
      %v2293 = vadd.f32 %v2291, %v2292
      %v2294 = vrot.slane %v2293, 2
      %v2295 = vadd.f32 %v2293, %v2294
      %v2296 = vrot.slane %v2295, 1
      %v2297 = vadd.f32 %v2295, %v2296
      %v2298 = vsel %vm1769, %v2222, 0.0
      %v2299 = vrot.slane %v2298, 4
      %v2300 = vadd.f32 %v2298, %v2299
      %v2301 = vrot.slane %v2300, 2
      %v2302 = vadd.f32 %v2300, %v2301
      %v2303 = vrot.slane %v2302, 1
      %v2304 = vadd.f32 %v2302, %v2303
      %v2305 = vsel %vm1769, %v2224, 0.0
      %v2306 = vrot.slane %v2305, 4
      %v2307 = vadd.f32 %v2305, %v2306
      %v2308 = vrot.slane %v2307, 2
      %v2309 = vadd.f32 %v2307, %v2308
      %v2310 = vrot.slane %v2309, 1
      %v2311 = vadd.f32 %v2309, %v2310
      %v2312 = vsel %vm1769, %v2226, 0.0
      %v2313 = vrot.slane %v2312, 4
      %v2314 = vadd.f32 %v2312, %v2313
      %v2315 = vrot.slane %v2314, 2
      %v2316 = vadd.f32 %v2314, %v2315
      %v2317 = vrot.slane %v2316, 1
      %v2318 = vadd.f32 %v2316, %v2317
      %v2319 = vsel %vm1769, %v2228, 0.0
      %v2320 = vrot.slane %v2319, 4
      %v2321 = vadd.f32 %v2319, %v2320
      %v2322 = vrot.slane %v2321, 2
      %v2323 = vadd.f32 %v2321, %v2322
      %v2324 = vrot.slane %v2323, 1
      %v2325 = vadd.f32 %v2323, %v2324
      %v2326 = vsel %vm1769, %v2230, 0.0
      %v2327 = vrot.slane %v2326, 4
      %v2328 = vadd.f32 %v2326, %v2327
      %v2329 = vrot.slane %v2328, 2
      %v2330 = vadd.f32 %v2328, %v2329
      %v2331 = vrot.slane %v2330, 1
      %v2332 = vadd.f32 %v2330, %v2331
      %v2333 = vsel %vm1769, %v2232, 0.0
      %v2334 = vrot.slane %v2333, 4
      %v2335 = vadd.f32 %v2333, %v2334
      %v2336 = vrot.slane %v2335, 2
      %v2337 = vadd.f32 %v2335, %v2336
      %v2338 = vrot.slane %v2337, 1
      %v2339 = vadd.f32 %v2337, %v2338
      %v2340 = vsel %vm1769, %v2234, 0.0
      %v2341 = vrot.slane %v2340, 4
      %v2342 = vadd.f32 %v2340, %v2341
      %v2343 = vrot.slane %v2342, 2
      %v2344 = vadd.f32 %v2342, %v2343
      %v2345 = vrot.slane %v2344, 1
      %v2346 = vadd.f32 %v2344, %v2345
      %v2347 = vrcp.pop %v2241
      %v2348 = vrcp.pop %v2248
      %v2349 = vrcp.pop %v2255
      %v2350 = vrcp.pop %v2262
      %v2351 = vrcp.pop %v2269
      %v2352 = vrcp.pop %v2276
      %v2353 = vrcp.pop %v2283
      %v2354 = vrcp.pop %v2290
      %v2355 = vrcp.pop %v2297
      %v2356 = vrcp.pop %v2304
      %v2357 = vrcp.pop %v2311
      %v2358 = vrcp.pop %v2318
      %v2359 = vrcp.pop %v2325
      %v2360 = vrcp.pop %v2332
      %v2361 = vrcp.pop %v2339
      %v2362 = vrcp.pop %v2346
      %v2363 = vmul.f32 %v2204, %v2347
      %v2364 = vmul.f32 %v2206, %v2348
      %v2365 = vmul.f32 %v2208, %v2349
      %v2366 = vmul.f32 %v2210, %v2350
      %v2367 = vmul.f32 %v2212, %v2351
      %v2368 = vmul.f32 %v2214, %v2352
      %v2369 = vmul.f32 %v2216, %v2353
      %v2370 = vmul.f32 %v2218, %v2354
      %v2371 = vmul.f32 %v2220, %v2355
      %v2372 = vmul.f32 %v2222, %v2356
      %v2373 = vmul.f32 %v2224, %v2357
      %v2374 = vmul.f32 %v2226, %v2358
      %v2375 = vmul.f32 %v2228, %v2359
      %v2376 = vmul.f32 %v2230, %v2360
      %v2377 = vmul.f32 %v2232, %v2361
      %v2378 = vmul.f32 %v2234, %v2362
      %v2379 = vmul.f32 %v2059, %v2363
      %v2380 = vmul.f32 %v2060, %v2364
      %v2381 = vmul.f32 %v2061, %v2365
      %v2382 = vmul.f32 %v2062, %v2366
      %v2383 = vmul.f32 %v2063, %v2367
      %v2384 = vmul.f32 %v2064, %v2368
      %v2385 = vmul.f32 %v2065, %v2369
      %v2386 = vmul.f32 %v2066, %v2370
      %v2387 = vmul.f32 %v2067, %v2371
      %v2388 = vmul.f32 %v2068, %v2372
      %v2389 = vmul.f32 %v2069, %v2373
      %v2390 = vmul.f32 %v2070, %v2374
      %v2391 = vmul.f32 %v2071, %v2375
      %v2392 = vmul.f32 %v2072, %v2376
      %v2393 = vmul.f32 %v2073, %v2377
      %v2394 = vmul.f32 %v2074, %v2378
      %v2395 = vsel %vm1769, %v2379, 0.0
      %v2396 = vrot.slane %v2395, 4
      %v2397 = vadd.f32 %v2395, %v2396
      %v2398 = vrot.slane %v2397, 2
      %v2399 = vadd.f32 %v2397, %v2398
      %v2400 = vrot.slane %v2399, 1
      %v2401 = vadd.f32 %v2399, %v2400
      %v2402 = vsel %vm1769, %v2380, 0.0
      %v2403 = vrot.slane %v2402, 4
      %v2404 = vadd.f32 %v2402, %v2403
      %v2405 = vrot.slane %v2404, 2
      %v2406 = vadd.f32 %v2404, %v2405
      %v2407 = vrot.slane %v2406, 1
      %v2408 = vadd.f32 %v2406, %v2407
      %v2409 = vsel %vm1769, %v2381, 0.0
      %v2410 = vrot.slane %v2409, 4
      %v2411 = vadd.f32 %v2409, %v2410
      %v2412 = vrot.slane %v2411, 2
      %v2413 = vadd.f32 %v2411, %v2412
      %v2414 = vrot.slane %v2413, 1
      %v2415 = vadd.f32 %v2413, %v2414
      %v2416 = vsel %vm1769, %v2382, 0.0
      %v2417 = vrot.slane %v2416, 4
      %v2418 = vadd.f32 %v2416, %v2417
      %v2419 = vrot.slane %v2418, 2
      %v2420 = vadd.f32 %v2418, %v2419
      %v2421 = vrot.slane %v2420, 1
      %v2422 = vadd.f32 %v2420, %v2421
      %v2423 = vsel %vm1769, %v2383, 0.0
      %v2424 = vrot.slane %v2423, 4
      %v2425 = vadd.f32 %v2423, %v2424
      %v2426 = vrot.slane %v2425, 2
      %v2427 = vadd.f32 %v2425, %v2426
      %v2428 = vrot.slane %v2427, 1
      %v2429 = vadd.f32 %v2427, %v2428
      %v2430 = vsel %vm1769, %v2384, 0.0
      %v2431 = vrot.slane %v2430, 4
      %v2432 = vadd.f32 %v2430, %v2431
      %v2433 = vrot.slane %v2432, 2
      %v2434 = vadd.f32 %v2432, %v2433
      %v2435 = vrot.slane %v2434, 1
      %v2436 = vadd.f32 %v2434, %v2435
      %v2437 = vsel %vm1769, %v2385, 0.0
      %v2438 = vrot.slane %v2437, 4
      %v2439 = vadd.f32 %v2437, %v2438
      %v2440 = vrot.slane %v2439, 2
      %v2441 = vadd.f32 %v2439, %v2440
      %v2442 = vrot.slane %v2441, 1
      %v2443 = vadd.f32 %v2441, %v2442
      %v2444 = vsel %vm1769, %v2386, 0.0
      %v2445 = vrot.slane %v2444, 4
      %v2446 = vadd.f32 %v2444, %v2445
      %v2447 = vrot.slane %v2446, 2
      %v2448 = vadd.f32 %v2446, %v2447
      %v2449 = vrot.slane %v2448, 1
      %v2450 = vadd.f32 %v2448, %v2449
      %v2451 = vsel %vm1769, %v2387, 0.0
      %v2452 = vrot.slane %v2451, 4
      %v2453 = vadd.f32 %v2451, %v2452
      %v2454 = vrot.slane %v2453, 2
      %v2455 = vadd.f32 %v2453, %v2454
      %v2456 = vrot.slane %v2455, 1
      %v2457 = vadd.f32 %v2455, %v2456
      %v2458 = vsel %vm1769, %v2388, 0.0
      %v2459 = vrot.slane %v2458, 4
      %v2460 = vadd.f32 %v2458, %v2459
      %v2461 = vrot.slane %v2460, 2
      %v2462 = vadd.f32 %v2460, %v2461
      %v2463 = vrot.slane %v2462, 1
      %v2464 = vadd.f32 %v2462, %v2463
      %v2465 = vsel %vm1769, %v2389, 0.0
      %v2466 = vrot.slane %v2465, 4
      %v2467 = vadd.f32 %v2465, %v2466
      %v2468 = vrot.slane %v2467, 2
      %v2469 = vadd.f32 %v2467, %v2468
      %v2470 = vrot.slane %v2469, 1
      %v2471 = vadd.f32 %v2469, %v2470
      %v2472 = vsel %vm1769, %v2390, 0.0
      %v2473 = vrot.slane %v2472, 4
      %v2474 = vadd.f32 %v2472, %v2473
      %v2475 = vrot.slane %v2474, 2
      %v2476 = vadd.f32 %v2474, %v2475
      %v2477 = vrot.slane %v2476, 1
      %v2478 = vadd.f32 %v2476, %v2477
      %v2479 = vsel %vm1769, %v2391, 0.0
      %v2480 = vrot.slane %v2479, 4
      %v2481 = vadd.f32 %v2479, %v2480
      %v2482 = vrot.slane %v2481, 2
      %v2483 = vadd.f32 %v2481, %v2482
      %v2484 = vrot.slane %v2483, 1
      %v2485 = vadd.f32 %v2483, %v2484
      %v2486 = vsel %vm1769, %v2392, 0.0
      %v2487 = vrot.slane %v2486, 4
      %v2488 = vadd.f32 %v2486, %v2487
      %v2489 = vrot.slane %v2488, 2
      %v2490 = vadd.f32 %v2488, %v2489
      %v2491 = vrot.slane %v2490, 1
      %v2492 = vadd.f32 %v2490, %v2491
      %v2493 = vsel %vm1769, %v2393, 0.0
      %v2494 = vrot.slane %v2493, 4
      %v2495 = vadd.f32 %v2493, %v2494
      %v2496 = vrot.slane %v2495, 2
      %v2497 = vadd.f32 %v2495, %v2496
      %v2498 = vrot.slane %v2497, 1
      %v2499 = vadd.f32 %v2497, %v2498
      %v2500 = vsel %vm1769, %v2394, 0.0
      %v2501 = vrot.slane %v2500, 4
      %v2502 = vadd.f32 %v2500, %v2501
      %v2503 = vrot.slane %v2502, 2
      %v2504 = vadd.f32 %v2502, %v2503
      %v2505 = vrot.slane %v2504, 1
      %v2506 = vadd.f32 %v2504, %v2505
      %vm2507 = vcmask 130112
      %v2508 = vsel %vm2507, %v1997, -inf
      %v2509 = vrot.slane %v2508, 4
      %v2510 = vmax.f32 %v2508, %v2509
      %v2511 = vrot.slane %v2510, 2
      %v2512 = vmax.f32 %v2510, %v2511
      %v2513 = vrot.slane %v2512, 1
      %v2514 = vmax.f32 %v2512, %v2513
      %v2515 = vsel %vm2507, %v2000, -inf
      %v2516 = vrot.slane %v2515, 4
      %v2517 = vmax.f32 %v2515, %v2516
      %v2518 = vrot.slane %v2517, 2
      %v2519 = vmax.f32 %v2517, %v2518
      %v2520 = vrot.slane %v2519, 1
      %v2521 = vmax.f32 %v2519, %v2520
      %v2522 = vsel %vm2507, %v2005, -inf
      %v2523 = vrot.slane %v2522, 4
      %v2524 = vmax.f32 %v2522, %v2523
      %v2525 = vrot.slane %v2524, 2
      %v2526 = vmax.f32 %v2524, %v2525
      %v2527 = vrot.slane %v2526, 1
      %v2528 = vmax.f32 %v2526, %v2527
      %v2529 = vsel %vm2507, %v2008, -inf
      %v2530 = vrot.slane %v2529, 4
      %v2531 = vmax.f32 %v2529, %v2530
      %v2532 = vrot.slane %v2531, 2
      %v2533 = vmax.f32 %v2531, %v2532
      %v2534 = vrot.slane %v2533, 1
      %v2535 = vmax.f32 %v2533, %v2534
      %v2536 = vsel %vm2507, %v2013, -inf
      %v2537 = vrot.slane %v2536, 4
      %v2538 = vmax.f32 %v2536, %v2537
      %v2539 = vrot.slane %v2538, 2
      %v2540 = vmax.f32 %v2538, %v2539
      %v2541 = vrot.slane %v2540, 1
      %v2542 = vmax.f32 %v2540, %v2541
      %v2543 = vsel %vm2507, %v2016, -inf
      %v2544 = vrot.slane %v2543, 4
      %v2545 = vmax.f32 %v2543, %v2544
      %v2546 = vrot.slane %v2545, 2
      %v2547 = vmax.f32 %v2545, %v2546
      %v2548 = vrot.slane %v2547, 1
      %v2549 = vmax.f32 %v2547, %v2548
      %v2550 = vsel %vm2507, %v2021, -inf
      %v2551 = vrot.slane %v2550, 4
      %v2552 = vmax.f32 %v2550, %v2551
      %v2553 = vrot.slane %v2552, 2
      %v2554 = vmax.f32 %v2552, %v2553
      %v2555 = vrot.slane %v2554, 1
      %v2556 = vmax.f32 %v2554, %v2555
      %v2557 = vsel %vm2507, %v2024, -inf
      %v2558 = vrot.slane %v2557, 4
      %v2559 = vmax.f32 %v2557, %v2558
      %v2560 = vrot.slane %v2559, 2
      %v2561 = vmax.f32 %v2559, %v2560
      %v2562 = vrot.slane %v2561, 1
      %v2563 = vmax.f32 %v2561, %v2562
      %v2564 = vsel %vm2507, %v2029, -inf
      %v2565 = vrot.slane %v2564, 4
      %v2566 = vmax.f32 %v2564, %v2565
      %v2567 = vrot.slane %v2566, 2
      %v2568 = vmax.f32 %v2566, %v2567
      %v2569 = vrot.slane %v2568, 1
      %v2570 = vmax.f32 %v2568, %v2569
      %v2571 = vsel %vm2507, %v2032, -inf
      %v2572 = vrot.slane %v2571, 4
      %v2573 = vmax.f32 %v2571, %v2572
      %v2574 = vrot.slane %v2573, 2
      %v2575 = vmax.f32 %v2573, %v2574
      %v2576 = vrot.slane %v2575, 1
      %v2577 = vmax.f32 %v2575, %v2576
      %v2578 = vsel %vm2507, %v2037, -inf
      %v2579 = vrot.slane %v2578, 4
      %v2580 = vmax.f32 %v2578, %v2579
      %v2581 = vrot.slane %v2580, 2
      %v2582 = vmax.f32 %v2580, %v2581
      %v2583 = vrot.slane %v2582, 1
      %v2584 = vmax.f32 %v2582, %v2583
      %v2585 = vsel %vm2507, %v2040, -inf
      %v2586 = vrot.slane %v2585, 4
      %v2587 = vmax.f32 %v2585, %v2586
      %v2588 = vrot.slane %v2587, 2
      %v2589 = vmax.f32 %v2587, %v2588
      %v2590 = vrot.slane %v2589, 1
      %v2591 = vmax.f32 %v2589, %v2590
      %v2592 = vsel %vm2507, %v2045, -inf
      %v2593 = vrot.slane %v2592, 4
      %v2594 = vmax.f32 %v2592, %v2593
      %v2595 = vrot.slane %v2594, 2
      %v2596 = vmax.f32 %v2594, %v2595
      %v2597 = vrot.slane %v2596, 1
      %v2598 = vmax.f32 %v2596, %v2597
      %v2599 = vsel %vm2507, %v2048, -inf
      %v2600 = vrot.slane %v2599, 4
      %v2601 = vmax.f32 %v2599, %v2600
      %v2602 = vrot.slane %v2601, 2
      %v2603 = vmax.f32 %v2601, %v2602
      %v2604 = vrot.slane %v2603, 1
      %v2605 = vmax.f32 %v2603, %v2604
      %v2606 = vsel %vm2507, %v2053, -inf
      %v2607 = vrot.slane %v2606, 4
      %v2608 = vmax.f32 %v2606, %v2607
      %v2609 = vrot.slane %v2608, 2
      %v2610 = vmax.f32 %v2608, %v2609
      %v2611 = vrot.slane %v2610, 1
      %v2612 = vmax.f32 %v2610, %v2611
      %v2613 = vsel %vm2507, %v2056, -inf
      %v2614 = vrot.slane %v2613, 4
      %v2615 = vmax.f32 %v2613, %v2614
      %v2616 = vrot.slane %v2615, 2
      %v2617 = vmax.f32 %v2615, %v2616
      %v2618 = vrot.slane %v2617, 1
      %v2619 = vmax.f32 %v2617, %v2618
      %v2620 = vsub.f32 %v1997, %v2514
      %v2621 = vsub.f32 %v2000, %v2521
      %v2622 = vsub.f32 %v2005, %v2528
      %v2623 = vsub.f32 %v2008, %v2535
      %v2624 = vsub.f32 %v2013, %v2542
      %v2625 = vsub.f32 %v2016, %v2549
      %v2626 = vsub.f32 %v2021, %v2556
      %v2627 = vsub.f32 %v2024, %v2563
      %v2628 = vsub.f32 %v2029, %v2570
      %v2629 = vsub.f32 %v2032, %v2577
      %v2630 = vsub.f32 %v2037, %v2584
      %v2631 = vsub.f32 %v2040, %v2591
      %v2632 = vsub.f32 %v2045, %v2598
      %v2633 = vsub.f32 %v2048, %v2605
      %v2634 = vsub.f32 %v2053, %v2612
      %v2635 = vsub.f32 %v2056, %v2619
      %v2636 = vmul.f32 %v2620, 1.442695
      %v2637 = vpow.pop %v2636
      %v2638 = vmul.f32 %v2621, 1.442695
      %v2639 = vpow.pop %v2638
      %v2640 = vmul.f32 %v2622, 1.442695
      %v2641 = vpow.pop %v2640
      %v2642 = vmul.f32 %v2623, 1.442695
      %v2643 = vpow.pop %v2642
      %v2644 = vmul.f32 %v2624, 1.442695
      %v2645 = vpow.pop %v2644
      %v2646 = vmul.f32 %v2625, 1.442695
      %v2647 = vpow.pop %v2646
      %v2648 = vmul.f32 %v2626, 1.442695
      %v2649 = vpow.pop %v2648
      %v2650 = vmul.f32 %v2627, 1.442695
      %v2651 = vpow.pop %v2650
      %v2652 = vmul.f32 %v2628, 1.442695
      %v2653 = vpow.pop %v2652
      %v2654 = vmul.f32 %v2629, 1.442695
      %v2655 = vpow.pop %v2654
      %v2656 = vmul.f32 %v2630, 1.442695
      %v2657 = vpow.pop %v2656
      %v2658 = vmul.f32 %v2631, 1.442695
      %v2659 = vpow.pop %v2658
      %v2660 = vmul.f32 %v2632, 1.442695
      %v2661 = vpow.pop %v2660
      %v2662 = vmul.f32 %v2633, 1.442695
      %v2663 = vpow.pop %v2662
      %v2664 = vmul.f32 %v2634, 1.442695
      %v2665 = vpow.pop %v2664
      %v2666 = vmul.f32 %v2635, 1.442695
      %v2667 = vpow.pop %v2666
      %v2668 = vsel %vm2507, %v2637, 0.0
      %v2669 = vrot.slane %v2668, 4
      %v2670 = vadd.f32 %v2668, %v2669
      %v2671 = vrot.slane %v2670, 2
      %v2672 = vadd.f32 %v2670, %v2671
      %v2673 = vrot.slane %v2672, 1
      %v2674 = vadd.f32 %v2672, %v2673
      %v2675 = vsel %vm2507, %v2639, 0.0
      %v2676 = vrot.slane %v2675, 4
      %v2677 = vadd.f32 %v2675, %v2676
      %v2678 = vrot.slane %v2677, 2
      %v2679 = vadd.f32 %v2677, %v2678
      %v2680 = vrot.slane %v2679, 1
      %v2681 = vadd.f32 %v2679, %v2680
      %v2682 = vsel %vm2507, %v2641, 0.0
      %v2683 = vrot.slane %v2682, 4
      %v2684 = vadd.f32 %v2682, %v2683
      %v2685 = vrot.slane %v2684, 2
      %v2686 = vadd.f32 %v2684, %v2685
      %v2687 = vrot.slane %v2686, 1
      %v2688 = vadd.f32 %v2686, %v2687
      %v2689 = vsel %vm2507, %v2643, 0.0
      %v2690 = vrot.slane %v2689, 4
      %v2691 = vadd.f32 %v2689, %v2690
      %v2692 = vrot.slane %v2691, 2
      %v2693 = vadd.f32 %v2691, %v2692
      %v2694 = vrot.slane %v2693, 1
      %v2695 = vadd.f32 %v2693, %v2694
      %v2696 = vsel %vm2507, %v2645, 0.0
      %v2697 = vrot.slane %v2696, 4
      %v2698 = vadd.f32 %v2696, %v2697
      %v2699 = vrot.slane %v2698, 2
      %v2700 = vadd.f32 %v2698, %v2699
      %v2701 = vrot.slane %v2700, 1
      %v2702 = vadd.f32 %v2700, %v2701
      %v2703 = vsel %vm2507, %v2647, 0.0
      %v2704 = vrot.slane %v2703, 4
      %v2705 = vadd.f32 %v2703, %v2704
      %v2706 = vrot.slane %v2705, 2
      %v2707 = vadd.f32 %v2705, %v2706
      %v2708 = vrot.slane %v2707, 1
      %v2709 = vadd.f32 %v2707, %v2708
      %v2710 = vsel %vm2507, %v2649, 0.0
      %v2711 = vrot.slane %v2710, 4
      %v2712 = vadd.f32 %v2710, %v2711
      %v2713 = vrot.slane %v2712, 2
      %v2714 = vadd.f32 %v2712, %v2713
      %v2715 = vrot.slane %v2714, 1
      %v2716 = vadd.f32 %v2714, %v2715
      %v2717 = vsel %vm2507, %v2651, 0.0
      %v2718 = vrot.slane %v2717, 4
      %v2719 = vadd.f32 %v2717, %v2718
      %v2720 = vrot.slane %v2719, 2
      %v2721 = vadd.f32 %v2719, %v2720
      %v2722 = vrot.slane %v2721, 1
      %v2723 = vadd.f32 %v2721, %v2722
      %v2724 = vsel %vm2507, %v2653, 0.0
      %v2725 = vrot.slane %v2724, 4
      %v2726 = vadd.f32 %v2724, %v2725
      %v2727 = vrot.slane %v2726, 2
      %v2728 = vadd.f32 %v2726, %v2727
      %v2729 = vrot.slane %v2728, 1
      %v2730 = vadd.f32 %v2728, %v2729
      %v2731 = vsel %vm2507, %v2655, 0.0
      %v2732 = vrot.slane %v2731, 4
      %v2733 = vadd.f32 %v2731, %v2732
      %v2734 = vrot.slane %v2733, 2
      %v2735 = vadd.f32 %v2733, %v2734
      %v2736 = vrot.slane %v2735, 1
      %v2737 = vadd.f32 %v2735, %v2736
      %v2738 = vsel %vm2507, %v2657, 0.0
      %v2739 = vrot.slane %v2738, 4
      %v2740 = vadd.f32 %v2738, %v2739
      %v2741 = vrot.slane %v2740, 2
      %v2742 = vadd.f32 %v2740, %v2741
      %v2743 = vrot.slane %v2742, 1
      %v2744 = vadd.f32 %v2742, %v2743
      %v2745 = vsel %vm2507, %v2659, 0.0
      %v2746 = vrot.slane %v2745, 4
      %v2747 = vadd.f32 %v2745, %v2746
      %v2748 = vrot.slane %v2747, 2
      %v2749 = vadd.f32 %v2747, %v2748
      %v2750 = vrot.slane %v2749, 1
      %v2751 = vadd.f32 %v2749, %v2750
      %v2752 = vsel %vm2507, %v2661, 0.0
      %v2753 = vrot.slane %v2752, 4
      %v2754 = vadd.f32 %v2752, %v2753
      %v2755 = vrot.slane %v2754, 2
      %v2756 = vadd.f32 %v2754, %v2755
      %v2757 = vrot.slane %v2756, 1
      %v2758 = vadd.f32 %v2756, %v2757
      %v2759 = vsel %vm2507, %v2663, 0.0
      %v2760 = vrot.slane %v2759, 4
      %v2761 = vadd.f32 %v2759, %v2760
      %v2762 = vrot.slane %v2761, 2
      %v2763 = vadd.f32 %v2761, %v2762
      %v2764 = vrot.slane %v2763, 1
      %v2765 = vadd.f32 %v2763, %v2764
      %v2766 = vsel %vm2507, %v2665, 0.0
      %v2767 = vrot.slane %v2766, 4
      %v2768 = vadd.f32 %v2766, %v2767
      %v2769 = vrot.slane %v2768, 2
      %v2770 = vadd.f32 %v2768, %v2769
      %v2771 = vrot.slane %v2770, 1
      %v2772 = vadd.f32 %v2770, %v2771
      %v2773 = vsel %vm2507, %v2667, 0.0
      %v2774 = vrot.slane %v2773, 4
      %v2775 = vadd.f32 %v2773, %v2774
      %v2776 = vrot.slane %v2775, 2
      %v2777 = vadd.f32 %v2775, %v2776
      %v2778 = vrot.slane %v2777, 1
      %v2779 = vadd.f32 %v2777, %v2778
      %v2780 = vrcp.pop %v2674
      %v2781 = vrcp.pop %v2681
      %v2782 = vrcp.pop %v2688
      %v2783 = vrcp.pop %v2695
      %v2784 = vrcp.pop %v2702
      %v2785 = vrcp.pop %v2709
      %v2786 = vrcp.pop %v2716
      %v2787 = vrcp.pop %v2723
      %v2788 = vrcp.pop %v2730
      %v2789 = vrcp.pop %v2737
      %v2790 = vrcp.pop %v2744
      %v2791 = vrcp.pop %v2751
      %v2792 = vrcp.pop %v2758
      %v2793 = vrcp.pop %v2765
      %v2794 = vrcp.pop %v2772
      %v2795 = vrcp.pop %v2779
      %v2796 = vmul.f32 %v2637, %v2780
      %v2797 = vmul.f32 %v2639, %v2781
      %v2798 = vmul.f32 %v2641, %v2782
      %v2799 = vmul.f32 %v2643, %v2783
      %v2800 = vmul.f32 %v2645, %v2784
      %v2801 = vmul.f32 %v2647, %v2785
      %v2802 = vmul.f32 %v2649, %v2786
      %v2803 = vmul.f32 %v2651, %v2787
      %v2804 = vmul.f32 %v2653, %v2788
      %v2805 = vmul.f32 %v2655, %v2789
      %v2806 = vmul.f32 %v2657, %v2790
      %v2807 = vmul.f32 %v2659, %v2791
      %v2808 = vmul.f32 %v2661, %v2792
      %v2809 = vmul.f32 %v2663, %v2793
      %v2810 = vmul.f32 %v2665, %v2794
      %v2811 = vmul.f32 %v2667, %v2795
      %2828 = vrot.lane.b32.xlu0 %v2796, 120
      %v2829 = vpop.permute.xlu0 %2828
      %2830 = vrot.lane.b32.xlu0 %v2797, 120
      %v2831 = vpop.permute.xlu0 %2830
      %2832 = vrot.lane.b32.xlu0 %v2798, 120
      %v2833 = vpop.permute.xlu0 %2832
      %2834 = vrot.lane.b32.xlu0 %v2799, 120
      %v2835 = vpop.permute.xlu0 %2834
      %2836 = vrot.lane.b32.xlu0 %v2800, 120
      %v2837 = vpop.permute.xlu0 %2836
      %2838 = vrot.lane.b32.xlu0 %v2801, 120
      %v2839 = vpop.permute.xlu0 %2838
      %2840 = vrot.lane.b32.xlu0 %v2802, 120
      %v2841 = vpop.permute.xlu0 %2840
      %2842 = vrot.lane.b32.xlu0 %v2803, 120
      %v2843 = vpop.permute.xlu0 %2842
      %2844 = vrot.lane.b32.xlu0 %v2804, 120
      %v2845 = vpop.permute.xlu0 %2844
      %2846 = vrot.lane.b32.xlu0 %v2805, 120
      %v2847 = vpop.permute.xlu0 %2846
      %2848 = vrot.lane.b32.xlu0 %v2806, 120
      %v2849 = vpop.permute.xlu0 %2848
      %2850 = vrot.lane.b32.xlu0 %v2807, 120
      %v2851 = vpop.permute.xlu0 %2850
      %2852 = vrot.lane.b32.xlu0 %v2808, 120
      %v2853 = vpop.permute.xlu0 %2852
      %2854 = vrot.lane.b32.xlu0 %v2809, 120
      %v2855 = vpop.permute.xlu0 %2854
      %2856 = vrot.lane.b32.xlu0 %v2810, 120
      %v2857 = vpop.permute.xlu0 %2856
      %2858 = vrot.lane.b32.xlu0 %v2811, 120
      %v2859 = vpop.permute.xlu0 %2858
      %v2876 = vmul.f32 %v1743, %v2829
      %v2877 = vmul.f32 %v1744, %v2831
      %v2878 = vmul.f32 %v1745, %v2833
      %v2879 = vmul.f32 %v1746, %v2835
      %v2880 = vmul.f32 %v1747, %v2837
      %v2881 = vmul.f32 %v1748, %v2839
      %v2882 = vmul.f32 %v1749, %v2841
      %v2883 = vmul.f32 %v1750, %v2843
      %v2884 = vmul.f32 %v1751, %v2845
      %v2885 = vmul.f32 %v1752, %v2847
      %v2886 = vmul.f32 %v1753, %v2849
      %v2887 = vmul.f32 %v1754, %v2851
      %v2888 = vmul.f32 %v1755, %v2853
      %v2889 = vmul.f32 %v1756, %v2855
      %v2890 = vmul.f32 %v1757, %v2857
      %v2891 = vmul.f32 %v1758, %v2859
      %v2892 = vsel %vm1769, %v2876, 0.0
      %v2893 = vrot.slane %v2892, 4
      %v2894 = vadd.f32 %v2892, %v2893
      %v2895 = vrot.slane %v2894, 2
      %v2896 = vadd.f32 %v2894, %v2895
      %v2897 = vrot.slane %v2896, 1
      %v2898 = vadd.f32 %v2896, %v2897
      %v2899 = vsel %vm1769, %v2877, 0.0
      %v2900 = vrot.slane %v2899, 4
      %v2901 = vadd.f32 %v2899, %v2900
      %v2902 = vrot.slane %v2901, 2
      %v2903 = vadd.f32 %v2901, %v2902
      %v2904 = vrot.slane %v2903, 1
      %v2905 = vadd.f32 %v2903, %v2904
      %v2906 = vsel %vm1769, %v2878, 0.0
      %v2907 = vrot.slane %v2906, 4
      %v2908 = vadd.f32 %v2906, %v2907
      %v2909 = vrot.slane %v2908, 2
      %v2910 = vadd.f32 %v2908, %v2909
      %v2911 = vrot.slane %v2910, 1
      %v2912 = vadd.f32 %v2910, %v2911
      %v2913 = vsel %vm1769, %v2879, 0.0
      %v2914 = vrot.slane %v2913, 4
      %v2915 = vadd.f32 %v2913, %v2914
      %v2916 = vrot.slane %v2915, 2
      %v2917 = vadd.f32 %v2915, %v2916
      %v2918 = vrot.slane %v2917, 1
      %v2919 = vadd.f32 %v2917, %v2918
      %v2920 = vsel %vm1769, %v2880, 0.0
      %v2921 = vrot.slane %v2920, 4
      %v2922 = vadd.f32 %v2920, %v2921
      %v2923 = vrot.slane %v2922, 2
      %v2924 = vadd.f32 %v2922, %v2923
      %v2925 = vrot.slane %v2924, 1
      %v2926 = vadd.f32 %v2924, %v2925
      %v2927 = vsel %vm1769, %v2881, 0.0
      %v2928 = vrot.slane %v2927, 4
      %v2929 = vadd.f32 %v2927, %v2928
      %v2930 = vrot.slane %v2929, 2
      %v2931 = vadd.f32 %v2929, %v2930
      %v2932 = vrot.slane %v2931, 1
      %v2933 = vadd.f32 %v2931, %v2932
      %v2934 = vsel %vm1769, %v2882, 0.0
      %v2935 = vrot.slane %v2934, 4
      %v2936 = vadd.f32 %v2934, %v2935
      %v2937 = vrot.slane %v2936, 2
      %v2938 = vadd.f32 %v2936, %v2937
      %v2939 = vrot.slane %v2938, 1
      %v2940 = vadd.f32 %v2938, %v2939
      %v2941 = vsel %vm1769, %v2883, 0.0
      %v2942 = vrot.slane %v2941, 4
      %v2943 = vadd.f32 %v2941, %v2942
      %v2944 = vrot.slane %v2943, 2
      %v2945 = vadd.f32 %v2943, %v2944
      %v2946 = vrot.slane %v2945, 1
      %v2947 = vadd.f32 %v2945, %v2946
      %v2948 = vsel %vm1769, %v2884, 0.0
      %v2949 = vrot.slane %v2948, 4
      %v2950 = vadd.f32 %v2948, %v2949
      %v2951 = vrot.slane %v2950, 2
      %v2952 = vadd.f32 %v2950, %v2951
      %v2953 = vrot.slane %v2952, 1
      %v2954 = vadd.f32 %v2952, %v2953
      %v2955 = vsel %vm1769, %v2885, 0.0
      %v2956 = vrot.slane %v2955, 4
      %v2957 = vadd.f32 %v2955, %v2956
      %v2958 = vrot.slane %v2957, 2
      %v2959 = vadd.f32 %v2957, %v2958
      %v2960 = vrot.slane %v2959, 1
      %v2961 = vadd.f32 %v2959, %v2960
      %v2962 = vsel %vm1769, %v2886, 0.0
      %v2963 = vrot.slane %v2962, 4
      %v2964 = vadd.f32 %v2962, %v2963
      %v2965 = vrot.slane %v2964, 2
      %v2966 = vadd.f32 %v2964, %v2965
      %v2967 = vrot.slane %v2966, 1
      %v2968 = vadd.f32 %v2966, %v2967
      %v2969 = vsel %vm1769, %v2887, 0.0
      %v2970 = vrot.slane %v2969, 4
      %v2971 = vadd.f32 %v2969, %v2970
      %v2972 = vrot.slane %v2971, 2
      %v2973 = vadd.f32 %v2971, %v2972
      %v2974 = vrot.slane %v2973, 1
      %v2975 = vadd.f32 %v2973, %v2974
      %v2976 = vsel %vm1769, %v2888, 0.0
      %v2977 = vrot.slane %v2976, 4
      %v2978 = vadd.f32 %v2976, %v2977
      %v2979 = vrot.slane %v2978, 2
      %v2980 = vadd.f32 %v2978, %v2979
      %v2981 = vrot.slane %v2980, 1
      %v2982 = vadd.f32 %v2980, %v2981
      %v2983 = vsel %vm1769, %v2889, 0.0
      %v2984 = vrot.slane %v2983, 4
      %v2985 = vadd.f32 %v2983, %v2984
      %v2986 = vrot.slane %v2985, 2
      %v2987 = vadd.f32 %v2985, %v2986
      %v2988 = vrot.slane %v2987, 1
      %v2989 = vadd.f32 %v2987, %v2988
      %v2990 = vsel %vm1769, %v2890, 0.0
      %v2991 = vrot.slane %v2990, 4
      %v2992 = vadd.f32 %v2990, %v2991
      %v2993 = vrot.slane %v2992, 2
      %v2994 = vadd.f32 %v2992, %v2993
      %v2995 = vrot.slane %v2994, 1
      %v2996 = vadd.f32 %v2994, %v2995
      %v2997 = vsel %vm1769, %v2891, 0.0
      %v2998 = vrot.slane %v2997, 4
      %v2999 = vadd.f32 %v2997, %v2998
      %v3000 = vrot.slane %v2999, 2
      %v3001 = vadd.f32 %v2999, %v3000
      %v3002 = vrot.slane %v3001, 1
      %v3003 = vadd.f32 %v3001, %v3002
      %v3004 = vpack.c.bf16 %v2401, %v2401
      %v3005 = vpack.c.bf16 %v2408, %v2408
      %v3006 = vpack.c.bf16 %v2415, %v2415
      %v3007 = vpack.c.bf16 %v2422, %v2422
      %v3008 = vpack.c.bf16 %v2429, %v2429
      %v3009 = vpack.c.bf16 %v2436, %v2436
      %v3010 = vpack.c.bf16 %v2443, %v2443
      %v3011 = vpack.c.bf16 %v2450, %v2450
      %v3012 = vpack.c.bf16 %v2457, %v2457
      %v3013 = vpack.c.bf16 %v2464, %v2464
      %v3014 = vpack.c.bf16 %v2471, %v2471
      %v3015 = vpack.c.bf16 %v2478, %v2478
      %v3016 = vpack.c.bf16 %v2485, %v2485
      %v3017 = vpack.c.bf16 %v2492, %v2492
      %v3018 = vpack.c.bf16 %v2499, %v2499
      %v3019 = vpack.c.bf16 %v2506, %v2506
      %v3020 = vld [vmem:[%s10] sm:$0xf]
      %v3021 = vpack.c.bf16 %v2898, %v2898
      %v3022 = vpack.c.bf16 %v2905, %v2905
      %v3023 = vpack.c.bf16 %v2912, %v2912
      %v3024 = vpack.c.bf16 %v2919, %v2919
      %v3025 = vpack.c.bf16 %v2926, %v2926
      %v3026 = vpack.c.bf16 %v2933, %v2933
      %v3027 = vpack.c.bf16 %v2940, %v2940
      %v3028 = vpack.c.bf16 %v2947, %v2947
      %v3029 = vpack.c.bf16 %v2954, %v2954
      %v3030 = vpack.c.bf16 %v2961, %v2961
      %v3031 = vpack.c.bf16 %v2968, %v2968
      %v3032 = vpack.c.bf16 %v2975, %v2975
      %v3033 = vpack.c.bf16 %v2982, %v2982
      %v3034 = vpack.c.bf16 %v2989, %v2989
      %v3035 = vpack.c.bf16 %v2996, %v2996
      %v3036 = vpack.c.bf16 %v3003, %v3003
      %v3037 = vld [vmem:[%s11] sm:$0xf]
      %v3054 = vunpack.c.l.b16 %v3021
      %v3055 = vunpack.c.l.b16 %v3022
      %v3056 = vunpack.c.l.b16 %v3023
      %v3057 = vunpack.c.l.b16 %v3024
      %v3058 = vunpack.c.l.b16 %v3025
      %v3059 = vunpack.c.l.b16 %v3026
      %v3060 = vunpack.c.l.b16 %v3027
      %v3061 = vunpack.c.l.b16 %v3028
      %v3062 = vunpack.c.l.b16 %v3029
      %v3063 = vunpack.c.l.b16 %v3030
      %v3064 = vunpack.c.l.b16 %v3031
      %v3065 = vunpack.c.l.b16 %v3032
      %v3066 = vunpack.c.l.b16 %v3033
      %v3067 = vunpack.c.l.b16 %v3034
      %v3068 = vunpack.c.l.b16 %v3035
      %v3069 = vunpack.c.l.b16 %v3036
      %vm3070 = vcmask 1041409
      %v3071 = vsel %vm3070, %v3055, %v3054
      %vm3072 = vcmask 1042434
      %v3073 = vsel %vm3072, %v3056, %v3071
      %vm3074 = vcmask 1043459
      %v3075 = vsel %vm3074, %v3057, %v3073
      %vm3076 = vcmask 1044484
      %v3077 = vsel %vm3076, %v3058, %v3075
      %vm3078 = vcmask 1045509
      %v3079 = vsel %vm3078, %v3059, %v3077
      %vm3080 = vcmask 1046534
      %v3081 = vsel %vm3080, %v3060, %v3079
      %vm3082 = vcmask 1047559
      %v3083 = vsel %vm3082, %v3061, %v3081
      %v3084 = vsel %vm3070, %v3063, %v3062
      %v3085 = vsel %vm3072, %v3064, %v3084
      %v3086 = vsel %vm3074, %v3065, %v3085
      %v3087 = vsel %vm3076, %v3066, %v3086
      %v3088 = vsel %vm3078, %v3067, %v3087
      %v3089 = vsel %vm3080, %v3068, %v3088
      %v3090 = vsel %vm3082, %v3069, %v3089
      %v3091 = vpack.c.b16 %v3090, %v3083
      %v3093 = vsel %vm1769, %v3091, 0
      %v3096 = vsel %vm1794, %v3037, 0
      %3098 = vmatprep.subr.bf16.mxu0 0
      %3099 = vmatpush1.bf16.msra.mxu0 0
      %3100 = vmatprep.subr.bf16.mxu0 0
      %3101 = vmatpush1.bf16.msra.mxu0 0
      %3102 = vmatprep.subr.bf16.mxu0 0
      %3103 = vmatpush1.bf16.msra.mxu0 0
      %3104 = vmatprep.subr.bf16.mxu0 0
      %3105 = vmatpush1.bf16.msra.mxu0 0
      %3106 = vmatprep.subr.bf16.mxu0 0
      %3107 = vmatpush1.bf16.msra.mxu0 0
      %3108 = vmatprep.subr.bf16.mxu0 0
      %3109 = vmatpush1.bf16.msra.mxu0 0
      %3110 = vmatprep.subr.bf16.mxu0 0
      %3111 = vmatpush1.bf16.msra.mxu0 0
      %3112 = vmatprep.subr.bf16.mxu0 0
      %3113 = vmatpush1.bf16.msra.mxu0 %v3096
      %3114 = vmatprep.subr.bf16.mxu0 0
      %3115 = vmatpush2.bf16.msra.mxu0 0
      %3116 = vmatprep.subr.bf16.mxu0 0
      %3117 = vmatpush2.bf16.msra.mxu0 0
      %3118 = vmatprep.subr.bf16.mxu0 0
      %3119 = vmatpush2.bf16.msra.mxu0 0
      %3120 = vmatprep.subr.bf16.mxu0 0
      %3121 = vmatpush2.bf16.msra.mxu0 0
      %3122 = vmatprep.subr.bf16.mxu0 0
      %3123 = vmatpush2.bf16.msra.mxu0 0
      %3124 = vmatprep.subr.bf16.mxu0 0
      %3125 = vmatpush2.bf16.msra.mxu0 0
      %3126 = vmatprep.subr.bf16.mxu0 0
      %3127 = vmatpush2.bf16.msra.mxu0 0
      %3128 = vmatprep.subr.bf16.mxu0 0
      %3129 = vmatpush2.bf16.msra.mxu0 0
      %3130 = vmatprep.mubr.bf16.mxu0 0
      %3131 = vmatmul.mubr.bf16.gmra.mxu0 %v3093
      %v3132 = vpop.f32.mrf.mxu0
      %v3133 = vadd.f32 0.0, %v3132
      %v3134 = vpop.f32.mrf.mxu0
      %v3135 = vpop.f32.mrf.mxu0
      %v3136 = vadd.f32 0.0, %v3135
      %v3137 = vpop.f32.mrf.mxu0
      %3138 = vdwg.mxu0
      %v3155 = vunpack.c.l.b16 %v3004
      %v3156 = vunpack.c.l.b16 %v3005
      %v3157 = vunpack.c.l.b16 %v3006
      %v3158 = vunpack.c.l.b16 %v3007
      %v3159 = vunpack.c.l.b16 %v3008
      %v3160 = vunpack.c.l.b16 %v3009
      %v3161 = vunpack.c.l.b16 %v3010
      %v3162 = vunpack.c.l.b16 %v3011
      %v3163 = vunpack.c.l.b16 %v3012
      %v3164 = vunpack.c.l.b16 %v3013
      %v3165 = vunpack.c.l.b16 %v3014
      %v3166 = vunpack.c.l.b16 %v3015
      %v3167 = vunpack.c.l.b16 %v3016
      %v3168 = vunpack.c.l.b16 %v3017
      %v3169 = vunpack.c.l.b16 %v3018
      %v3170 = vunpack.c.l.b16 %v3019
      %v3171 = vsel %vm3070, %v3156, %v3155
      %v3172 = vsel %vm3072, %v3157, %v3171
      %v3173 = vsel %vm3074, %v3158, %v3172
      %v3174 = vsel %vm3076, %v3159, %v3173
      %v3175 = vsel %vm3078, %v3160, %v3174
      %v3176 = vsel %vm3080, %v3161, %v3175
      %v3177 = vsel %vm3082, %v3162, %v3176
      %v3178 = vsel %vm3070, %v3164, %v3163
      %v3179 = vsel %vm3072, %v3165, %v3178
      %v3180 = vsel %vm3074, %v3166, %v3179
      %v3181 = vsel %vm3076, %v3167, %v3180
      %v3182 = vsel %vm3078, %v3168, %v3181
      %v3183 = vsel %vm3080, %v3169, %v3182
      %v3184 = vsel %vm3082, %v3170, %v3183
      %v3185 = vpack.c.b16 %v3184, %v3177
      %v3187 = vsel %vm1769, %v3185, 0
      %v3190 = vsel %vm1794, %v3020, 0
      %3192 = vmatprep.subr.bf16.mxu0 0
      %3193 = vmatpush1.bf16.msra.mxu0 0
      %3194 = vmatprep.subr.bf16.mxu0 0
      %3195 = vmatpush1.bf16.msra.mxu0 0
      %3196 = vmatprep.subr.bf16.mxu0 0
      %3197 = vmatpush1.bf16.msra.mxu0 0
      %3198 = vmatprep.subr.bf16.mxu0 0
      %3199 = vmatpush1.bf16.msra.mxu0 0
      %3200 = vmatprep.subr.bf16.mxu0 0
      %3201 = vmatpush1.bf16.msra.mxu0 0
      %3202 = vmatprep.subr.bf16.mxu0 0
      %3203 = vmatpush1.bf16.msra.mxu0 0
      %3204 = vmatprep.subr.bf16.mxu0 0
      %3205 = vmatpush1.bf16.msra.mxu0 0
      %3206 = vmatprep.subr.bf16.mxu0 0
      %3207 = vmatpush1.bf16.msra.mxu0 %v3190
      %3208 = vmatprep.subr.bf16.mxu0 0
      %3209 = vmatpush2.bf16.msra.mxu0 0
      %3210 = vmatprep.subr.bf16.mxu0 0
      %3211 = vmatpush2.bf16.msra.mxu0 0
      %3212 = vmatprep.subr.bf16.mxu0 0
      %3213 = vmatpush2.bf16.msra.mxu0 0
      %3214 = vmatprep.subr.bf16.mxu0 0
      %3215 = vmatpush2.bf16.msra.mxu0 0
      %3216 = vmatprep.subr.bf16.mxu0 0
      %3217 = vmatpush2.bf16.msra.mxu0 0
      %3218 = vmatprep.subr.bf16.mxu0 0
      %3219 = vmatpush2.bf16.msra.mxu0 0
      %3220 = vmatprep.subr.bf16.mxu0 0
      %3221 = vmatpush2.bf16.msra.mxu0 0
      %3222 = vmatprep.subr.bf16.mxu0 0
      %3223 = vmatpush2.bf16.msra.mxu0 0
      %3224 = vmatprep.mubr.bf16.mxu0 0
      %3225 = vmatmul.mubr.bf16.gmra.mxu0 %v3187
      %v3226 = vpop.f32.mrf.mxu0
      %v3227 = vadd.f32 %v3133, %v3226
      %v3228 = vpop.f32.mrf.mxu0
      %v3229 = vpop.f32.mrf.mxu0
      %v3230 = vadd.f32 %v3136, %v3229
      %v3231 = vpop.f32.mrf.mxu0
      %3232 = vdwg.mxu0
      %v3233 = vld [vmem:[%s12] sm:$0x1]
      %v3235 = vlaneseq
      %v3236 = vshrl.u32 %v3235, 7
      %v3237 = vsub.s32 0, %v3236
      %v3238 = vrot.slane %v3233, %v3237
      %v3240 = vadd.f32 %v3227, %v3238
      %v3241 = vadd.f32 %v3230, %v3238
      %v3242 = vmax.f32 %v3240, 0.0
      %v3243 = vmax.f32 %v3241, 0.0
      %v3244 = vpack.c.bf16 %v3243, %v3242
      %v3246 = vunpack.c.l.b16 %v3244
      %v3247 = vunpack.c.h.b16 %v3244
      %v3248 = vpack.c.b16 %v3246, %v3246
      %v3249 = vpack.c.b16 %v3247, %v3247
      %vm3252 = vcmask 60416
      %3253 = vst.msk [vmem:[%s575] sm:$0xf] %vm3252, %v3248
      %3254 = vst.msk [vmem:[%s575 + $0x4] sm:$0xf] %vm3252, %v3249
      %v3255 = vld [vmem:[%s13] sm:$0xf]
      %v3256 = vld [vmem:[%s14] sm:$0x1]
      %v3258 = vlaneseq
      %v3259 = vshrl.u32 %v3258, 7
      %v3260 = vsub.s32 0, %v3259
      %v3261 = vrot.slane %v3256, %v3260
      %v3264 = vsel %vm1794, %v3255, 0
      %3266 = vmatprep.subr.bf16.mxu0 0
      %3267 = vmatpush1.bf16.msra.mxu0 0
      %3268 = vmatprep.subr.bf16.mxu0 0
      %3269 = vmatpush1.bf16.msra.mxu0 0
      %3270 = vmatprep.subr.bf16.mxu0 0
      %3271 = vmatpush1.bf16.msra.mxu0 0
      %3272 = vmatprep.subr.bf16.mxu0 0
      %3273 = vmatpush1.bf16.msra.mxu0 0
      %3274 = vmatprep.subr.bf16.mxu0 0
      %3275 = vmatpush1.bf16.msra.mxu0 0
      %3276 = vmatprep.subr.bf16.mxu0 0
      %3277 = vmatpush1.bf16.msra.mxu0 0
      %3278 = vmatprep.subr.bf16.mxu0 0
      %3279 = vmatpush1.bf16.msra.mxu0 0
      %3280 = vmatprep.subr.bf16.mxu0 0
      %3281 = vmatpush1.bf16.msra.mxu0 %v3264
      %3282 = vmatprep.subr.bf16.mxu0 0
      %3283 = vmatpush2.bf16.msra.mxu0 0
      %3284 = vmatprep.subr.bf16.mxu0 0
      %3285 = vmatpush2.bf16.msra.mxu0 0
      %3286 = vmatprep.subr.bf16.mxu0 0
      %3287 = vmatpush2.bf16.msra.mxu0 0
      %3288 = vmatprep.subr.bf16.mxu0 0
      %3289 = vmatpush2.bf16.msra.mxu0 0
      %3290 = vmatprep.subr.bf16.mxu0 0
      %3291 = vmatpush2.bf16.msra.mxu0 0
      %3292 = vmatprep.subr.bf16.mxu0 0
      %3293 = vmatpush2.bf16.msra.mxu0 0
      %3294 = vmatprep.subr.bf16.mxu0 0
      %3295 = vmatpush2.bf16.msra.mxu0 0
      %3296 = vmatprep.subr.bf16.mxu0 0
      %3297 = vmatpush2.bf16.msra.mxu0 0
      %3298 = vmatprep.mubr.bf16.mxu0 0
      %3299 = vmatmul.mubr.bf16.gmra.mxu0 %v1771
      %v3300 = vpop.f32.mrf.mxu0
      %v3301 = vadd.f32 %v3261, %v3300
      %v3302 = vpop.f32.mrf.mxu0
      %v3303 = vpop.f32.mrf.mxu0
      %v3304 = vadd.f32 %v3261, %v3303
      %v3305 = vpop.f32.mrf.mxu0
      %3306 = vmatprep.mubr.bf16.mxu0 0
      %3307 = vmatmul.mubr.bf16.gmra.mxu0 %v1774
      %v3308 = vpop.f32.mrf.mxu0
      %v3309 = vadd.f32 %v3261, %v3308
      %v3310 = vpop.f32.mrf.mxu0
      %v3311 = vpop.f32.mrf.mxu0
      %v3312 = vadd.f32 %v3261, %v3311
      %v3313 = vpop.f32.mrf.mxu0
      %3314 = vmatprep.mubr.bf16.mxu0 0
      %3315 = vmatmul.mubr.bf16.gmra.mxu0 %v1777
      %v3316 = vpop.f32.mrf.mxu0
      %v3317 = vadd.f32 %v3261, %v3316
      %v3318 = vpop.f32.mrf.mxu0
      %v3319 = vpop.f32.mrf.mxu0
      %v3320 = vadd.f32 %v3261, %v3319
      %v3321 = vpop.f32.mrf.mxu0
      %3322 = vmatprep.mubr.bf16.mxu0 0
      %3323 = vmatmul.mubr.bf16.gmra.mxu0 %v1780
      %v3324 = vpop.f32.mrf.mxu0
      %v3325 = vadd.f32 %v3261, %v3324
      %v3326 = vpop.f32.mrf.mxu0
      %v3327 = vpop.f32.mrf.mxu0
      %v3328 = vadd.f32 %v3261, %v3327
      %v3329 = vpop.f32.mrf.mxu0
      %3330 = vmatprep.mubr.bf16.mxu0 0
      %3331 = vmatmul.mubr.bf16.gmra.mxu0 %v1783
      %v3332 = vpop.f32.mrf.mxu0
      %v3333 = vadd.f32 %v3261, %v3332
      %v3334 = vpop.f32.mrf.mxu0
      %v3335 = vpop.f32.mrf.mxu0
      %v3336 = vadd.f32 %v3261, %v3335
      %v3337 = vpop.f32.mrf.mxu0
      %3338 = vmatprep.mubr.bf16.mxu0 0
      %3339 = vmatmul.mubr.bf16.gmra.mxu0 %v1786
      %v3340 = vpop.f32.mrf.mxu0
      %v3341 = vadd.f32 %v3261, %v3340
      %v3342 = vpop.f32.mrf.mxu0
      %v3343 = vpop.f32.mrf.mxu0
      %v3344 = vadd.f32 %v3261, %v3343
      %v3345 = vpop.f32.mrf.mxu0
      %3346 = vmatprep.mubr.bf16.mxu0 0
      %3347 = vmatmul.mubr.bf16.gmra.mxu0 %v1789
      %v3348 = vpop.f32.mrf.mxu0
      %v3349 = vadd.f32 %v3261, %v3348
      %v3350 = vpop.f32.mrf.mxu0
      %v3351 = vpop.f32.mrf.mxu0
      %v3352 = vadd.f32 %v3261, %v3351
      %v3353 = vpop.f32.mrf.mxu0
      %3354 = vmatprep.mubr.bf16.mxu0 0
      %3355 = vmatmul.mubr.bf16.gmra.mxu0 %v1792
      %v3356 = vpop.f32.mrf.mxu0
      %v3357 = vadd.f32 %v3261, %v3356
      %v3358 = vpop.f32.mrf.mxu0
      %v3359 = vpop.f32.mrf.mxu0
      %v3360 = vadd.f32 %v3261, %v3359
      %v3361 = vpop.f32.mrf.mxu0
      %3362 = vdwg.mxu0
      %v3363 = vmax.f32 %v3301, 0.0
      %v3364 = vmax.f32 %v3304, 0.0
      %v3365 = vmax.f32 %v3309, 0.0
      %v3366 = vmax.f32 %v3312, 0.0
      %v3367 = vmax.f32 %v3317, 0.0
      %v3368 = vmax.f32 %v3320, 0.0
      %v3369 = vmax.f32 %v3325, 0.0
      %v3370 = vmax.f32 %v3328, 0.0
      %v3371 = vmax.f32 %v3333, 0.0
      %v3372 = vmax.f32 %v3336, 0.0
      %v3373 = vmax.f32 %v3341, 0.0
      %v3374 = vmax.f32 %v3344, 0.0
      %v3375 = vmax.f32 %v3349, 0.0
      %v3376 = vmax.f32 %v3352, 0.0
      %v3377 = vmax.f32 %v3357, 0.0
      %v3378 = vmax.f32 %v3360, 0.0
      %v3379 = vpack.c.bf16 %v3363, %v3363
      %v3380 = vpack.c.bf16 %v3364, %v3364
      %v3381 = vpack.c.bf16 %v3365, %v3365
      %v3382 = vpack.c.bf16 %v3366, %v3366
      %v3383 = vpack.c.bf16 %v3367, %v3367
      %v3384 = vpack.c.bf16 %v3368, %v3368
      %v3385 = vpack.c.bf16 %v3369, %v3369
      %v3386 = vpack.c.bf16 %v3370, %v3370
      %v3387 = vpack.c.bf16 %v3371, %v3371
      %v3388 = vpack.c.bf16 %v3372, %v3372
      %v3389 = vpack.c.bf16 %v3373, %v3373
      %v3390 = vpack.c.bf16 %v3374, %v3374
      %v3391 = vpack.c.bf16 %v3375, %v3375
      %v3392 = vpack.c.bf16 %v3376, %v3376
      %v3393 = vpack.c.bf16 %v3377, %v3377
      %v3394 = vpack.c.bf16 %v3378, %v3378
      %3395 = vst.msk [vmem:[%s581] sm:$0xf] %vm3252, %v3379
      %3396 = vst.msk [vmem:[%s581 + $0x4] sm:$0xf] %vm3252, %v3380
      %3397 = vst.msk [vmem:[%s581 + $0x8] sm:$0xf] %vm3252, %v3381
      %3398 = vst.msk [vmem:[%s581 + $0xc] sm:$0xf] %vm3252, %v3382
      %3399 = vst.msk [vmem:[%s581 + $0x10] sm:$0xf] %vm3252, %v3383
      %3400 = vst.msk [vmem:[%s581 + $0x14] sm:$0xf] %vm3252, %v3384
      %3401 = vst.msk [vmem:[%s581 + $0x18] sm:$0xf] %vm3252, %v3385
      %3402 = vst.msk [vmem:[%s581 + $0x1c] sm:$0xf] %vm3252, %v3386
      %3403 = vst.msk [vmem:[%s581 + $0x20] sm:$0xf] %vm3252, %v3387
      %3404 = vst.msk [vmem:[%s581 + $0x24] sm:$0xf] %vm3252, %v3388
      %3405 = vst.msk [vmem:[%s581 + $0x28] sm:$0xf] %vm3252, %v3389
      %3406 = vst.msk [vmem:[%s581 + $0x2c] sm:$0xf] %vm3252, %v3390
      %3407 = vst.msk [vmem:[%s581 + $0x30] sm:$0xf] %vm3252, %v3391
      %3408 = vst.msk [vmem:[%s581 + $0x34] sm:$0xf] %vm3252, %v3392
      %3409 = vst.msk [vmem:[%s581 + $0x38] sm:$0xf] %vm3252, %v3393
      %3410 = vst.msk [vmem:[%s581 + $0x3c] sm:$0xf] %vm3252, %v3394
      %s3411 = smul.u32 2, %s28
      %p3412 = scmp.lt.s32.totalorder %s3411, 3
      %s3413 = scalar_select %p3412, %s3411, 3
      %s3414 = smul.addr %s3413, 4
      %s3415 = scalar_lea.vmem %s15, %s3414
      %s3416 = smul.u32 16, %s28
      %p3417 = scmp.lt.s32.totalorder %s3416, 31
      %s3418 = scalar_select %p3417, %s3416, 31
      %s3419 = smul.addr %s3418, 4
      %s3420 = scalar_lea.vmem %s16, %s3419
      // Predicated region
      $region81: #{dilated_res_block.4} parent=79 // pred_check
        %p3421 = pneg %p376
      $region82: #{dilated_res_block.4} parent=79 // pred_check_branch
        %3423 = sbr.rel (%p3421) target = $region84
      $region83: #{dilated_res_block.4} parent=79 // pred_region
        %s3424 = smul.u32 2, %s28
      $region84: #{dilated_res_block.4} parent=79 // pred_fallthru
        _
      // Predicated region
      $region85: #{dilated_res_block.4} parent=79 // pred_check
        %p3425 = pneg %p402
      $region86: #{dilated_res_block.4} parent=79 // pred_check_branch
        %3427 = sbr.rel (%p3425) target = $region88
      $region87: #{dilated_res_block.4} parent=79 // pred_region
        %s3428 = smul.u32 16, %s28
      $region88: #{dilated_res_block.4} parent=79 // pred_fallthru
        _
    $region80: #{dilated_res_block.4} parent=5 // pred_fallthru
      _
    %p3429 = scmp.le.s32.totalorder 2, %s23
    // Predicated region
    $region89: #{dilated_res_block.4} parent=5 // pred_check
      %p3430 = pneg %p3429
    $region90: #{dilated_res_block.4} parent=5 // pred_check_branch
      %3432 = sbr.rel (%p3430) target = $region92
    $region91: #{dilated_res_block.4} parent=5 // pred_region
      %s3433 = ssub.s32 %s23, 2
      // Predicated region
      $region93: #{dilated_res_block.4} parent=91 // pred_check
        %p3434 = pneg %p382
      $region94: #{dilated_res_block.4} parent=91 // pred_check_branch
        %3436 = sbr.rel (%p3434) target = $region96
      $region95: #{dilated_res_block.4} parent=91 // pred_region
        %s3437 = smul.u32 2, %s29
        %p3438 = scmp.lt.s32.totalorder %s3437, 3
        %s3439 = scalar_select %p3438, %s3437, 3
        %s3440 = smul.addr %s3439, 4
        %s3441 = scalar_lea.vmem %s15, %s3440
      $region96: #{dilated_res_block.4} parent=91 // pred_fallthru
        _
      // Predicated region
      $region97: #{dilated_res_block.4} parent=91 // pred_check
        %p3442 = pneg %p408
      $region98: #{dilated_res_block.4} parent=91 // pred_check_branch
        %3444 = sbr.rel (%p3442) target = $region100
      $region99: #{dilated_res_block.4} parent=91 // pred_region
        %s3445 = smul.u32 16, %s29
        %p3446 = scmp.lt.s32.totalorder %s3445, 31
        %s3447 = scalar_select %p3446, %s3445, 31
        %s3448 = smul.addr %s3447, 4
        %s3449 = scalar_lea.vmem %s16, %s3448
      $region100: #{dilated_res_block.4} parent=91 // pred_fallthru
        _
    $region92: #{dilated_res_block.4} parent=5 // pred_fallthru
      _
  $region6: #{dilated_res_block.4} parent=0 // loop_footer
    %s27 = sadd.s32 1, %s23
  $region7: #{dilated_res_block.4} parent=0 // loop_footer_branch
    %22 = sbr.rel target = $region3
  $region8: #{dilated_res_block.4} parent=0 // loop_exit
    _

// kernel: dilated_res_block.5
$region0: #{dilated_res_block.5}
  #allocation0 [shape = 'u32[]', space=smem, size = 0x4, offset = 0x4, fixed_abs, tag = 'smem constant byte address 0x4 - core index']
  #allocation1 [shape = 'u32[144,128]{1,0:T(1,128)}', space=vmem, size = 0x12000, scoped, tag = 'internal scratch']
  %s0 = inlined_call_operand.vmem [shape: bf16[32,8,8], index: 0, kind: input, shape index: {}]
  %s1 = inlined_call_operand.vmem [shape: bf16[32,8,8], index: 1, kind: input, shape index: {}]
  %s2 = inlined_call_operand.vmem [shape: f32[32,8], index: 2, kind: input, shape index: {}]
  %s3 = inlined_call_operand.vmem [shape: bf16[8,16], index: 3, kind: input, shape index: {}]
  %s4 = inlined_call_operand.vmem [shape: bf16[8,16], index: 4, kind: input, shape index: {}]
  %s5 = inlined_call_operand.vmem [shape: bf16[8,16], index: 5, kind: input, shape index: {}]
  %s6 = inlined_call_operand.vmem [shape: bf16[8,16], index: 6, kind: input, shape index: {}]
  %s7 = inlined_call_operand.vmem [shape: f32[1,16], index: 7, kind: input, shape index: {}]
  %s8 = inlined_call_operand.vmem [shape: bf16[16,32], index: 8, kind: input, shape index: {}]
  %s9 = inlined_call_operand.vmem [shape: f32[1,32], index: 9, kind: input, shape index: {}]
  %s10 = inlined_call_operand.vmem [shape: bf16[8,32], index: 10, kind: input, shape index: {}]
  %s11 = inlined_call_operand.vmem [shape: f32[1,32], index: 11, kind: input, shape index: {}]
  %s12 = inlined_call_operand.hbm [shape: f32[32,32], index: 12, kind: output, shape index: {}]
  %s13 = sld [smem:[#allocation0]]
  $region81: #{dilated_res_block.5} parent=0
    _
  %s15 = ssub.s32 1, %s13
  %s16 = scalar_select 0, %s15, %s13
  $region1: #{dilated_res_block.5} parent=0
    #allocation2 [shape = 'u8[16384]{0}', space=vmem, size = 0x4000, scoped, tag = 'output window, operand 0']
    #allocation3 [shape = 's32[2]{0}', space=sflag, size = 0x8, scoped, tag = 'scoped memory for dilated_res_block.5']
    %17 = vsyncpa [#allocation3], 0
    %s18 = scalar_lea.sflag [#allocation3], 1
    %19 = vsyncpa %s18, 0
    loop: start=0, step=1, limit=4
    $region2: #{dilated_res_block.5} parent=1 // loop_pre_header
      _
    $region3: #{dilated_res_block.5} parent=1 // loop_header
      %s21 = sphi 0, %s25
      %p22 = scmp.ge.s32.totalorder %s21, 4
      %s31 = sphi 0, %s33
      %s34 = sphi 0, %s31
      %s35 = sphi 0, %s34
      %s51 = sphi 0, %s35
      %s57 = sphi 0, %s59
      %s60 = sphi 0, %s57
      %s61 = sphi 0, %s60
      %s77 = sphi 0, %s61
      %s83 = sphi 0, %s85
      %s86 = sphi 0, %s83
      %s87 = sphi 0, %s86
      %s103 = sphi 0, %s87
      %s107 = sphi 0, %s107
      %s109 = sphi 0, %s107
      %s110 = sphi 0, %s109
      %s124 = sphi 0, %s110
      %s128 = sphi 0, %s128
      %s130 = sphi 0, %s128
      %s131 = sphi 0, %s130
      %s145 = sphi 0, %s131
      %s149 = sphi 0, %s149
      %s151 = sphi 0, %s149
      %s152 = sphi 0, %s151
      %s166 = sphi 0, %s152
      %s170 = sphi 0, %s170
      %s172 = sphi 0, %s170
      %s173 = sphi 0, %s172
      %s187 = sphi 0, %s173
      %s191 = sphi 0, %s191
      %s193 = sphi 0, %s191
      %s194 = sphi 0, %s193
      %s208 = sphi 0, %s194
      %s212 = sphi 0, %s212
      %s214 = sphi 0, %s212
      %s215 = sphi 0, %s214
      %s229 = sphi 0, %s215
      %s233 = sphi 0, %s233
      %s235 = sphi 0, %s233
      %s236 = sphi 0, %s235
      %s250 = sphi 0, %s236
      %s254 = sphi 0, %s254
      %s256 = sphi 0, %s254
      %s257 = sphi 0, %s256
      %s271 = sphi 0, %s257
      %s275 = sphi 0, %s275
      %s277 = sphi 0, %s275
      %s278 = sphi 0, %s277
      %s292 = sphi 0, %s278
      %s298 = sphi 0, %s300
      %s301 = sphi 0, %s298
      %s302 = sphi 0, %s301
      %s318 = sphi 0, %s302
    $region4: #{dilated_res_block.5} parent=1 // loop_header_branch
      %24 = sbr.rel (%p22) target = $region8
    $region5: #{dilated_res_block.5} parent=1 // loop_body
      %s26 = ssub.s32 %s21, 1
      %s27 = ssub.s32 %s21, 2
      %s28 = sadd.s32 %s21, 1
      %s29 = ssub.s32 %s21, %s28
      %p30 = scmp.eq.s32.totalorder %s29, 0
      %s32 = sadd.s32 %s31, 1
      %s33 = scalar_select %p30, %s31, %s32
      %p36 = pneg %p30
      %p37 = scmp.eq.s32.totalorder %s21, 1
      %p38 = por %p36, %p37
      %p39 = scmp.ne.s32.totalorder %s31, %s34
      %p40 = scmp.eq.s32.totalorder %s21, 0
      %p41 = por %p39, %p40
      %p42 = scmp.ne.s32.totalorder %s31, %s34
      %p43 = scmp.eq.s32.totalorder %s26, 1
      %p44 = por %p42, %p43
      %p45 = scmp.ne.s32.totalorder %s34, %s35
      %p46 = scmp.eq.s32.totalorder %s26, 0
      %p47 = por %p45, %p46
      %p48 = scmp.ne.s32.totalorder %s34, %s35
      %p49 = scmp.eq.s32.totalorder %s27, 1
      %p50 = por %p48, %p49
      %p52 = scmp.ne.s32.totalorder %s35, %s51
      %p53 = scmp.eq.s32.totalorder %s27, 0
      %p54 = por %p52, %p53
      %s55 = ssub.s32 %s21, %s28
      %p56 = scmp.eq.s32.totalorder %s55, 0
      %s58 = sadd.s32 %s57, 1
      %s59 = scalar_select %p56, %s57, %s58
      %p62 = pneg %p56
      %p63 = scmp.eq.s32.totalorder %s21, 1
      %p64 = por %p62, %p63
      %p65 = scmp.ne.s32.totalorder %s57, %s60
      %p66 = scmp.eq.s32.totalorder %s21, 0
      %p67 = por %p65, %p66
      %p68 = scmp.ne.s32.totalorder %s57, %s60
      %p69 = scmp.eq.s32.totalorder %s26, 1
      %p70 = por %p68, %p69
      %p71 = scmp.ne.s32.totalorder %s60, %s61
      %p72 = scmp.eq.s32.totalorder %s26, 0
      %p73 = por %p71, %p72
      %p74 = scmp.ne.s32.totalorder %s60, %s61
      %p75 = scmp.eq.s32.totalorder %s27, 1
      %p76 = por %p74, %p75
      %p78 = scmp.ne.s32.totalorder %s61, %s77
      %p79 = scmp.eq.s32.totalorder %s27, 0
      %p80 = por %p78, %p79
      %s81 = ssub.s32 %s21, %s28
      %p82 = scmp.eq.s32.totalorder %s81, 0
      %s84 = sadd.s32 %s83, 1
      %s85 = scalar_select %p82, %s83, %s84
      %p88 = pneg %p82
      %p89 = scmp.eq.s32.totalorder %s21, 1
      %p90 = por %p88, %p89
      %p91 = scmp.ne.s32.totalorder %s83, %s86
      %p92 = scmp.eq.s32.totalorder %s21, 0
      %p93 = por %p91, %p92
      %p94 = scmp.ne.s32.totalorder %s83, %s86
      %p95 = scmp.eq.s32.totalorder %s26, 1
      %p96 = por %p94, %p95
      %p97 = scmp.ne.s32.totalorder %s86, %s87
      %p98 = scmp.eq.s32.totalorder %s26, 0
      %p99 = por %p97, %p98
      %p100 = scmp.ne.s32.totalorder %s86, %s87
      %p101 = scmp.eq.s32.totalorder %s27, 1
      %p102 = por %p100, %p101
      %p104 = scmp.ne.s32.totalorder %s87, %s103
      %p105 = scmp.eq.s32.totalorder %s27, 0
      %p106 = por %p104, %p105
      %s108 = sadd.s32 %s107, 1
      %p111 = scmp.eq.s32.totalorder %s21, 1
      %p112 = scmp.ne.s32.totalorder %s107, %s109
      %p113 = scmp.eq.s32.totalorder %s21, 0
      %p114 = por %p112, %p113
      %p115 = scmp.ne.s32.totalorder %s107, %s109
      %p116 = scmp.eq.s32.totalorder %s26, 1
      %p117 = por %p115, %p116
      %p118 = scmp.ne.s32.totalorder %s109, %s110
      %p119 = scmp.eq.s32.totalorder %s26, 0
      %p120 = por %p118, %p119
      %p121 = scmp.ne.s32.totalorder %s109, %s110
      %p122 = scmp.eq.s32.totalorder %s27, 1
      %p123 = por %p121, %p122
      %p125 = scmp.ne.s32.totalorder %s110, %s124
      %p126 = scmp.eq.s32.totalorder %s27, 0
      %p127 = por %p125, %p126
      %s129 = sadd.s32 %s128, 1
      %p132 = scmp.eq.s32.totalorder %s21, 1
      %p133 = scmp.ne.s32.totalorder %s128, %s130
      %p134 = scmp.eq.s32.totalorder %s21, 0
      %p135 = por %p133, %p134
      %p136 = scmp.ne.s32.totalorder %s128, %s130
      %p137 = scmp.eq.s32.totalorder %s26, 1
      %p138 = por %p136, %p137
      %p139 = scmp.ne.s32.totalorder %s130, %s131
      %p140 = scmp.eq.s32.totalorder %s26, 0
      %p141 = por %p139, %p140
      %p142 = scmp.ne.s32.totalorder %s130, %s131
      %p143 = scmp.eq.s32.totalorder %s27, 1
      %p144 = por %p142, %p143
      %p146 = scmp.ne.s32.totalorder %s131, %s145
      %p147 = scmp.eq.s32.totalorder %s27, 0
      %p148 = por %p146, %p147
      %s150 = sadd.s32 %s149, 1
      %p153 = scmp.eq.s32.totalorder %s21, 1
      %p154 = scmp.ne.s32.totalorder %s149, %s151
      %p155 = scmp.eq.s32.totalorder %s21, 0
      %p156 = por %p154, %p155
      %p157 = scmp.ne.s32.totalorder %s149, %s151
      %p158 = scmp.eq.s32.totalorder %s26, 1
      %p159 = por %p157, %p158
      %p160 = scmp.ne.s32.totalorder %s151, %s152
      %p161 = scmp.eq.s32.totalorder %s26, 0
      %p162 = por %p160, %p161
      %p163 = scmp.ne.s32.totalorder %s151, %s152
      %p164 = scmp.eq.s32.totalorder %s27, 1
      %p165 = por %p163, %p164
      %p167 = scmp.ne.s32.totalorder %s152, %s166
      %p168 = scmp.eq.s32.totalorder %s27, 0
      %p169 = por %p167, %p168
      %s171 = sadd.s32 %s170, 1
      %p174 = scmp.eq.s32.totalorder %s21, 1
      %p175 = scmp.ne.s32.totalorder %s170, %s172
      %p176 = scmp.eq.s32.totalorder %s21, 0
      %p177 = por %p175, %p176
      %p178 = scmp.ne.s32.totalorder %s170, %s172
      %p179 = scmp.eq.s32.totalorder %s26, 1
      %p180 = por %p178, %p179
      %p181 = scmp.ne.s32.totalorder %s172, %s173
      %p182 = scmp.eq.s32.totalorder %s26, 0
      %p183 = por %p181, %p182
      %p184 = scmp.ne.s32.totalorder %s172, %s173
      %p185 = scmp.eq.s32.totalorder %s27, 1
      %p186 = por %p184, %p185
      %p188 = scmp.ne.s32.totalorder %s173, %s187
      %p189 = scmp.eq.s32.totalorder %s27, 0
      %p190 = por %p188, %p189
      %s192 = sadd.s32 %s191, 1
      %p195 = scmp.eq.s32.totalorder %s21, 1
      %p196 = scmp.ne.s32.totalorder %s191, %s193
      %p197 = scmp.eq.s32.totalorder %s21, 0
      %p198 = por %p196, %p197
      %p199 = scmp.ne.s32.totalorder %s191, %s193
      %p200 = scmp.eq.s32.totalorder %s26, 1
      %p201 = por %p199, %p200
      %p202 = scmp.ne.s32.totalorder %s193, %s194
      %p203 = scmp.eq.s32.totalorder %s26, 0
      %p204 = por %p202, %p203
      %p205 = scmp.ne.s32.totalorder %s193, %s194
      %p206 = scmp.eq.s32.totalorder %s27, 1
      %p207 = por %p205, %p206
      %p209 = scmp.ne.s32.totalorder %s194, %s208
      %p210 = scmp.eq.s32.totalorder %s27, 0
      %p211 = por %p209, %p210
      %s213 = sadd.s32 %s212, 1
      %p216 = scmp.eq.s32.totalorder %s21, 1
      %p217 = scmp.ne.s32.totalorder %s212, %s214
      %p218 = scmp.eq.s32.totalorder %s21, 0
      %p219 = por %p217, %p218
      %p220 = scmp.ne.s32.totalorder %s212, %s214
      %p221 = scmp.eq.s32.totalorder %s26, 1
      %p222 = por %p220, %p221
      %p223 = scmp.ne.s32.totalorder %s214, %s215
      %p224 = scmp.eq.s32.totalorder %s26, 0
      %p225 = por %p223, %p224
      %p226 = scmp.ne.s32.totalorder %s214, %s215
      %p227 = scmp.eq.s32.totalorder %s27, 1
      %p228 = por %p226, %p227
      %p230 = scmp.ne.s32.totalorder %s215, %s229
      %p231 = scmp.eq.s32.totalorder %s27, 0
      %p232 = por %p230, %p231
      %s234 = sadd.s32 %s233, 1
      %p237 = scmp.eq.s32.totalorder %s21, 1
      %p238 = scmp.ne.s32.totalorder %s233, %s235
      %p239 = scmp.eq.s32.totalorder %s21, 0
      %p240 = por %p238, %p239
      %p241 = scmp.ne.s32.totalorder %s233, %s235
      %p242 = scmp.eq.s32.totalorder %s26, 1
      %p243 = por %p241, %p242
      %p244 = scmp.ne.s32.totalorder %s235, %s236
      %p245 = scmp.eq.s32.totalorder %s26, 0
      %p246 = por %p244, %p245
      %p247 = scmp.ne.s32.totalorder %s235, %s236
      %p248 = scmp.eq.s32.totalorder %s27, 1
      %p249 = por %p247, %p248
      %p251 = scmp.ne.s32.totalorder %s236, %s250
      %p252 = scmp.eq.s32.totalorder %s27, 0
      %p253 = por %p251, %p252
      %s255 = sadd.s32 %s254, 1
      %p258 = scmp.eq.s32.totalorder %s21, 1
      %p259 = scmp.ne.s32.totalorder %s254, %s256
      %p260 = scmp.eq.s32.totalorder %s21, 0
      %p261 = por %p259, %p260
      %p262 = scmp.ne.s32.totalorder %s254, %s256
      %p263 = scmp.eq.s32.totalorder %s26, 1
      %p264 = por %p262, %p263
      %p265 = scmp.ne.s32.totalorder %s256, %s257
      %p266 = scmp.eq.s32.totalorder %s26, 0
      %p267 = por %p265, %p266
      %p268 = scmp.ne.s32.totalorder %s256, %s257
      %p269 = scmp.eq.s32.totalorder %s27, 1
      %p270 = por %p268, %p269
      %p272 = scmp.ne.s32.totalorder %s257, %s271
      %p273 = scmp.eq.s32.totalorder %s27, 0
      %p274 = por %p272, %p273
      %s276 = sadd.s32 %s275, 1
      %p279 = scmp.eq.s32.totalorder %s21, 1
      %p280 = scmp.ne.s32.totalorder %s275, %s277
      %p281 = scmp.eq.s32.totalorder %s21, 0
      %p282 = por %p280, %p281
      %p283 = scmp.ne.s32.totalorder %s275, %s277
      %p284 = scmp.eq.s32.totalorder %s26, 1
      %p285 = por %p283, %p284
      %p286 = scmp.ne.s32.totalorder %s277, %s278
      %p287 = scmp.eq.s32.totalorder %s26, 0
      %p288 = por %p286, %p287
      %p289 = scmp.ne.s32.totalorder %s277, %s278
      %p290 = scmp.eq.s32.totalorder %s27, 1
      %p291 = por %p289, %p290
      %p293 = scmp.ne.s32.totalorder %s278, %s292
      %p294 = scmp.eq.s32.totalorder %s27, 0
      %p295 = por %p293, %p294
      %s296 = ssub.s32 %s21, %s28
      %p297 = scmp.eq.s32.totalorder %s296, 0
      %s299 = sadd.s32 %s298, 1
      %s300 = scalar_select %p297, %s298, %s299
      %p303 = pneg %p297
      %p304 = scmp.eq.s32.totalorder %s21, 1
      %p305 = por %p303, %p304
      %p306 = scmp.ne.s32.totalorder %s298, %s301
      %p307 = scmp.eq.s32.totalorder %s21, 0
      %p308 = por %p306, %p307
      %p309 = scmp.ne.s32.totalorder %s298, %s301
      %p310 = scmp.eq.s32.totalorder %s26, 1
      %p311 = por %p309, %p310
      %p312 = scmp.ne.s32.totalorder %s301, %s302
      %p313 = scmp.eq.s32.totalorder %s26, 0
      %p314 = por %p312, %p313
      %p315 = scmp.ne.s32.totalorder %s301, %s302
      %p316 = scmp.eq.s32.totalorder %s27, 1
      %p317 = por %p315, %p316
      %p319 = scmp.ne.s32.totalorder %s302, %s318
      %p320 = scmp.eq.s32.totalorder %s27, 0
      %p321 = por %p319, %p320
      %p322 = scmp.le.s32.totalorder 1, %s21
      %p323 = scmp.lt.s32.totalorder %s21, 3
      %p324 = pnand %p322, %p323
      %p325 = pneg %p324
      // Predicated region
      $region9: #{dilated_res_block.5} parent=5 // pred_check
        _
      $region10: #{dilated_res_block.5} parent=5 // pred_check_branch
        %327 = sbr.rel (%p324) target = $region12
      $region11: #{dilated_res_block.5} parent=5 // pred_region
        %s328 = ssub.s32 %s21, 1
        // Predicated region
        $region13: #{dilated_res_block.5} parent=11 // pred_check
          %p329 = pneg %p120
        $region14: #{dilated_res_block.5} parent=11 // pred_check_branch
          %331 = sbr.rel (%p329) target = $region16
        $region15: #{dilated_res_block.5} parent=11 // pred_region
          _
        $region16: #{dilated_res_block.5} parent=11 // pred_fallthru
          _
        // Predicated region
        $region17: #{dilated_res_block.5} parent=11 // pred_check
          %p332 = pneg %p141
        $region18: #{dilated_res_block.5} parent=11 // pred_check_branch
          %334 = sbr.rel (%p332) target = $region20
        $region19: #{dilated_res_block.5} parent=11 // pred_region
          _
        $region20: #{dilated_res_block.5} parent=11 // pred_fallthru
          _
        // Predicated region
        $region21: #{dilated_res_block.5} parent=11 // pred_check
          %p335 = pneg %p162
        $region22: #{dilated_res_block.5} parent=11 // pred_check_branch
          %337 = sbr.rel (%p335) target = $region24
        $region23: #{dilated_res_block.5} parent=11 // pred_region
          _
        $region24: #{dilated_res_block.5} parent=11 // pred_fallthru
          _
        // Predicated region
        $region25: #{dilated_res_block.5} parent=11 // pred_check
          %p338 = pneg %p183
        $region26: #{dilated_res_block.5} parent=11 // pred_check_branch
          %340 = sbr.rel (%p338) target = $region28
        $region27: #{dilated_res_block.5} parent=11 // pred_region
          _
        $region28: #{dilated_res_block.5} parent=11 // pred_fallthru
          _
        // Predicated region
        $region29: #{dilated_res_block.5} parent=11 // pred_check
          %p341 = pneg %p204
        $region30: #{dilated_res_block.5} parent=11 // pred_check_branch
          %343 = sbr.rel (%p341) target = $region32
        $region31: #{dilated_res_block.5} parent=11 // pred_region
          _
        $region32: #{dilated_res_block.5} parent=11 // pred_fallthru
          _
        // Predicated region
        $region33: #{dilated_res_block.5} parent=11 // pred_check
          %p344 = pneg %p225
        $region34: #{dilated_res_block.5} parent=11 // pred_check_branch
          %346 = sbr.rel (%p344) target = $region36
        $region35: #{dilated_res_block.5} parent=11 // pred_region
          _
        $region36: #{dilated_res_block.5} parent=11 // pred_fallthru
          _
        // Predicated region
        $region37: #{dilated_res_block.5} parent=11 // pred_check
          %p347 = pneg %p246
        $region38: #{dilated_res_block.5} parent=11 // pred_check_branch
          %349 = sbr.rel (%p347) target = $region40
        $region39: #{dilated_res_block.5} parent=11 // pred_region
          _
        $region40: #{dilated_res_block.5} parent=11 // pred_fallthru
          _
        // Predicated region
        $region41: #{dilated_res_block.5} parent=11 // pred_check
          %p350 = pneg %p267
        $region42: #{dilated_res_block.5} parent=11 // pred_check_branch
          %352 = sbr.rel (%p350) target = $region44
        $region43: #{dilated_res_block.5} parent=11 // pred_region
          _
        $region44: #{dilated_res_block.5} parent=11 // pred_fallthru
          _
        // Predicated region
        $region45: #{dilated_res_block.5} parent=11 // pred_check
          %p353 = pneg %p288
        $region46: #{dilated_res_block.5} parent=11 // pred_check_branch
          %355 = sbr.rel (%p353) target = $region48
        $region47: #{dilated_res_block.5} parent=11 // pred_region
          _
        $region48: #{dilated_res_block.5} parent=11 // pred_fallthru
          _
      $region12: #{dilated_res_block.5} parent=5 // pred_fallthru
        _
      %p356 = scmp.lt.s32.totalorder %s21, 2
      // Predicated region
      $region49: #{dilated_res_block.5} parent=5 // pred_check
        %p357 = pneg %p356
      $region50: #{dilated_res_block.5} parent=5 // pred_check_branch
        %359 = sbr.rel (%p357) target = $region52
      $region51: #{dilated_res_block.5} parent=5 // pred_region
        // Predicated region
        $region53: #{dilated_res_block.5} parent=51 // pred_check
          %p360 = pneg %p41
        $region54: #{dilated_res_block.5} parent=51 // pred_check_branch
          %362 = sbr.rel (%p360) target = $region56
        $region55: #{dilated_res_block.5} parent=51 // pred_region
          %s363 = smul.u32 16, %s21
          %p364 = scmp.lt.s32.totalorder %s363, 31
          %s365 = scalar_select %p364, %s363, 31
          %s366 = smul.addr %s365, 4
          %s367 = scalar_lea.vmem %s0, %s366
          %s368 = smul.u32 16, %s21
        $region56: #{dilated_res_block.5} parent=51 // pred_fallthru
          _
        // Predicated region
        $region57: #{dilated_res_block.5} parent=51 // pred_check
          %p369 = pneg %p67
        $region58: #{dilated_res_block.5} parent=51 // pred_check_branch
          %371 = sbr.rel (%p369) target = $region60
        $region59: #{dilated_res_block.5} parent=51 // pred_region
          %s372 = smul.u32 16, %s21
          %p373 = scmp.lt.s32.totalorder %s372, 31
          %s374 = scalar_select %p373, %s372, 31
          %s375 = smul.addr %s374, 4
          %s376 = scalar_lea.vmem %s1, %s375
          %s377 = smul.u32 16, %s21
        $region60: #{dilated_res_block.5} parent=51 // pred_fallthru
          _
        // Predicated region
        $region61: #{dilated_res_block.5} parent=51 // pred_check
          %p378 = pneg %p93
        $region62: #{dilated_res_block.5} parent=51 // pred_check_branch
          %380 = sbr.rel (%p378) target = $region64
        $region63: #{dilated_res_block.5} parent=51 // pred_region
          %s381 = smul.u32 2, %s21
          %p382 = scmp.lt.s32.totalorder %s381, 3
          %s383 = scalar_select %p382, %s381, 3
          %s384 = smul.addr %s383, 8
          %s385 = scalar_lea.vmem %s2, %s384
          %s386 = smul.u32 2, %s21
        $region64: #{dilated_res_block.5} parent=51 // pred_fallthru
          _
      $region52: #{dilated_res_block.5} parent=5 // pred_fallthru
        _
      %p387 = scmp.le.s32.totalorder 1, %s21
      %p388 = scmp.lt.s32.totalorder %s21, 3
      %p389 = pnand %p387, %p388
      %p390 = pneg %p389
      // Predicated region
      $region65: #{dilated_res_block.5} parent=5 // pred_check
        _
      $region66: #{dilated_res_block.5} parent=5 // pred_check_branch
        %392 = sbr.rel (%p389) target = $region68
      $region67: #{dilated_res_block.5} parent=5 // pred_region
        %s393 = ssub.s32 %s21, 1
        %s394 = smul.u32 16, %s26
        %p395 = scmp.lt.s32.totalorder %s394, 31
        %s396 = scalar_select %p395, %s394, 31
        %s397 = smul.addr %s396, 4
        %s398 = scalar_lea.vmem %s0, %s397
        %p399 = pneg %p47
        %p400 = pneg %p44
        %s401 = smul.u32 16, %s26
        %p402 = scmp.lt.s32.totalorder %s401, 31
        %s403 = scalar_select %p402, %s401, 31
        %s404 = smul.addr %s403, 4
        %s405 = scalar_lea.vmem %s1, %s404
        %p406 = pneg %p73
        %p407 = pneg %p70
        %s408 = smul.u32 2, %s26
        %p409 = scmp.lt.s32.totalorder %s408, 3
        %s410 = scalar_select %p409, %s408, 3
        %s411 = smul.addr %s410, 8
        %s412 = scalar_lea.vmem %s2, %s411
        %p413 = pneg %p99
        %p414 = pneg %p96
        %p415 = pneg %p120
        %p416 = pneg %p117
        %p417 = pneg %p141
        %p418 = pneg %p138
        %p419 = pneg %p162
        %p420 = pneg %p159
        %p421 = pneg %p183
        %p422 = pneg %p180
        %p423 = pneg %p204
        %p424 = pneg %p201
        %p425 = pneg %p225
        %p426 = pneg %p222
        %p427 = pneg %p246
        %p428 = pneg %p243
        %p429 = pneg %p267
        %p430 = pneg %p264
        %p431 = pneg %p288
        %p432 = pneg %p285
        %p433 = pneg %p314
        %p434 = pneg %p311
        %s435 = sand.u32 %s301, 1
        %s436 = scalar_lea.sflag [#allocation3], %s435
        %s437 = sand.u32 %s301, 1
        %s438 = smul.addr %s437, 16
        %s439 = scalar_lea.vmem [#allocation2], %s438
        %s440 = smul.u32 16, %s26
        %p441 = scmp.lt.s32.totalorder %s440, 31
        %s442 = scalar_select %p441, %s440, 31
        %s443 = smul.addr %s442, 4
        %s444 = scalar_lea.vmem %s0, %s443
        %s445 = smul.u32 16, %s26
        %s446 = smul.u32 16, %s26
        %p447 = scmp.lt.s32.totalorder %s446, 31
        %s448 = scalar_select %p447, %s446, 31
        %s449 = smul.addr %s448, 4
        %s450 = scalar_lea.vmem %s1, %s449
        %s451 = smul.u32 16, %s26
        %s452 = smul.u32 2, %s26
        %p453 = scmp.lt.s32.totalorder %s452, 3
        %s454 = scalar_select %p453, %s452, 3
        %s455 = smul.addr %s454, 8
        %s456 = scalar_lea.vmem %s2, %s455
        %s457 = smul.u32 2, %s26
        %s458 = smul.u32 2, %s26
        %v460 = vld [vmem:[%s444] sm:$0xf]
        %v461 = vld [vmem:[%s444 + $0x4] sm:$0xf]
        %v462 = vld [vmem:[%s444 + $0x8] sm:$0xf]
        %v463 = vld [vmem:[%s444 + $0xc] sm:$0xf]
        %v464 = vld [vmem:[%s444 + $0x10] sm:$0xf]
        %v465 = vld [vmem:[%s444 + $0x14] sm:$0xf]
        %v466 = vld [vmem:[%s444 + $0x18] sm:$0xf]
        %v467 = vld [vmem:[%s444 + $0x1c] sm:$0xf]
        %v468 = vld [vmem:[%s444 + $0x20] sm:$0xf]
        %v469 = vld [vmem:[%s444 + $0x24] sm:$0xf]
        %v470 = vld [vmem:[%s444 + $0x28] sm:$0xf]
        %v471 = vld [vmem:[%s444 + $0x2c] sm:$0xf]
        %v472 = vld [vmem:[%s444 + $0x30] sm:$0xf]
        %v473 = vld [vmem:[%s444 + $0x34] sm:$0xf]
        %v474 = vld [vmem:[%s444 + $0x38] sm:$0xf]
        %v475 = vld [vmem:[%s444 + $0x3c] sm:$0xf]
        %v476 = vld [vmem:[%s450] sm:$0xf]
        %v477 = vld [vmem:[%s450 + $0x4] sm:$0xf]
        %v478 = vld [vmem:[%s450 + $0x8] sm:$0xf]
        %v479 = vld [vmem:[%s450 + $0xc] sm:$0xf]
        %v480 = vld [vmem:[%s450 + $0x10] sm:$0xf]
        %v481 = vld [vmem:[%s450 + $0x14] sm:$0xf]
        %v482 = vld [vmem:[%s450 + $0x18] sm:$0xf]
        %v483 = vld [vmem:[%s450 + $0x1c] sm:$0xf]
        %v484 = vld [vmem:[%s450 + $0x20] sm:$0xf]
        %v485 = vld [vmem:[%s450 + $0x24] sm:$0xf]
        %v486 = vld [vmem:[%s450 + $0x28] sm:$0xf]
        %v487 = vld [vmem:[%s450 + $0x2c] sm:$0xf]
        %v488 = vld [vmem:[%s450 + $0x30] sm:$0xf]
        %v489 = vld [vmem:[%s450 + $0x34] sm:$0xf]
        %v490 = vld [vmem:[%s450 + $0x38] sm:$0xf]
        %v491 = vld [vmem:[%s450 + $0x3c] sm:$0xf]
        %v492 = vld [vmem:[%s3] sm:$0xf]
        %v493 = vld [vmem:[%s4] sm:$0xf]
        %v510 = vunpack.c.l.b16 %v476
        %v511 = vunpack.c.l.b16 %v477
        %v512 = vunpack.c.l.b16 %v478
        %v513 = vunpack.c.l.b16 %v479
        %v514 = vunpack.c.l.b16 %v480
        %v515 = vunpack.c.l.b16 %v481
        %v516 = vunpack.c.l.b16 %v482
        %v517 = vunpack.c.l.b16 %v483
        %v518 = vunpack.c.l.b16 %v484
        %v519 = vunpack.c.l.b16 %v485
        %v520 = vunpack.c.l.b16 %v486
        %v521 = vunpack.c.l.b16 %v487
        %v522 = vunpack.c.l.b16 %v488
        %v523 = vunpack.c.l.b16 %v489
        %v524 = vunpack.c.l.b16 %v490
        %v525 = vunpack.c.l.b16 %v491
        %v526 = vpack.c.b16 %v511, %v510
        %v527 = vpack.c.b16 %v513, %v512
        %v528 = vpack.c.b16 %v515, %v514
        %v529 = vpack.c.b16 %v517, %v516
        %v530 = vpack.c.b16 %v519, %v518
        %v531 = vpack.c.b16 %v521, %v520
        %v532 = vpack.c.b16 %v523, %v522
        %v533 = vpack.c.b16 %v525, %v524
        %vm534 = vcmask 64512
        %v536 = vsel %vm534, %v526, 0
        %v539 = vsel %vm534, %v527, 0
        %v542 = vsel %vm534, %v528, 0
        %v545 = vsel %vm534, %v529, 0
        %v548 = vsel %vm534, %v530, 0
        %v551 = vsel %vm534, %v531, 0
        %v554 = vsel %vm534, %v532, 0
        %v557 = vsel %vm534, %v533, 0
        %vm559 = vcmask 1043456
        %v561 = vsel %vm559, %v493, 0
        %563 = vmatprep.subr.bf16.mxu0 0
        %564 = vmatpush1.bf16.msra.mxu0 0
        %565 = vmatprep.subr.bf16.mxu0 0
        %566 = vmatpush1.bf16.msra.mxu0 0
        %567 = vmatprep.subr.bf16.mxu0 0
        %568 = vmatpush1.bf16.msra.mxu0 0
        %569 = vmatprep.subr.bf16.mxu0 0
        %570 = vmatpush1.bf16.msra.mxu0 0
        %571 = vmatprep.subr.bf16.mxu0 0
        %572 = vmatpush1.bf16.msra.mxu0 0
        %573 = vmatprep.subr.bf16.mxu0 0
        %574 = vmatpush1.bf16.msra.mxu0 0
        %575 = vmatprep.subr.bf16.mxu0 0
        %576 = vmatpush1.bf16.msra.mxu0 0
        %577 = vmatprep.subr.bf16.mxu0 0
        %578 = vmatpush1.bf16.msra.mxu0 %v561
        %579 = vmatprep.subr.bf16.mxu0 0
        %580 = vmatpush2.bf16.msra.mxu0 0
        %581 = vmatprep.subr.bf16.mxu0 0
        %582 = vmatpush2.bf16.msra.mxu0 0
        %583 = vmatprep.subr.bf16.mxu0 0
        %584 = vmatpush2.bf16.msra.mxu0 0
        %585 = vmatprep.subr.bf16.mxu0 0
        %586 = vmatpush2.bf16.msra.mxu0 0
        %587 = vmatprep.subr.bf16.mxu0 0
        %588 = vmatpush2.bf16.msra.mxu0 0
        %589 = vmatprep.subr.bf16.mxu0 0
        %590 = vmatpush2.bf16.msra.mxu0 0
        %591 = vmatprep.subr.bf16.mxu0 0
        %592 = vmatpush2.bf16.msra.mxu0 0
        %593 = vmatprep.subr.bf16.mxu0 0
        %594 = vmatpush2.bf16.msra.mxu0 0
        %595 = vmatprep.mubr.bf16.mxu0 0
        %596 = vmatmul.mubr.bf16.gmra.mxu0 %v536
        %v597 = vpop.f32.mrf.mxu0
        %v598 = vadd.f32 0.0, %v597
        %v599 = vpop.f32.mrf.mxu0
        %v600 = vpop.f32.mrf.mxu0
        %v601 = vadd.f32 0.0, %v600
        %v602 = vpop.f32.mrf.mxu0
        %603 = vmatprep.mubr.bf16.mxu0 0
        %604 = vmatmul.mubr.bf16.gmra.mxu0 %v539
        %v605 = vpop.f32.mrf.mxu0
        %v606 = vadd.f32 0.0, %v605
        %v607 = vpop.f32.mrf.mxu0
        %v608 = vpop.f32.mrf.mxu0
        %v609 = vadd.f32 0.0, %v608
        %v610 = vpop.f32.mrf.mxu0
        %611 = vmatprep.mubr.bf16.mxu0 0
        %612 = vmatmul.mubr.bf16.gmra.mxu0 %v542
        %v613 = vpop.f32.mrf.mxu0
        %v614 = vadd.f32 0.0, %v613
        %v615 = vpop.f32.mrf.mxu0
        %v616 = vpop.f32.mrf.mxu0
        %v617 = vadd.f32 0.0, %v616
        %v618 = vpop.f32.mrf.mxu0
        %619 = vmatprep.mubr.bf16.mxu0 0
        %620 = vmatmul.mubr.bf16.gmra.mxu0 %v545
        %v621 = vpop.f32.mrf.mxu0
        %v622 = vadd.f32 0.0, %v621
        %v623 = vpop.f32.mrf.mxu0
        %v624 = vpop.f32.mrf.mxu0
        %v625 = vadd.f32 0.0, %v624
        %v626 = vpop.f32.mrf.mxu0
        %627 = vmatprep.mubr.bf16.mxu0 0
        %628 = vmatmul.mubr.bf16.gmra.mxu0 %v548
        %v629 = vpop.f32.mrf.mxu0
        %v630 = vadd.f32 0.0, %v629
        %v631 = vpop.f32.mrf.mxu0
        %v632 = vpop.f32.mrf.mxu0
        %v633 = vadd.f32 0.0, %v632
        %v634 = vpop.f32.mrf.mxu0
        %635 = vmatprep.mubr.bf16.mxu0 0
        %636 = vmatmul.mubr.bf16.gmra.mxu0 %v551
        %v637 = vpop.f32.mrf.mxu0
        %v638 = vadd.f32 0.0, %v637
        %v639 = vpop.f32.mrf.mxu0
        %v640 = vpop.f32.mrf.mxu0
        %v641 = vadd.f32 0.0, %v640
        %v642 = vpop.f32.mrf.mxu0
        %643 = vmatprep.mubr.bf16.mxu0 0
        %644 = vmatmul.mubr.bf16.gmra.mxu0 %v554
        %v645 = vpop.f32.mrf.mxu0
        %v646 = vadd.f32 0.0, %v645
        %v647 = vpop.f32.mrf.mxu0
        %v648 = vpop.f32.mrf.mxu0
        %v649 = vadd.f32 0.0, %v648
        %v650 = vpop.f32.mrf.mxu0
        %651 = vmatprep.mubr.bf16.mxu0 0
        %652 = vmatmul.mubr.bf16.gmra.mxu0 %v557
        %v653 = vpop.f32.mrf.mxu0
        %v654 = vadd.f32 0.0, %v653
        %v655 = vpop.f32.mrf.mxu0
        %v656 = vpop.f32.mrf.mxu0
        %v657 = vadd.f32 0.0, %v656
        %v658 = vpop.f32.mrf.mxu0
        %659 = vdwg.mxu0
        %v676 = vunpack.c.l.b16 %v460
        %v677 = vunpack.c.l.b16 %v461
        %v678 = vunpack.c.l.b16 %v462
        %v679 = vunpack.c.l.b16 %v463
        %v680 = vunpack.c.l.b16 %v464
        %v681 = vunpack.c.l.b16 %v465
        %v682 = vunpack.c.l.b16 %v466
        %v683 = vunpack.c.l.b16 %v467
        %v684 = vunpack.c.l.b16 %v468
        %v685 = vunpack.c.l.b16 %v469
        %v686 = vunpack.c.l.b16 %v470
        %v687 = vunpack.c.l.b16 %v471
        %v688 = vunpack.c.l.b16 %v472
        %v689 = vunpack.c.l.b16 %v473
        %v690 = vunpack.c.l.b16 %v474
        %v691 = vunpack.c.l.b16 %v475
        %v692 = vpack.c.b16 %v677, %v676
        %v693 = vpack.c.b16 %v679, %v678
        %v694 = vpack.c.b16 %v681, %v680
        %v695 = vpack.c.b16 %v683, %v682
        %v696 = vpack.c.b16 %v685, %v684
        %v697 = vpack.c.b16 %v687, %v686
        %v698 = vpack.c.b16 %v689, %v688
        %v699 = vpack.c.b16 %v691, %v690
        %v701 = vsel %vm534, %v692, 0
        %v704 = vsel %vm534, %v693, 0
        %v707 = vsel %vm534, %v694, 0
        %v710 = vsel %vm534, %v695, 0
        %v713 = vsel %vm534, %v696, 0
        %v716 = vsel %vm534, %v697, 0
        %v719 = vsel %vm534, %v698, 0
        %v722 = vsel %vm534, %v699, 0
        %v725 = vsel %vm559, %v492, 0
        %727 = vmatprep.subr.bf16.mxu0 0
        %728 = vmatpush1.bf16.msra.mxu0 0
        %729 = vmatprep.subr.bf16.mxu0 0
        %730 = vmatpush1.bf16.msra.mxu0 0
        %731 = vmatprep.subr.bf16.mxu0 0
        %732 = vmatpush1.bf16.msra.mxu0 0
        %733 = vmatprep.subr.bf16.mxu0 0
        %734 = vmatpush1.bf16.msra.mxu0 0
        %735 = vmatprep.subr.bf16.mxu0 0
        %736 = vmatpush1.bf16.msra.mxu0 0
        %737 = vmatprep.subr.bf16.mxu0 0
        %738 = vmatpush1.bf16.msra.mxu0 0
        %739 = vmatprep.subr.bf16.mxu0 0
        %740 = vmatpush1.bf16.msra.mxu0 0
        %741 = vmatprep.subr.bf16.mxu0 0
        %742 = vmatpush1.bf16.msra.mxu0 %v725
        %743 = vmatprep.subr.bf16.mxu0 0
        %744 = vmatpush2.bf16.msra.mxu0 0
        %745 = vmatprep.subr.bf16.mxu0 0
        %746 = vmatpush2.bf16.msra.mxu0 0
        %747 = vmatprep.subr.bf16.mxu0 0
        %748 = vmatpush2.bf16.msra.mxu0 0
        %749 = vmatprep.subr.bf16.mxu0 0
        %750 = vmatpush2.bf16.msra.mxu0 0
        %751 = vmatprep.subr.bf16.mxu0 0
        %752 = vmatpush2.bf16.msra.mxu0 0
        %753 = vmatprep.subr.bf16.mxu0 0
        %754 = vmatpush2.bf16.msra.mxu0 0
        %755 = vmatprep.subr.bf16.mxu0 0
        %756 = vmatpush2.bf16.msra.mxu0 0
        %757 = vmatprep.subr.bf16.mxu0 0
        %758 = vmatpush2.bf16.msra.mxu0 0
        %759 = vmatprep.mubr.bf16.mxu0 0
        %760 = vmatmul.mubr.bf16.gmra.mxu0 %v701
        %v761 = vpop.f32.mrf.mxu0
        %v762 = vadd.f32 %v598, %v761
        %v763 = vpop.f32.mrf.mxu0
        %v764 = vpop.f32.mrf.mxu0
        %v765 = vadd.f32 %v601, %v764
        %v766 = vpop.f32.mrf.mxu0
        %767 = vmatprep.mubr.bf16.mxu0 0
        %768 = vmatmul.mubr.bf16.gmra.mxu0 %v704
        %v769 = vpop.f32.mrf.mxu0
        %v770 = vadd.f32 %v606, %v769
        %v771 = vpop.f32.mrf.mxu0
        %v772 = vpop.f32.mrf.mxu0
        %v773 = vadd.f32 %v609, %v772
        %v774 = vpop.f32.mrf.mxu0
        %775 = vmatprep.mubr.bf16.mxu0 0
        %776 = vmatmul.mubr.bf16.gmra.mxu0 %v707
        %v777 = vpop.f32.mrf.mxu0
        %v778 = vadd.f32 %v614, %v777
        %v779 = vpop.f32.mrf.mxu0
        %v780 = vpop.f32.mrf.mxu0
        %v781 = vadd.f32 %v617, %v780
        %v782 = vpop.f32.mrf.mxu0
        %783 = vmatprep.mubr.bf16.mxu0 0
        %784 = vmatmul.mubr.bf16.gmra.mxu0 %v710
        %v785 = vpop.f32.mrf.mxu0
        %v786 = vadd.f32 %v622, %v785
        %v787 = vpop.f32.mrf.mxu0
        %v788 = vpop.f32.mrf.mxu0
        %v789 = vadd.f32 %v625, %v788
        %v790 = vpop.f32.mrf.mxu0
        %791 = vmatprep.mubr.bf16.mxu0 0
        %792 = vmatmul.mubr.bf16.gmra.mxu0 %v713
        %v793 = vpop.f32.mrf.mxu0
        %v794 = vadd.f32 %v630, %v793
        %v795 = vpop.f32.mrf.mxu0
        %v796 = vpop.f32.mrf.mxu0
        %v797 = vadd.f32 %v633, %v796
        %v798 = vpop.f32.mrf.mxu0
        %799 = vmatprep.mubr.bf16.mxu0 0
        %800 = vmatmul.mubr.bf16.gmra.mxu0 %v716
        %v801 = vpop.f32.mrf.mxu0
        %v802 = vadd.f32 %v638, %v801
        %v803 = vpop.f32.mrf.mxu0
        %v804 = vpop.f32.mrf.mxu0
        %v805 = vadd.f32 %v641, %v804
        %v806 = vpop.f32.mrf.mxu0
        %807 = vmatprep.mubr.bf16.mxu0 0
        %808 = vmatmul.mubr.bf16.gmra.mxu0 %v719
        %v809 = vpop.f32.mrf.mxu0
        %v810 = vadd.f32 %v646, %v809
        %v811 = vpop.f32.mrf.mxu0
        %v812 = vpop.f32.mrf.mxu0
        %v813 = vadd.f32 %v649, %v812
        %v814 = vpop.f32.mrf.mxu0
        %815 = vmatprep.mubr.bf16.mxu0 0
        %816 = vmatmul.mubr.bf16.gmra.mxu0 %v722
        %v817 = vpop.f32.mrf.mxu0
        %v818 = vadd.f32 %v654, %v817
        %v819 = vpop.f32.mrf.mxu0
        %v820 = vpop.f32.mrf.mxu0
        %v821 = vadd.f32 %v657, %v820
        %v822 = vpop.f32.mrf.mxu0
        %823 = vdwg.mxu0
        %v824 = vunpack.c.l.bf16 %v460
        %v825 = vunpack.c.l.bf16 %v461
        %v826 = vunpack.c.l.bf16 %v462
        %v827 = vunpack.c.l.bf16 %v463
        %v828 = vunpack.c.l.bf16 %v464
        %v829 = vunpack.c.l.bf16 %v465
        %v830 = vunpack.c.l.bf16 %v466
        %v831 = vunpack.c.l.bf16 %v467
        %v832 = vunpack.c.l.bf16 %v468
        %v833 = vunpack.c.l.bf16 %v469
        %v834 = vunpack.c.l.bf16 %v470
        %v835 = vunpack.c.l.bf16 %v471
        %v836 = vunpack.c.l.bf16 %v472
        %v837 = vunpack.c.l.bf16 %v473
        %v838 = vunpack.c.l.bf16 %v474
        %v839 = vunpack.c.l.bf16 %v475
        %v840 = vsel %vm534, %v762, -inf
        %v841 = vrot.slane %v840, 4
        %v842 = vmax.f32 %v840, %v841
        %v843 = vrot.slane %v842, 2
        %v844 = vmax.f32 %v842, %v843
        %v845 = vrot.slane %v844, 1
        %v846 = vmax.f32 %v844, %v845
        %v847 = vsel %vm534, %v765, -inf
        %v848 = vrot.slane %v847, 4
        %v849 = vmax.f32 %v847, %v848
        %v850 = vrot.slane %v849, 2
        %v851 = vmax.f32 %v849, %v850
        %v852 = vrot.slane %v851, 1
        %v853 = vmax.f32 %v851, %v852
        %v854 = vsel %vm534, %v770, -inf
        %v855 = vrot.slane %v854, 4
        %v856 = vmax.f32 %v854, %v855
        %v857 = vrot.slane %v856, 2
        %v858 = vmax.f32 %v856, %v857
        %v859 = vrot.slane %v858, 1
        %v860 = vmax.f32 %v858, %v859
        %v861 = vsel %vm534, %v773, -inf
        %v862 = vrot.slane %v861, 4
        %v863 = vmax.f32 %v861, %v862
        %v864 = vrot.slane %v863, 2
        %v865 = vmax.f32 %v863, %v864
        %v866 = vrot.slane %v865, 1
        %v867 = vmax.f32 %v865, %v866
        %v868 = vsel %vm534, %v778, -inf
        %v869 = vrot.slane %v868, 4
        %v870 = vmax.f32 %v868, %v869
        %v871 = vrot.slane %v870, 2
        %v872 = vmax.f32 %v870, %v871
        %v873 = vrot.slane %v872, 1
        %v874 = vmax.f32 %v872, %v873
        %v875 = vsel %vm534, %v781, -inf
        %v876 = vrot.slane %v875, 4
        %v877 = vmax.f32 %v875, %v876
        %v878 = vrot.slane %v877, 2
        %v879 = vmax.f32 %v877, %v878
        %v880 = vrot.slane %v879, 1
        %v881 = vmax.f32 %v879, %v880
        %v882 = vsel %vm534, %v786, -inf
        %v883 = vrot.slane %v882, 4
        %v884 = vmax.f32 %v882, %v883
        %v885 = vrot.slane %v884, 2
        %v886 = vmax.f32 %v884, %v885
        %v887 = vrot.slane %v886, 1
        %v888 = vmax.f32 %v886, %v887
        %v889 = vsel %vm534, %v789, -inf
        %v890 = vrot.slane %v889, 4
        %v891 = vmax.f32 %v889, %v890
        %v892 = vrot.slane %v891, 2
        %v893 = vmax.f32 %v891, %v892
        %v894 = vrot.slane %v893, 1
        %v895 = vmax.f32 %v893, %v894
        %v896 = vsel %vm534, %v794, -inf
        %v897 = vrot.slane %v896, 4
        %v898 = vmax.f32 %v896, %v897
        %v899 = vrot.slane %v898, 2
        %v900 = vmax.f32 %v898, %v899
        %v901 = vrot.slane %v900, 1
        %v902 = vmax.f32 %v900, %v901
        %v903 = vsel %vm534, %v797, -inf
        %v904 = vrot.slane %v903, 4
        %v905 = vmax.f32 %v903, %v904
        %v906 = vrot.slane %v905, 2
        %v907 = vmax.f32 %v905, %v906
        %v908 = vrot.slane %v907, 1
        %v909 = vmax.f32 %v907, %v908
        %v910 = vsel %vm534, %v802, -inf
        %v911 = vrot.slane %v910, 4
        %v912 = vmax.f32 %v910, %v911
        %v913 = vrot.slane %v912, 2
        %v914 = vmax.f32 %v912, %v913
        %v915 = vrot.slane %v914, 1
        %v916 = vmax.f32 %v914, %v915
        %v917 = vsel %vm534, %v805, -inf
        %v918 = vrot.slane %v917, 4
        %v919 = vmax.f32 %v917, %v918
        %v920 = vrot.slane %v919, 2
        %v921 = vmax.f32 %v919, %v920
        %v922 = vrot.slane %v921, 1
        %v923 = vmax.f32 %v921, %v922
        %v924 = vsel %vm534, %v810, -inf
        %v925 = vrot.slane %v924, 4
        %v926 = vmax.f32 %v924, %v925
        %v927 = vrot.slane %v926, 2
        %v928 = vmax.f32 %v926, %v927
        %v929 = vrot.slane %v928, 1
        %v930 = vmax.f32 %v928, %v929
        %v931 = vsel %vm534, %v813, -inf
        %v932 = vrot.slane %v931, 4
        %v933 = vmax.f32 %v931, %v932
        %v934 = vrot.slane %v933, 2
        %v935 = vmax.f32 %v933, %v934
        %v936 = vrot.slane %v935, 1
        %v937 = vmax.f32 %v935, %v936
        %v938 = vsel %vm534, %v818, -inf
        %v939 = vrot.slane %v938, 4
        %v940 = vmax.f32 %v938, %v939
        %v941 = vrot.slane %v940, 2
        %v942 = vmax.f32 %v940, %v941
        %v943 = vrot.slane %v942, 1
        %v944 = vmax.f32 %v942, %v943
        %v945 = vsel %vm534, %v821, -inf
        %v946 = vrot.slane %v945, 4
        %v947 = vmax.f32 %v945, %v946
        %v948 = vrot.slane %v947, 2
        %v949 = vmax.f32 %v947, %v948
        %v950 = vrot.slane %v949, 1
        %v951 = vmax.f32 %v949, %v950
        %v952 = vsub.f32 %v762, %v846
        %v953 = vsub.f32 %v765, %v853
        %v954 = vsub.f32 %v770, %v860
        %v955 = vsub.f32 %v773, %v867
        %v956 = vsub.f32 %v778, %v874
        %v957 = vsub.f32 %v781, %v881
        %v958 = vsub.f32 %v786, %v888
        %v959 = vsub.f32 %v789, %v895
        %v960 = vsub.f32 %v794, %v902
        %v961 = vsub.f32 %v797, %v909
        %v962 = vsub.f32 %v802, %v916
        %v963 = vsub.f32 %v805, %v923
        %v964 = vsub.f32 %v810, %v930
        %v965 = vsub.f32 %v813, %v937
        %v966 = vsub.f32 %v818, %v944
        %v967 = vsub.f32 %v821, %v951
        %v968 = vmul.f32 %v952, 1.442695
        %v969 = vpow.pop %v968
        %v970 = vmul.f32 %v953, 1.442695
        %v971 = vpow.pop %v970
        %v972 = vmul.f32 %v954, 1.442695
        %v973 = vpow.pop %v972
        %v974 = vmul.f32 %v955, 1.442695
        %v975 = vpow.pop %v974
        %v976 = vmul.f32 %v956, 1.442695
        %v977 = vpow.pop %v976
        %v978 = vmul.f32 %v957, 1.442695
        %v979 = vpow.pop %v978
        %v980 = vmul.f32 %v958, 1.442695
        %v981 = vpow.pop %v980
        %v982 = vmul.f32 %v959, 1.442695
        %v983 = vpow.pop %v982
        %v984 = vmul.f32 %v960, 1.442695
        %v985 = vpow.pop %v984
        %v986 = vmul.f32 %v961, 1.442695
        %v987 = vpow.pop %v986
        %v988 = vmul.f32 %v962, 1.442695
        %v989 = vpow.pop %v988
        %v990 = vmul.f32 %v963, 1.442695
        %v991 = vpow.pop %v990
        %v992 = vmul.f32 %v964, 1.442695
        %v993 = vpow.pop %v992
        %v994 = vmul.f32 %v965, 1.442695
        %v995 = vpow.pop %v994
        %v996 = vmul.f32 %v966, 1.442695
        %v997 = vpow.pop %v996
        %v998 = vmul.f32 %v967, 1.442695
        %v999 = vpow.pop %v998
        %v1000 = vsel %vm534, %v969, 0.0
        %v1001 = vrot.slane %v1000, 4
        %v1002 = vadd.f32 %v1000, %v1001
        %v1003 = vrot.slane %v1002, 2
        %v1004 = vadd.f32 %v1002, %v1003
        %v1005 = vrot.slane %v1004, 1
        %v1006 = vadd.f32 %v1004, %v1005
        %v1007 = vsel %vm534, %v971, 0.0
        %v1008 = vrot.slane %v1007, 4
        %v1009 = vadd.f32 %v1007, %v1008
        %v1010 = vrot.slane %v1009, 2
        %v1011 = vadd.f32 %v1009, %v1010
        %v1012 = vrot.slane %v1011, 1
        %v1013 = vadd.f32 %v1011, %v1012
        %v1014 = vsel %vm534, %v973, 0.0
        %v1015 = vrot.slane %v1014, 4
        %v1016 = vadd.f32 %v1014, %v1015
        %v1017 = vrot.slane %v1016, 2
        %v1018 = vadd.f32 %v1016, %v1017
        %v1019 = vrot.slane %v1018, 1
        %v1020 = vadd.f32 %v1018, %v1019
        %v1021 = vsel %vm534, %v975, 0.0
        %v1022 = vrot.slane %v1021, 4
        %v1023 = vadd.f32 %v1021, %v1022
        %v1024 = vrot.slane %v1023, 2
        %v1025 = vadd.f32 %v1023, %v1024
        %v1026 = vrot.slane %v1025, 1
        %v1027 = vadd.f32 %v1025, %v1026
        %v1028 = vsel %vm534, %v977, 0.0
        %v1029 = vrot.slane %v1028, 4
        %v1030 = vadd.f32 %v1028, %v1029
        %v1031 = vrot.slane %v1030, 2
        %v1032 = vadd.f32 %v1030, %v1031
        %v1033 = vrot.slane %v1032, 1
        %v1034 = vadd.f32 %v1032, %v1033
        %v1035 = vsel %vm534, %v979, 0.0
        %v1036 = vrot.slane %v1035, 4
        %v1037 = vadd.f32 %v1035, %v1036
        %v1038 = vrot.slane %v1037, 2
        %v1039 = vadd.f32 %v1037, %v1038
        %v1040 = vrot.slane %v1039, 1
        %v1041 = vadd.f32 %v1039, %v1040
        %v1042 = vsel %vm534, %v981, 0.0
        %v1043 = vrot.slane %v1042, 4
        %v1044 = vadd.f32 %v1042, %v1043
        %v1045 = vrot.slane %v1044, 2
        %v1046 = vadd.f32 %v1044, %v1045
        %v1047 = vrot.slane %v1046, 1
        %v1048 = vadd.f32 %v1046, %v1047
        %v1049 = vsel %vm534, %v983, 0.0
        %v1050 = vrot.slane %v1049, 4
        %v1051 = vadd.f32 %v1049, %v1050
        %v1052 = vrot.slane %v1051, 2
        %v1053 = vadd.f32 %v1051, %v1052
        %v1054 = vrot.slane %v1053, 1
        %v1055 = vadd.f32 %v1053, %v1054
        %v1056 = vsel %vm534, %v985, 0.0
        %v1057 = vrot.slane %v1056, 4
        %v1058 = vadd.f32 %v1056, %v1057
        %v1059 = vrot.slane %v1058, 2
        %v1060 = vadd.f32 %v1058, %v1059
        %v1061 = vrot.slane %v1060, 1
        %v1062 = vadd.f32 %v1060, %v1061
        %v1063 = vsel %vm534, %v987, 0.0
        %v1064 = vrot.slane %v1063, 4
        %v1065 = vadd.f32 %v1063, %v1064
        %v1066 = vrot.slane %v1065, 2
        %v1067 = vadd.f32 %v1065, %v1066
        %v1068 = vrot.slane %v1067, 1
        %v1069 = vadd.f32 %v1067, %v1068
        %v1070 = vsel %vm534, %v989, 0.0
        %v1071 = vrot.slane %v1070, 4
        %v1072 = vadd.f32 %v1070, %v1071
        %v1073 = vrot.slane %v1072, 2
        %v1074 = vadd.f32 %v1072, %v1073
        %v1075 = vrot.slane %v1074, 1
        %v1076 = vadd.f32 %v1074, %v1075
        %v1077 = vsel %vm534, %v991, 0.0
        %v1078 = vrot.slane %v1077, 4
        %v1079 = vadd.f32 %v1077, %v1078
        %v1080 = vrot.slane %v1079, 2
        %v1081 = vadd.f32 %v1079, %v1080
        %v1082 = vrot.slane %v1081, 1
        %v1083 = vadd.f32 %v1081, %v1082
        %v1084 = vsel %vm534, %v993, 0.0
        %v1085 = vrot.slane %v1084, 4
        %v1086 = vadd.f32 %v1084, %v1085
        %v1087 = vrot.slane %v1086, 2
        %v1088 = vadd.f32 %v1086, %v1087
        %v1089 = vrot.slane %v1088, 1
        %v1090 = vadd.f32 %v1088, %v1089
        %v1091 = vsel %vm534, %v995, 0.0
        %v1092 = vrot.slane %v1091, 4
        %v1093 = vadd.f32 %v1091, %v1092
        %v1094 = vrot.slane %v1093, 2
        %v1095 = vadd.f32 %v1093, %v1094
        %v1096 = vrot.slane %v1095, 1
        %v1097 = vadd.f32 %v1095, %v1096
        %v1098 = vsel %vm534, %v997, 0.0
        %v1099 = vrot.slane %v1098, 4
        %v1100 = vadd.f32 %v1098, %v1099
        %v1101 = vrot.slane %v1100, 2
        %v1102 = vadd.f32 %v1100, %v1101
        %v1103 = vrot.slane %v1102, 1
        %v1104 = vadd.f32 %v1102, %v1103
        %v1105 = vsel %vm534, %v999, 0.0
        %v1106 = vrot.slane %v1105, 4
        %v1107 = vadd.f32 %v1105, %v1106
        %v1108 = vrot.slane %v1107, 2
        %v1109 = vadd.f32 %v1107, %v1108
        %v1110 = vrot.slane %v1109, 1
        %v1111 = vadd.f32 %v1109, %v1110
        %v1112 = vrcp.pop %v1006
        %v1113 = vrcp.pop %v1013
        %v1114 = vrcp.pop %v1020
        %v1115 = vrcp.pop %v1027
        %v1116 = vrcp.pop %v1034
        %v1117 = vrcp.pop %v1041
        %v1118 = vrcp.pop %v1048
        %v1119 = vrcp.pop %v1055
        %v1120 = vrcp.pop %v1062
        %v1121 = vrcp.pop %v1069
        %v1122 = vrcp.pop %v1076
        %v1123 = vrcp.pop %v1083
        %v1124 = vrcp.pop %v1090
        %v1125 = vrcp.pop %v1097
        %v1126 = vrcp.pop %v1104
        %v1127 = vrcp.pop %v1111
        %v1128 = vmul.f32 %v969, %v1112
        %v1129 = vmul.f32 %v971, %v1113
        %v1130 = vmul.f32 %v973, %v1114
        %v1131 = vmul.f32 %v975, %v1115
        %v1132 = vmul.f32 %v977, %v1116
        %v1133 = vmul.f32 %v979, %v1117
        %v1134 = vmul.f32 %v981, %v1118
        %v1135 = vmul.f32 %v983, %v1119
        %v1136 = vmul.f32 %v985, %v1120
        %v1137 = vmul.f32 %v987, %v1121
        %v1138 = vmul.f32 %v989, %v1122
        %v1139 = vmul.f32 %v991, %v1123
        %v1140 = vmul.f32 %v993, %v1124
        %v1141 = vmul.f32 %v995, %v1125
        %v1142 = vmul.f32 %v997, %v1126
        %v1143 = vmul.f32 %v999, %v1127
        %v1144 = vmul.f32 %v824, %v1128
        %v1145 = vmul.f32 %v825, %v1129
        %v1146 = vmul.f32 %v826, %v1130
        %v1147 = vmul.f32 %v827, %v1131
        %v1148 = vmul.f32 %v828, %v1132
        %v1149 = vmul.f32 %v829, %v1133
        %v1150 = vmul.f32 %v830, %v1134
        %v1151 = vmul.f32 %v831, %v1135
        %v1152 = vmul.f32 %v832, %v1136
        %v1153 = vmul.f32 %v833, %v1137
        %v1154 = vmul.f32 %v834, %v1138
        %v1155 = vmul.f32 %v835, %v1139
        %v1156 = vmul.f32 %v836, %v1140
        %v1157 = vmul.f32 %v837, %v1141
        %v1158 = vmul.f32 %v838, %v1142
        %v1159 = vmul.f32 %v839, %v1143
        %v1160 = vsel %vm534, %v1144, 0.0
        %v1161 = vrot.slane %v1160, 4
        %v1162 = vadd.f32 %v1160, %v1161
        %v1163 = vrot.slane %v1162, 2
        %v1164 = vadd.f32 %v1162, %v1163
        %v1165 = vrot.slane %v1164, 1
        %v1166 = vadd.f32 %v1164, %v1165
        %v1167 = vsel %vm534, %v1145, 0.0
        %v1168 = vrot.slane %v1167, 4
        %v1169 = vadd.f32 %v1167, %v1168
        %v1170 = vrot.slane %v1169, 2
        %v1171 = vadd.f32 %v1169, %v1170
        %v1172 = vrot.slane %v1171, 1
        %v1173 = vadd.f32 %v1171, %v1172
        %v1174 = vsel %vm534, %v1146, 0.0
        %v1175 = vrot.slane %v1174, 4
        %v1176 = vadd.f32 %v1174, %v1175
        %v1177 = vrot.slane %v1176, 2
        %v1178 = vadd.f32 %v1176, %v1177
        %v1179 = vrot.slane %v1178, 1
        %v1180 = vadd.f32 %v1178, %v1179
        %v1181 = vsel %vm534, %v1147, 0.0
        %v1182 = vrot.slane %v1181, 4
        %v1183 = vadd.f32 %v1181, %v1182
        %v1184 = vrot.slane %v1183, 2
        %v1185 = vadd.f32 %v1183, %v1184
        %v1186 = vrot.slane %v1185, 1
        %v1187 = vadd.f32 %v1185, %v1186
        %v1188 = vsel %vm534, %v1148, 0.0
        %v1189 = vrot.slane %v1188, 4
        %v1190 = vadd.f32 %v1188, %v1189
        %v1191 = vrot.slane %v1190, 2
        %v1192 = vadd.f32 %v1190, %v1191
        %v1193 = vrot.slane %v1192, 1
        %v1194 = vadd.f32 %v1192, %v1193
        %v1195 = vsel %vm534, %v1149, 0.0
        %v1196 = vrot.slane %v1195, 4
        %v1197 = vadd.f32 %v1195, %v1196
        %v1198 = vrot.slane %v1197, 2
        %v1199 = vadd.f32 %v1197, %v1198
        %v1200 = vrot.slane %v1199, 1
        %v1201 = vadd.f32 %v1199, %v1200
        %v1202 = vsel %vm534, %v1150, 0.0
        %v1203 = vrot.slane %v1202, 4
        %v1204 = vadd.f32 %v1202, %v1203
        %v1205 = vrot.slane %v1204, 2
        %v1206 = vadd.f32 %v1204, %v1205
        %v1207 = vrot.slane %v1206, 1
        %v1208 = vadd.f32 %v1206, %v1207
        %v1209 = vsel %vm534, %v1151, 0.0
        %v1210 = vrot.slane %v1209, 4
        %v1211 = vadd.f32 %v1209, %v1210
        %v1212 = vrot.slane %v1211, 2
        %v1213 = vadd.f32 %v1211, %v1212
        %v1214 = vrot.slane %v1213, 1
        %v1215 = vadd.f32 %v1213, %v1214
        %v1216 = vsel %vm534, %v1152, 0.0
        %v1217 = vrot.slane %v1216, 4
        %v1218 = vadd.f32 %v1216, %v1217
        %v1219 = vrot.slane %v1218, 2
        %v1220 = vadd.f32 %v1218, %v1219
        %v1221 = vrot.slane %v1220, 1
        %v1222 = vadd.f32 %v1220, %v1221
        %v1223 = vsel %vm534, %v1153, 0.0
        %v1224 = vrot.slane %v1223, 4
        %v1225 = vadd.f32 %v1223, %v1224
        %v1226 = vrot.slane %v1225, 2
        %v1227 = vadd.f32 %v1225, %v1226
        %v1228 = vrot.slane %v1227, 1
        %v1229 = vadd.f32 %v1227, %v1228
        %v1230 = vsel %vm534, %v1154, 0.0
        %v1231 = vrot.slane %v1230, 4
        %v1232 = vadd.f32 %v1230, %v1231
        %v1233 = vrot.slane %v1232, 2
        %v1234 = vadd.f32 %v1232, %v1233
        %v1235 = vrot.slane %v1234, 1
        %v1236 = vadd.f32 %v1234, %v1235
        %v1237 = vsel %vm534, %v1155, 0.0
        %v1238 = vrot.slane %v1237, 4
        %v1239 = vadd.f32 %v1237, %v1238
        %v1240 = vrot.slane %v1239, 2
        %v1241 = vadd.f32 %v1239, %v1240
        %v1242 = vrot.slane %v1241, 1
        %v1243 = vadd.f32 %v1241, %v1242
        %v1244 = vsel %vm534, %v1156, 0.0
        %v1245 = vrot.slane %v1244, 4
        %v1246 = vadd.f32 %v1244, %v1245
        %v1247 = vrot.slane %v1246, 2
        %v1248 = vadd.f32 %v1246, %v1247
        %v1249 = vrot.slane %v1248, 1
        %v1250 = vadd.f32 %v1248, %v1249
        %v1251 = vsel %vm534, %v1157, 0.0
        %v1252 = vrot.slane %v1251, 4
        %v1253 = vadd.f32 %v1251, %v1252
        %v1254 = vrot.slane %v1253, 2
        %v1255 = vadd.f32 %v1253, %v1254
        %v1256 = vrot.slane %v1255, 1
        %v1257 = vadd.f32 %v1255, %v1256
        %v1258 = vsel %vm534, %v1158, 0.0
        %v1259 = vrot.slane %v1258, 4
        %v1260 = vadd.f32 %v1258, %v1259
        %v1261 = vrot.slane %v1260, 2
        %v1262 = vadd.f32 %v1260, %v1261
        %v1263 = vrot.slane %v1262, 1
        %v1264 = vadd.f32 %v1262, %v1263
        %v1265 = vsel %vm534, %v1159, 0.0
        %v1266 = vrot.slane %v1265, 4
        %v1267 = vadd.f32 %v1265, %v1266
        %v1268 = vrot.slane %v1267, 2
        %v1269 = vadd.f32 %v1267, %v1268
        %v1270 = vrot.slane %v1269, 1
        %v1271 = vadd.f32 %v1269, %v1270
        %v1272 = vunpack.c.l.bf16 %v476
        %v1273 = vunpack.c.l.bf16 %v477
        %v1274 = vunpack.c.l.bf16 %v478
        %v1275 = vunpack.c.l.bf16 %v479
        %v1276 = vunpack.c.l.bf16 %v480
        %v1277 = vunpack.c.l.bf16 %v481
        %v1278 = vunpack.c.l.bf16 %v482
        %v1279 = vunpack.c.l.bf16 %v483
        %v1280 = vunpack.c.l.bf16 %v484
        %v1281 = vunpack.c.l.bf16 %v485
        %v1282 = vunpack.c.l.bf16 %v486
        %v1283 = vunpack.c.l.bf16 %v487
        %v1284 = vunpack.c.l.bf16 %v488
        %v1285 = vunpack.c.l.bf16 %v489
        %v1286 = vunpack.c.l.bf16 %v490
        %v1287 = vunpack.c.l.bf16 %v491
        %vm1288 = vcmask 130112
        %v1289 = vsel %vm1288, %v762, -inf
        %v1290 = vrot.slane %v1289, 4
        %v1291 = vmax.f32 %v1289, %v1290
        %v1292 = vrot.slane %v1291, 2
        %v1293 = vmax.f32 %v1291, %v1292
        %v1294 = vrot.slane %v1293, 1
        %v1295 = vmax.f32 %v1293, %v1294
        %v1296 = vsel %vm1288, %v765, -inf
        %v1297 = vrot.slane %v1296, 4
        %v1298 = vmax.f32 %v1296, %v1297
        %v1299 = vrot.slane %v1298, 2
        %v1300 = vmax.f32 %v1298, %v1299
        %v1301 = vrot.slane %v1300, 1
        %v1302 = vmax.f32 %v1300, %v1301
        %v1303 = vsel %vm1288, %v770, -inf
        %v1304 = vrot.slane %v1303, 4
        %v1305 = vmax.f32 %v1303, %v1304
        %v1306 = vrot.slane %v1305, 2
        %v1307 = vmax.f32 %v1305, %v1306
        %v1308 = vrot.slane %v1307, 1
        %v1309 = vmax.f32 %v1307, %v1308
        %v1310 = vsel %vm1288, %v773, -inf
        %v1311 = vrot.slane %v1310, 4
        %v1312 = vmax.f32 %v1310, %v1311
        %v1313 = vrot.slane %v1312, 2
        %v1314 = vmax.f32 %v1312, %v1313
        %v1315 = vrot.slane %v1314, 1
        %v1316 = vmax.f32 %v1314, %v1315
        %v1317 = vsel %vm1288, %v778, -inf
        %v1318 = vrot.slane %v1317, 4
        %v1319 = vmax.f32 %v1317, %v1318
        %v1320 = vrot.slane %v1319, 2
        %v1321 = vmax.f32 %v1319, %v1320
        %v1322 = vrot.slane %v1321, 1
        %v1323 = vmax.f32 %v1321, %v1322
        %v1324 = vsel %vm1288, %v781, -inf
        %v1325 = vrot.slane %v1324, 4
        %v1326 = vmax.f32 %v1324, %v1325
        %v1327 = vrot.slane %v1326, 2
        %v1328 = vmax.f32 %v1326, %v1327
        %v1329 = vrot.slane %v1328, 1
        %v1330 = vmax.f32 %v1328, %v1329
        %v1331 = vsel %vm1288, %v786, -inf
        %v1332 = vrot.slane %v1331, 4
        %v1333 = vmax.f32 %v1331, %v1332
        %v1334 = vrot.slane %v1333, 2
        %v1335 = vmax.f32 %v1333, %v1334
        %v1336 = vrot.slane %v1335, 1
        %v1337 = vmax.f32 %v1335, %v1336
        %v1338 = vsel %vm1288, %v789, -inf
        %v1339 = vrot.slane %v1338, 4
        %v1340 = vmax.f32 %v1338, %v1339
        %v1341 = vrot.slane %v1340, 2
        %v1342 = vmax.f32 %v1340, %v1341
        %v1343 = vrot.slane %v1342, 1
        %v1344 = vmax.f32 %v1342, %v1343
        %v1345 = vsel %vm1288, %v794, -inf
        %v1346 = vrot.slane %v1345, 4
        %v1347 = vmax.f32 %v1345, %v1346
        %v1348 = vrot.slane %v1347, 2
        %v1349 = vmax.f32 %v1347, %v1348
        %v1350 = vrot.slane %v1349, 1
        %v1351 = vmax.f32 %v1349, %v1350
        %v1352 = vsel %vm1288, %v797, -inf
        %v1353 = vrot.slane %v1352, 4
        %v1354 = vmax.f32 %v1352, %v1353
        %v1355 = vrot.slane %v1354, 2
        %v1356 = vmax.f32 %v1354, %v1355
        %v1357 = vrot.slane %v1356, 1
        %v1358 = vmax.f32 %v1356, %v1357
        %v1359 = vsel %vm1288, %v802, -inf
        %v1360 = vrot.slane %v1359, 4
        %v1361 = vmax.f32 %v1359, %v1360
        %v1362 = vrot.slane %v1361, 2
        %v1363 = vmax.f32 %v1361, %v1362
        %v1364 = vrot.slane %v1363, 1
        %v1365 = vmax.f32 %v1363, %v1364
        %v1366 = vsel %vm1288, %v805, -inf
        %v1367 = vrot.slane %v1366, 4
        %v1368 = vmax.f32 %v1366, %v1367
        %v1369 = vrot.slane %v1368, 2
        %v1370 = vmax.f32 %v1368, %v1369
        %v1371 = vrot.slane %v1370, 1
        %v1372 = vmax.f32 %v1370, %v1371
        %v1373 = vsel %vm1288, %v810, -inf
        %v1374 = vrot.slane %v1373, 4
        %v1375 = vmax.f32 %v1373, %v1374
        %v1376 = vrot.slane %v1375, 2
        %v1377 = vmax.f32 %v1375, %v1376
        %v1378 = vrot.slane %v1377, 1
        %v1379 = vmax.f32 %v1377, %v1378
        %v1380 = vsel %vm1288, %v813, -inf
        %v1381 = vrot.slane %v1380, 4
        %v1382 = vmax.f32 %v1380, %v1381
        %v1383 = vrot.slane %v1382, 2
        %v1384 = vmax.f32 %v1382, %v1383
        %v1385 = vrot.slane %v1384, 1
        %v1386 = vmax.f32 %v1384, %v1385
        %v1387 = vsel %vm1288, %v818, -inf
        %v1388 = vrot.slane %v1387, 4
        %v1389 = vmax.f32 %v1387, %v1388
        %v1390 = vrot.slane %v1389, 2
        %v1391 = vmax.f32 %v1389, %v1390
        %v1392 = vrot.slane %v1391, 1
        %v1393 = vmax.f32 %v1391, %v1392
        %v1394 = vsel %vm1288, %v821, -inf
        %v1395 = vrot.slane %v1394, 4
        %v1396 = vmax.f32 %v1394, %v1395
        %v1397 = vrot.slane %v1396, 2
        %v1398 = vmax.f32 %v1396, %v1397
        %v1399 = vrot.slane %v1398, 1
        %v1400 = vmax.f32 %v1398, %v1399
        %v1401 = vsub.f32 %v762, %v1295
        %v1402 = vsub.f32 %v765, %v1302
        %v1403 = vsub.f32 %v770, %v1309
        %v1404 = vsub.f32 %v773, %v1316
        %v1405 = vsub.f32 %v778, %v1323
        %v1406 = vsub.f32 %v781, %v1330
        %v1407 = vsub.f32 %v786, %v1337
        %v1408 = vsub.f32 %v789, %v1344
        %v1409 = vsub.f32 %v794, %v1351
        %v1410 = vsub.f32 %v797, %v1358
        %v1411 = vsub.f32 %v802, %v1365
        %v1412 = vsub.f32 %v805, %v1372
        %v1413 = vsub.f32 %v810, %v1379
        %v1414 = vsub.f32 %v813, %v1386
        %v1415 = vsub.f32 %v818, %v1393
        %v1416 = vsub.f32 %v821, %v1400
        %v1417 = vmul.f32 %v1401, 1.442695
        %v1418 = vpow.pop %v1417
        %v1419 = vmul.f32 %v1402, 1.442695
        %v1420 = vpow.pop %v1419
        %v1421 = vmul.f32 %v1403, 1.442695
        %v1422 = vpow.pop %v1421
        %v1423 = vmul.f32 %v1404, 1.442695
        %v1424 = vpow.pop %v1423
        %v1425 = vmul.f32 %v1405, 1.442695
        %v1426 = vpow.pop %v1425
        %v1427 = vmul.f32 %v1406, 1.442695
        %v1428 = vpow.pop %v1427
        %v1429 = vmul.f32 %v1407, 1.442695
        %v1430 = vpow.pop %v1429
        %v1431 = vmul.f32 %v1408, 1.442695
        %v1432 = vpow.pop %v1431
        %v1433 = vmul.f32 %v1409, 1.442695
        %v1434 = vpow.pop %v1433
        %v1435 = vmul.f32 %v1410, 1.442695
        %v1436 = vpow.pop %v1435
        %v1437 = vmul.f32 %v1411, 1.442695
        %v1438 = vpow.pop %v1437
        %v1439 = vmul.f32 %v1412, 1.442695
        %v1440 = vpow.pop %v1439
        %v1441 = vmul.f32 %v1413, 1.442695
        %v1442 = vpow.pop %v1441
        %v1443 = vmul.f32 %v1414, 1.442695
        %v1444 = vpow.pop %v1443
        %v1445 = vmul.f32 %v1415, 1.442695
        %v1446 = vpow.pop %v1445
        %v1447 = vmul.f32 %v1416, 1.442695
        %v1448 = vpow.pop %v1447
        %v1449 = vsel %vm1288, %v1418, 0.0
        %v1450 = vrot.slane %v1449, 4
        %v1451 = vadd.f32 %v1449, %v1450
        %v1452 = vrot.slane %v1451, 2
        %v1453 = vadd.f32 %v1451, %v1452
        %v1454 = vrot.slane %v1453, 1
        %v1455 = vadd.f32 %v1453, %v1454
        %v1456 = vsel %vm1288, %v1420, 0.0
        %v1457 = vrot.slane %v1456, 4
        %v1458 = vadd.f32 %v1456, %v1457
        %v1459 = vrot.slane %v1458, 2
        %v1460 = vadd.f32 %v1458, %v1459
        %v1461 = vrot.slane %v1460, 1
        %v1462 = vadd.f32 %v1460, %v1461
        %v1463 = vsel %vm1288, %v1422, 0.0
        %v1464 = vrot.slane %v1463, 4
        %v1465 = vadd.f32 %v1463, %v1464
        %v1466 = vrot.slane %v1465, 2
        %v1467 = vadd.f32 %v1465, %v1466
        %v1468 = vrot.slane %v1467, 1
        %v1469 = vadd.f32 %v1467, %v1468
        %v1470 = vsel %vm1288, %v1424, 0.0
        %v1471 = vrot.slane %v1470, 4
        %v1472 = vadd.f32 %v1470, %v1471
        %v1473 = vrot.slane %v1472, 2
        %v1474 = vadd.f32 %v1472, %v1473
        %v1475 = vrot.slane %v1474, 1
        %v1476 = vadd.f32 %v1474, %v1475
        %v1477 = vsel %vm1288, %v1426, 0.0
        %v1478 = vrot.slane %v1477, 4
        %v1479 = vadd.f32 %v1477, %v1478
        %v1480 = vrot.slane %v1479, 2
        %v1481 = vadd.f32 %v1479, %v1480
        %v1482 = vrot.slane %v1481, 1
        %v1483 = vadd.f32 %v1481, %v1482
        %v1484 = vsel %vm1288, %v1428, 0.0
        %v1485 = vrot.slane %v1484, 4
        %v1486 = vadd.f32 %v1484, %v1485
        %v1487 = vrot.slane %v1486, 2
        %v1488 = vadd.f32 %v1486, %v1487
        %v1489 = vrot.slane %v1488, 1
        %v1490 = vadd.f32 %v1488, %v1489
        %v1491 = vsel %vm1288, %v1430, 0.0
        %v1492 = vrot.slane %v1491, 4
        %v1493 = vadd.f32 %v1491, %v1492
        %v1494 = vrot.slane %v1493, 2
        %v1495 = vadd.f32 %v1493, %v1494
        %v1496 = vrot.slane %v1495, 1
        %v1497 = vadd.f32 %v1495, %v1496
        %v1498 = vsel %vm1288, %v1432, 0.0
        %v1499 = vrot.slane %v1498, 4
        %v1500 = vadd.f32 %v1498, %v1499
        %v1501 = vrot.slane %v1500, 2
        %v1502 = vadd.f32 %v1500, %v1501
        %v1503 = vrot.slane %v1502, 1
        %v1504 = vadd.f32 %v1502, %v1503
        %v1505 = vsel %vm1288, %v1434, 0.0
        %v1506 = vrot.slane %v1505, 4
        %v1507 = vadd.f32 %v1505, %v1506
        %v1508 = vrot.slane %v1507, 2
        %v1509 = vadd.f32 %v1507, %v1508
        %v1510 = vrot.slane %v1509, 1
        %v1511 = vadd.f32 %v1509, %v1510
        %v1512 = vsel %vm1288, %v1436, 0.0
        %v1513 = vrot.slane %v1512, 4
        %v1514 = vadd.f32 %v1512, %v1513
        %v1515 = vrot.slane %v1514, 2
        %v1516 = vadd.f32 %v1514, %v1515
        %v1517 = vrot.slane %v1516, 1
        %v1518 = vadd.f32 %v1516, %v1517
        %v1519 = vsel %vm1288, %v1438, 0.0
        %v1520 = vrot.slane %v1519, 4
        %v1521 = vadd.f32 %v1519, %v1520
        %v1522 = vrot.slane %v1521, 2
        %v1523 = vadd.f32 %v1521, %v1522
        %v1524 = vrot.slane %v1523, 1
        %v1525 = vadd.f32 %v1523, %v1524
        %v1526 = vsel %vm1288, %v1440, 0.0
        %v1527 = vrot.slane %v1526, 4
        %v1528 = vadd.f32 %v1526, %v1527
        %v1529 = vrot.slane %v1528, 2
        %v1530 = vadd.f32 %v1528, %v1529
        %v1531 = vrot.slane %v1530, 1
        %v1532 = vadd.f32 %v1530, %v1531
        %v1533 = vsel %vm1288, %v1442, 0.0
        %v1534 = vrot.slane %v1533, 4
        %v1535 = vadd.f32 %v1533, %v1534
        %v1536 = vrot.slane %v1535, 2
        %v1537 = vadd.f32 %v1535, %v1536
        %v1538 = vrot.slane %v1537, 1
        %v1539 = vadd.f32 %v1537, %v1538
        %v1540 = vsel %vm1288, %v1444, 0.0
        %v1541 = vrot.slane %v1540, 4
        %v1542 = vadd.f32 %v1540, %v1541
        %v1543 = vrot.slane %v1542, 2
        %v1544 = vadd.f32 %v1542, %v1543
        %v1545 = vrot.slane %v1544, 1
        %v1546 = vadd.f32 %v1544, %v1545
        %v1547 = vsel %vm1288, %v1446, 0.0
        %v1548 = vrot.slane %v1547, 4
        %v1549 = vadd.f32 %v1547, %v1548
        %v1550 = vrot.slane %v1549, 2
        %v1551 = vadd.f32 %v1549, %v1550
        %v1552 = vrot.slane %v1551, 1
        %v1553 = vadd.f32 %v1551, %v1552
        %v1554 = vsel %vm1288, %v1448, 0.0
        %v1555 = vrot.slane %v1554, 4
        %v1556 = vadd.f32 %v1554, %v1555
        %v1557 = vrot.slane %v1556, 2
        %v1558 = vadd.f32 %v1556, %v1557
        %v1559 = vrot.slane %v1558, 1
        %v1560 = vadd.f32 %v1558, %v1559
        %v1561 = vrcp.pop %v1455
        %v1562 = vrcp.pop %v1462
        %v1563 = vrcp.pop %v1469
        %v1564 = vrcp.pop %v1476
        %v1565 = vrcp.pop %v1483
        %v1566 = vrcp.pop %v1490
        %v1567 = vrcp.pop %v1497
        %v1568 = vrcp.pop %v1504
        %v1569 = vrcp.pop %v1511
        %v1570 = vrcp.pop %v1518
        %v1571 = vrcp.pop %v1525
        %v1572 = vrcp.pop %v1532
        %v1573 = vrcp.pop %v1539
        %v1574 = vrcp.pop %v1546
        %v1575 = vrcp.pop %v1553
        %v1576 = vrcp.pop %v1560
        %v1577 = vmul.f32 %v1418, %v1561
        %v1578 = vmul.f32 %v1420, %v1562
        %v1579 = vmul.f32 %v1422, %v1563
        %v1580 = vmul.f32 %v1424, %v1564
        %v1581 = vmul.f32 %v1426, %v1565
        %v1582 = vmul.f32 %v1428, %v1566
        %v1583 = vmul.f32 %v1430, %v1567
        %v1584 = vmul.f32 %v1432, %v1568
        %v1585 = vmul.f32 %v1434, %v1569
        %v1586 = vmul.f32 %v1436, %v1570
        %v1587 = vmul.f32 %v1438, %v1571
        %v1588 = vmul.f32 %v1440, %v1572
        %v1589 = vmul.f32 %v1442, %v1573
        %v1590 = vmul.f32 %v1444, %v1574
        %v1591 = vmul.f32 %v1446, %v1575
        %v1592 = vmul.f32 %v1448, %v1576
        %1609 = vrot.lane.b32.xlu0 %v1577, 120
        %v1610 = vpop.permute.xlu0 %1609
        %1611 = vrot.lane.b32.xlu0 %v1578, 120
        %v1612 = vpop.permute.xlu0 %1611
        %1613 = vrot.lane.b32.xlu0 %v1579, 120
        %v1614 = vpop.permute.xlu0 %1613
        %1615 = vrot.lane.b32.xlu0 %v1580, 120
        %v1616 = vpop.permute.xlu0 %1615
        %1617 = vrot.lane.b32.xlu0 %v1581, 120
        %v1618 = vpop.permute.xlu0 %1617
        %1619 = vrot.lane.b32.xlu0 %v1582, 120
        %v1620 = vpop.permute.xlu0 %1619
        %1621 = vrot.lane.b32.xlu0 %v1583, 120
        %v1622 = vpop.permute.xlu0 %1621
        %1623 = vrot.lane.b32.xlu0 %v1584, 120
        %v1624 = vpop.permute.xlu0 %1623
        %1625 = vrot.lane.b32.xlu0 %v1585, 120
        %v1626 = vpop.permute.xlu0 %1625
        %1627 = vrot.lane.b32.xlu0 %v1586, 120
        %v1628 = vpop.permute.xlu0 %1627
        %1629 = vrot.lane.b32.xlu0 %v1587, 120
        %v1630 = vpop.permute.xlu0 %1629
        %1631 = vrot.lane.b32.xlu0 %v1588, 120
        %v1632 = vpop.permute.xlu0 %1631
        %1633 = vrot.lane.b32.xlu0 %v1589, 120
        %v1634 = vpop.permute.xlu0 %1633
        %1635 = vrot.lane.b32.xlu0 %v1590, 120
        %v1636 = vpop.permute.xlu0 %1635
        %1637 = vrot.lane.b32.xlu0 %v1591, 120
        %v1638 = vpop.permute.xlu0 %1637
        %1639 = vrot.lane.b32.xlu0 %v1592, 120
        %v1640 = vpop.permute.xlu0 %1639
        %v1657 = vmul.f32 %v1272, %v1610
        %v1658 = vmul.f32 %v1273, %v1612
        %v1659 = vmul.f32 %v1274, %v1614
        %v1660 = vmul.f32 %v1275, %v1616
        %v1661 = vmul.f32 %v1276, %v1618
        %v1662 = vmul.f32 %v1277, %v1620
        %v1663 = vmul.f32 %v1278, %v1622
        %v1664 = vmul.f32 %v1279, %v1624
        %v1665 = vmul.f32 %v1280, %v1626
        %v1666 = vmul.f32 %v1281, %v1628
        %v1667 = vmul.f32 %v1282, %v1630
        %v1668 = vmul.f32 %v1283, %v1632
        %v1669 = vmul.f32 %v1284, %v1634
        %v1670 = vmul.f32 %v1285, %v1636
        %v1671 = vmul.f32 %v1286, %v1638
        %v1672 = vmul.f32 %v1287, %v1640
        %v1673 = vsel %vm534, %v1657, 0.0
        %v1674 = vrot.slane %v1673, 4
        %v1675 = vadd.f32 %v1673, %v1674
        %v1676 = vrot.slane %v1675, 2
        %v1677 = vadd.f32 %v1675, %v1676
        %v1678 = vrot.slane %v1677, 1
        %v1679 = vadd.f32 %v1677, %v1678
        %v1680 = vsel %vm534, %v1658, 0.0
        %v1681 = vrot.slane %v1680, 4
        %v1682 = vadd.f32 %v1680, %v1681
        %v1683 = vrot.slane %v1682, 2
        %v1684 = vadd.f32 %v1682, %v1683
        %v1685 = vrot.slane %v1684, 1
        %v1686 = vadd.f32 %v1684, %v1685
        %v1687 = vsel %vm534, %v1659, 0.0
        %v1688 = vrot.slane %v1687, 4
        %v1689 = vadd.f32 %v1687, %v1688
        %v1690 = vrot.slane %v1689, 2
        %v1691 = vadd.f32 %v1689, %v1690
        %v1692 = vrot.slane %v1691, 1
        %v1693 = vadd.f32 %v1691, %v1692
        %v1694 = vsel %vm534, %v1660, 0.0
        %v1695 = vrot.slane %v1694, 4
        %v1696 = vadd.f32 %v1694, %v1695
        %v1697 = vrot.slane %v1696, 2
        %v1698 = vadd.f32 %v1696, %v1697
        %v1699 = vrot.slane %v1698, 1
        %v1700 = vadd.f32 %v1698, %v1699
        %v1701 = vsel %vm534, %v1661, 0.0
        %v1702 = vrot.slane %v1701, 4
        %v1703 = vadd.f32 %v1701, %v1702
        %v1704 = vrot.slane %v1703, 2
        %v1705 = vadd.f32 %v1703, %v1704
        %v1706 = vrot.slane %v1705, 1
        %v1707 = vadd.f32 %v1705, %v1706
        %v1708 = vsel %vm534, %v1662, 0.0
        %v1709 = vrot.slane %v1708, 4
        %v1710 = vadd.f32 %v1708, %v1709
        %v1711 = vrot.slane %v1710, 2
        %v1712 = vadd.f32 %v1710, %v1711
        %v1713 = vrot.slane %v1712, 1
        %v1714 = vadd.f32 %v1712, %v1713
        %v1715 = vsel %vm534, %v1663, 0.0
        %v1716 = vrot.slane %v1715, 4
        %v1717 = vadd.f32 %v1715, %v1716
        %v1718 = vrot.slane %v1717, 2
        %v1719 = vadd.f32 %v1717, %v1718
        %v1720 = vrot.slane %v1719, 1
        %v1721 = vadd.f32 %v1719, %v1720
        %v1722 = vsel %vm534, %v1664, 0.0
        %v1723 = vrot.slane %v1722, 4
        %v1724 = vadd.f32 %v1722, %v1723
        %v1725 = vrot.slane %v1724, 2
        %v1726 = vadd.f32 %v1724, %v1725
        %v1727 = vrot.slane %v1726, 1
        %v1728 = vadd.f32 %v1726, %v1727
        %v1729 = vsel %vm534, %v1665, 0.0
        %v1730 = vrot.slane %v1729, 4
        %v1731 = vadd.f32 %v1729, %v1730
        %v1732 = vrot.slane %v1731, 2
        %v1733 = vadd.f32 %v1731, %v1732
        %v1734 = vrot.slane %v1733, 1
        %v1735 = vadd.f32 %v1733, %v1734
        %v1736 = vsel %vm534, %v1666, 0.0
        %v1737 = vrot.slane %v1736, 4
        %v1738 = vadd.f32 %v1736, %v1737
        %v1739 = vrot.slane %v1738, 2
        %v1740 = vadd.f32 %v1738, %v1739
        %v1741 = vrot.slane %v1740, 1
        %v1742 = vadd.f32 %v1740, %v1741
        %v1743 = vsel %vm534, %v1667, 0.0
        %v1744 = vrot.slane %v1743, 4
        %v1745 = vadd.f32 %v1743, %v1744
        %v1746 = vrot.slane %v1745, 2
        %v1747 = vadd.f32 %v1745, %v1746
        %v1748 = vrot.slane %v1747, 1
        %v1749 = vadd.f32 %v1747, %v1748
        %v1750 = vsel %vm534, %v1668, 0.0
        %v1751 = vrot.slane %v1750, 4
        %v1752 = vadd.f32 %v1750, %v1751
        %v1753 = vrot.slane %v1752, 2
        %v1754 = vadd.f32 %v1752, %v1753
        %v1755 = vrot.slane %v1754, 1
        %v1756 = vadd.f32 %v1754, %v1755
        %v1757 = vsel %vm534, %v1669, 0.0
        %v1758 = vrot.slane %v1757, 4
        %v1759 = vadd.f32 %v1757, %v1758
        %v1760 = vrot.slane %v1759, 2
        %v1761 = vadd.f32 %v1759, %v1760
        %v1762 = vrot.slane %v1761, 1
        %v1763 = vadd.f32 %v1761, %v1762
        %v1764 = vsel %vm534, %v1670, 0.0
        %v1765 = vrot.slane %v1764, 4
        %v1766 = vadd.f32 %v1764, %v1765
        %v1767 = vrot.slane %v1766, 2
        %v1768 = vadd.f32 %v1766, %v1767
        %v1769 = vrot.slane %v1768, 1
        %v1770 = vadd.f32 %v1768, %v1769
        %v1771 = vsel %vm534, %v1671, 0.0
        %v1772 = vrot.slane %v1771, 4
        %v1773 = vadd.f32 %v1771, %v1772
        %v1774 = vrot.slane %v1773, 2
        %v1775 = vadd.f32 %v1773, %v1774
        %v1776 = vrot.slane %v1775, 1
        %v1777 = vadd.f32 %v1775, %v1776
        %v1778 = vsel %vm534, %v1672, 0.0
        %v1779 = vrot.slane %v1778, 4
        %v1780 = vadd.f32 %v1778, %v1779
        %v1781 = vrot.slane %v1780, 2
        %v1782 = vadd.f32 %v1780, %v1781
        %v1783 = vrot.slane %v1782, 1
        %v1784 = vadd.f32 %v1782, %v1783
        %v1785 = vpack.c.bf16 %v1166, %v1166
        %v1786 = vpack.c.bf16 %v1173, %v1173
        %v1787 = vpack.c.bf16 %v1180, %v1180
        %v1788 = vpack.c.bf16 %v1187, %v1187
        %v1789 = vpack.c.bf16 %v1194, %v1194
        %v1790 = vpack.c.bf16 %v1201, %v1201
        %v1791 = vpack.c.bf16 %v1208, %v1208
        %v1792 = vpack.c.bf16 %v1215, %v1215
        %v1793 = vpack.c.bf16 %v1222, %v1222
        %v1794 = vpack.c.bf16 %v1229, %v1229
        %v1795 = vpack.c.bf16 %v1236, %v1236
        %v1796 = vpack.c.bf16 %v1243, %v1243
        %v1797 = vpack.c.bf16 %v1250, %v1250
        %v1798 = vpack.c.bf16 %v1257, %v1257
        %v1799 = vpack.c.bf16 %v1264, %v1264
        %v1800 = vpack.c.bf16 %v1271, %v1271
        %v1801 = vld [vmem:[%s5] sm:$0xf]
        %v1802 = vpack.c.bf16 %v1679, %v1679
        %v1803 = vpack.c.bf16 %v1686, %v1686
        %v1804 = vpack.c.bf16 %v1693, %v1693
        %v1805 = vpack.c.bf16 %v1700, %v1700
        %v1806 = vpack.c.bf16 %v1707, %v1707
        %v1807 = vpack.c.bf16 %v1714, %v1714
        %v1808 = vpack.c.bf16 %v1721, %v1721
        %v1809 = vpack.c.bf16 %v1728, %v1728
        %v1810 = vpack.c.bf16 %v1735, %v1735
        %v1811 = vpack.c.bf16 %v1742, %v1742
        %v1812 = vpack.c.bf16 %v1749, %v1749
        %v1813 = vpack.c.bf16 %v1756, %v1756
        %v1814 = vpack.c.bf16 %v1763, %v1763
        %v1815 = vpack.c.bf16 %v1770, %v1770
        %v1816 = vpack.c.bf16 %v1777, %v1777
        %v1817 = vpack.c.bf16 %v1784, %v1784
        %v1818 = vld [vmem:[%s6] sm:$0xf]
        %v1835 = vunpack.c.l.b16 %v1802
        %v1836 = vunpack.c.l.b16 %v1803
        %v1837 = vunpack.c.l.b16 %v1804
        %v1838 = vunpack.c.l.b16 %v1805
        %v1839 = vunpack.c.l.b16 %v1806
        %v1840 = vunpack.c.l.b16 %v1807
        %v1841 = vunpack.c.l.b16 %v1808
        %v1842 = vunpack.c.l.b16 %v1809
        %v1843 = vunpack.c.l.b16 %v1810
        %v1844 = vunpack.c.l.b16 %v1811
        %v1845 = vunpack.c.l.b16 %v1812
        %v1846 = vunpack.c.l.b16 %v1813
        %v1847 = vunpack.c.l.b16 %v1814
        %v1848 = vunpack.c.l.b16 %v1815
        %v1849 = vunpack.c.l.b16 %v1816
        %v1850 = vunpack.c.l.b16 %v1817
        %vm1851 = vcmask 1041409
        %v1852 = vsel %vm1851, %v1836, %v1835
        %vm1853 = vcmask 1042434
        %v1854 = vsel %vm1853, %v1837, %v1852
        %vm1855 = vcmask 1043459
        %v1856 = vsel %vm1855, %v1838, %v1854
        %vm1857 = vcmask 1044484
        %v1858 = vsel %vm1857, %v1839, %v1856
        %vm1859 = vcmask 1045509
        %v1860 = vsel %vm1859, %v1840, %v1858
        %vm1861 = vcmask 1046534
        %v1862 = vsel %vm1861, %v1841, %v1860
        %vm1863 = vcmask 1047559
        %v1864 = vsel %vm1863, %v1842, %v1862
        %v1865 = vsel %vm1851, %v1844, %v1843
        %v1866 = vsel %vm1853, %v1845, %v1865
        %v1867 = vsel %vm1855, %v1846, %v1866
        %v1868 = vsel %vm1857, %v1847, %v1867
        %v1869 = vsel %vm1859, %v1848, %v1868
        %v1870 = vsel %vm1861, %v1849, %v1869
        %v1871 = vsel %vm1863, %v1850, %v1870
        %v1872 = vpack.c.b16 %v1871, %v1864
        %v1874 = vsel %vm534, %v1872, 0
        %v1877 = vsel %vm559, %v1818, 0
        %1879 = vmatprep.subr.bf16.mxu0 0
        %1880 = vmatpush1.bf16.msra.mxu0 0
        %1881 = vmatprep.subr.bf16.mxu0 0
        %1882 = vmatpush1.bf16.msra.mxu0 0
        %1883 = vmatprep.subr.bf16.mxu0 0
        %1884 = vmatpush1.bf16.msra.mxu0 0
        %1885 = vmatprep.subr.bf16.mxu0 0
        %1886 = vmatpush1.bf16.msra.mxu0 0
        %1887 = vmatprep.subr.bf16.mxu0 0
        %1888 = vmatpush1.bf16.msra.mxu0 0
        %1889 = vmatprep.subr.bf16.mxu0 0
        %1890 = vmatpush1.bf16.msra.mxu0 0
        %1891 = vmatprep.subr.bf16.mxu0 0
        %1892 = vmatpush1.bf16.msra.mxu0 0
        %1893 = vmatprep.subr.bf16.mxu0 0
        %1894 = vmatpush1.bf16.msra.mxu0 %v1877
        %1895 = vmatprep.subr.bf16.mxu0 0
        %1896 = vmatpush2.bf16.msra.mxu0 0
        %1897 = vmatprep.subr.bf16.mxu0 0
        %1898 = vmatpush2.bf16.msra.mxu0 0
        %1899 = vmatprep.subr.bf16.mxu0 0
        %1900 = vmatpush2.bf16.msra.mxu0 0
        %1901 = vmatprep.subr.bf16.mxu0 0
        %1902 = vmatpush2.bf16.msra.mxu0 0
        %1903 = vmatprep.subr.bf16.mxu0 0
        %1904 = vmatpush2.bf16.msra.mxu0 0
        %1905 = vmatprep.subr.bf16.mxu0 0
        %1906 = vmatpush2.bf16.msra.mxu0 0
        %1907 = vmatprep.subr.bf16.mxu0 0
        %1908 = vmatpush2.bf16.msra.mxu0 0
        %1909 = vmatprep.subr.bf16.mxu0 0
        %1910 = vmatpush2.bf16.msra.mxu0 0
        %1911 = vmatprep.mubr.bf16.mxu0 0
        %1912 = vmatmul.mubr.bf16.gmra.mxu0 %v1874
        %v1913 = vpop.f32.mrf.mxu0
        %v1914 = vadd.f32 0.0, %v1913
        %v1915 = vpop.f32.mrf.mxu0
        %v1916 = vpop.f32.mrf.mxu0
        %v1917 = vadd.f32 0.0, %v1916
        %v1918 = vpop.f32.mrf.mxu0
        %1919 = vdwg.mxu0
        %v1936 = vunpack.c.l.b16 %v1785
        %v1937 = vunpack.c.l.b16 %v1786
        %v1938 = vunpack.c.l.b16 %v1787
        %v1939 = vunpack.c.l.b16 %v1788
        %v1940 = vunpack.c.l.b16 %v1789
        %v1941 = vunpack.c.l.b16 %v1790
        %v1942 = vunpack.c.l.b16 %v1791
        %v1943 = vunpack.c.l.b16 %v1792
        %v1944 = vunpack.c.l.b16 %v1793
        %v1945 = vunpack.c.l.b16 %v1794
        %v1946 = vunpack.c.l.b16 %v1795
        %v1947 = vunpack.c.l.b16 %v1796
        %v1948 = vunpack.c.l.b16 %v1797
        %v1949 = vunpack.c.l.b16 %v1798
        %v1950 = vunpack.c.l.b16 %v1799
        %v1951 = vunpack.c.l.b16 %v1800
        %v1952 = vsel %vm1851, %v1937, %v1936
        %v1953 = vsel %vm1853, %v1938, %v1952
        %v1954 = vsel %vm1855, %v1939, %v1953
        %v1955 = vsel %vm1857, %v1940, %v1954
        %v1956 = vsel %vm1859, %v1941, %v1955
        %v1957 = vsel %vm1861, %v1942, %v1956
        %v1958 = vsel %vm1863, %v1943, %v1957
        %v1959 = vsel %vm1851, %v1945, %v1944
        %v1960 = vsel %vm1853, %v1946, %v1959
        %v1961 = vsel %vm1855, %v1947, %v1960
        %v1962 = vsel %vm1857, %v1948, %v1961
        %v1963 = vsel %vm1859, %v1949, %v1962
        %v1964 = vsel %vm1861, %v1950, %v1963
        %v1965 = vsel %vm1863, %v1951, %v1964
        %v1966 = vpack.c.b16 %v1965, %v1958
        %v1968 = vsel %vm534, %v1966, 0
        %v1971 = vsel %vm559, %v1801, 0
        %1973 = vmatprep.subr.bf16.mxu0 0
        %1974 = vmatpush1.bf16.msra.mxu0 0
        %1975 = vmatprep.subr.bf16.mxu0 0
        %1976 = vmatpush1.bf16.msra.mxu0 0
        %1977 = vmatprep.subr.bf16.mxu0 0
        %1978 = vmatpush1.bf16.msra.mxu0 0
        %1979 = vmatprep.subr.bf16.mxu0 0
        %1980 = vmatpush1.bf16.msra.mxu0 0
        %1981 = vmatprep.subr.bf16.mxu0 0
        %1982 = vmatpush1.bf16.msra.mxu0 0
        %1983 = vmatprep.subr.bf16.mxu0 0
        %1984 = vmatpush1.bf16.msra.mxu0 0
        %1985 = vmatprep.subr.bf16.mxu0 0
        %1986 = vmatpush1.bf16.msra.mxu0 0
        %1987 = vmatprep.subr.bf16.mxu0 0
        %1988 = vmatpush1.bf16.msra.mxu0 %v1971
        %1989 = vmatprep.subr.bf16.mxu0 0
        %1990 = vmatpush2.bf16.msra.mxu0 0
        %1991 = vmatprep.subr.bf16.mxu0 0
        %1992 = vmatpush2.bf16.msra.mxu0 0
        %1993 = vmatprep.subr.bf16.mxu0 0
        %1994 = vmatpush2.bf16.msra.mxu0 0
        %1995 = vmatprep.subr.bf16.mxu0 0
        %1996 = vmatpush2.bf16.msra.mxu0 0
        %1997 = vmatprep.subr.bf16.mxu0 0
        %1998 = vmatpush2.bf16.msra.mxu0 0
        %1999 = vmatprep.subr.bf16.mxu0 0
        %2000 = vmatpush2.bf16.msra.mxu0 0
        %2001 = vmatprep.subr.bf16.mxu0 0
        %2002 = vmatpush2.bf16.msra.mxu0 0
        %2003 = vmatprep.subr.bf16.mxu0 0
        %2004 = vmatpush2.bf16.msra.mxu0 0
        %2005 = vmatprep.mubr.bf16.mxu0 0
        %2006 = vmatmul.mubr.bf16.gmra.mxu0 %v1968
        %v2007 = vpop.f32.mrf.mxu0
        %v2008 = vadd.f32 %v1914, %v2007
        %v2009 = vpop.f32.mrf.mxu0
        %v2010 = vpop.f32.mrf.mxu0
        %v2011 = vadd.f32 %v1917, %v2010
        %v2012 = vpop.f32.mrf.mxu0
        %2013 = vdwg.mxu0
        %v2014 = vld [vmem:[%s7] sm:$0x1]
        %v2016 = vlaneseq
        %v2017 = vshrl.u32 %v2016, 7
        %v2018 = vsub.s32 0, %v2017
        %v2019 = vrot.slane %v2014, %v2018
        %v2021 = vadd.f32 %v2008, %v2019
        %v2022 = vadd.f32 %v2011, %v2019
        %v2023 = vmax.f32 %v2021, 0.0
        %v2024 = vmax.f32 %v2022, 0.0
        %v2025 = vpack.c.bf16 %v2024, %v2023
        %v2026 = vld [vmem:[%s8] sm:$0xf]
        %v2027 = vld [vmem:[%s8 + $0x4] sm:$0xf]
        %v2028 = vld [vmem:[%s9] sm:$0x1]
        %v2030 = vlaneseq
        %v2031 = vshrl.u32 %v2030, 7
        %v2032 = vsub.s32 0, %v2031
        %v2033 = vrot.slane %v2028, %v2032
        %v2037 = vunpack.c.l.b16 %v2026
        %v2038 = vunpack.c.l.b16 %v2027
        %v2039 = vpack.c.b16 %v2038, %v2037
        %vm2041 = vcmask 130048
        %v2043 = vsel %vm2041, %v2025, 0
        %2045 = vmatprep.subr.bf16.mxu0 0
        %2046 = vmatpush1.bf16.msra.mxu0 0
        %2047 = vmatprep.subr.bf16.mxu0 0
        %2048 = vmatpush1.bf16.msra.mxu0 0
        %2049 = vmatprep.subr.bf16.mxu0 0
        %2050 = vmatpush1.bf16.msra.mxu0 0
        %2051 = vmatprep.subr.bf16.mxu0 0
        %2052 = vmatpush1.bf16.msra.mxu0 0
        %2053 = vmatprep.subr.bf16.mxu0 0
        %2054 = vmatpush1.bf16.msra.mxu0 0
        %2055 = vmatprep.subr.bf16.mxu0 0
        %2056 = vmatpush1.bf16.msra.mxu0 0
        %2057 = vmatprep.subr.bf16.mxu0 0
        %2058 = vmatpush1.bf16.msra.mxu0 0
        %2059 = vmatprep.subr.bf16.mxu0 0
        %2060 = vmatpush1.bf16.msra.mxu0 %v2039
        %2061 = vmatprep.subr.bf16.mxu0 0
        %2062 = vmatpush2.bf16.msra.mxu0 0
        %2063 = vmatprep.subr.bf16.mxu0 0
        %2064 = vmatpush2.bf16.msra.mxu0 0
        %2065 = vmatprep.subr.bf16.mxu0 0
        %2066 = vmatpush2.bf16.msra.mxu0 0
        %2067 = vmatprep.subr.bf16.mxu0 0
        %2068 = vmatpush2.bf16.msra.mxu0 0
        %2069 = vmatprep.subr.bf16.mxu0 0
        %2070 = vmatpush2.bf16.msra.mxu0 0
        %2071 = vmatprep.subr.bf16.mxu0 0
        %2072 = vmatpush2.bf16.msra.mxu0 0
        %2073 = vmatprep.subr.bf16.mxu0 0
        %2074 = vmatpush2.bf16.msra.mxu0 0
        %2075 = vmatprep.subr.bf16.mxu0 0
        %2076 = vmatpush2.bf16.msra.mxu0 0
        %2077 = vmatprep.mubr.bf16.mxu0 0
        %2078 = vmatmul.mubr.bf16.gmra.mxu0 %v2043
        %v2079 = vpop.f32.mrf.mxu0
        %v2080 = vadd.f32 %v2033, %v2079
        %v2081 = vpop.f32.mrf.mxu0
        %v2082 = vpop.f32.mrf.mxu0
        %v2083 = vadd.f32 %v2033, %v2082
        %v2084 = vpop.f32.mrf.mxu0
        %2085 = vdwg.mxu0
        %v2086 = vld [vmem:[%s456] sm:$0xff]
        %v2087 = vld [vmem:[%s456 + $0x8] sm:$0xff]
        %v2088 = vpack.c.bf16 %v2087, %v2086
        %v2089 = vld [vmem:[%s10] sm:$0xf]
        %v2091 = vsel %vm534, %v2088, 0
        %v2094 = vsel %vm559, %v2089, 0
        %2096 = vmatprep.subr.bf16.mxu0 0
        %2097 = vmatpush1.bf16.msra.mxu0 0
        %2098 = vmatprep.subr.bf16.mxu0 0
        %2099 = vmatpush1.bf16.msra.mxu0 0
        %2100 = vmatprep.subr.bf16.mxu0 0
        %2101 = vmatpush1.bf16.msra.mxu0 0
        %2102 = vmatprep.subr.bf16.mxu0 0
        %2103 = vmatpush1.bf16.msra.mxu0 0
        %2104 = vmatprep.subr.bf16.mxu0 0
        %2105 = vmatpush1.bf16.msra.mxu0 0
        %2106 = vmatprep.subr.bf16.mxu0 0
        %2107 = vmatpush1.bf16.msra.mxu0 0
        %2108 = vmatprep.subr.bf16.mxu0 0
        %2109 = vmatpush1.bf16.msra.mxu0 0
        %2110 = vmatprep.subr.bf16.mxu0 0
        %2111 = vmatpush1.bf16.msra.mxu0 %v2094
        %2112 = vmatprep.subr.bf16.mxu0 0
        %2113 = vmatpush2.bf16.msra.mxu0 0
        %2114 = vmatprep.subr.bf16.mxu0 0
        %2115 = vmatpush2.bf16.msra.mxu0 0
        %2116 = vmatprep.subr.bf16.mxu0 0
        %2117 = vmatpush2.bf16.msra.mxu0 0
        %2118 = vmatprep.subr.bf16.mxu0 0
        %2119 = vmatpush2.bf16.msra.mxu0 0
        %2120 = vmatprep.subr.bf16.mxu0 0
        %2121 = vmatpush2.bf16.msra.mxu0 0
        %2122 = vmatprep.subr.bf16.mxu0 0
        %2123 = vmatpush2.bf16.msra.mxu0 0
        %2124 = vmatprep.subr.bf16.mxu0 0
        %2125 = vmatpush2.bf16.msra.mxu0 0
        %2126 = vmatprep.subr.bf16.mxu0 0
        %2127 = vmatpush2.bf16.msra.mxu0 0
        %2128 = vmatprep.mubr.bf16.mxu0 0
        %2129 = vmatmul.mubr.bf16.gmra.mxu0 %v2091
        %v2130 = vpop.f32.mrf.mxu0
        %v2131 = vadd.f32 0.0, %v2130
        %v2132 = vpop.f32.mrf.mxu0
        %v2133 = vpop.f32.mrf.mxu0
        %v2134 = vadd.f32 0.0, %v2133
        %v2135 = vpop.f32.mrf.mxu0
        %2136 = vdwg.mxu0
        %v2137 = vadd.f32 %v2080, %v2131
        %v2138 = vadd.f32 %v2083, %v2134
        %v2139 = vld [vmem:[%s11] sm:$0x1]
        %v2141 = vlaneseq
        %v2142 = vshrl.u32 %v2141, 7
        %v2143 = vsub.s32 0, %v2142
        %v2144 = vrot.slane %v2139, %v2143
        %v2146 = vadd.f32 %v2137, %v2144
        %v2147 = vadd.f32 %v2138, %v2144
        %vm2148 = vcmp.gt.f32.partialorder %v2146, 0.0
        %vm2149 = vcmp.gt.f32.partialorder %v2147, 0.0
        %v2150 = vmul.f32 %v2146, 0.2
        %v2151 = vmul.f32 %v2147, 0.2
        %v2152 = vsel %vm2148, %v2146, %v2150
        %v2153 = vsel %vm2149, %v2147, %v2151
        %vm2154 = vcmask 261120
        %2155 = vst.msk [vmem:[%s439] sm:$0xff] %vm2154, %v2152
        %2156 = vst.msk [vmem:[%s439 + $0x8] sm:$0xff] %vm2154, %v2153
        %s2157 = sand.u32 %s301, 1
        %s2158 = scalar_lea.sflag [#allocation3], %s2157
        %s2159 = sand.u32 %s301, 1
        %s2160 = smul.addr %s2159, 16
        %s2161 = scalar_lea.vmem [#allocation2], %s2160
        // Predicated region
        $region69: #{dilated_res_block.5} parent=67 // pred_check
          %p2162 = pneg %p311
        $region70: #{dilated_res_block.5} parent=67 // pred_check_branch
          %2164 = sbr.rel (%p2162) target = $region72
        $region71: #{dilated_res_block.5} parent=67 // pred_region
          %s2165 = smul.u32 2, %s26
          %s2167 = ssub.s32 256, 256
          %2168 = vsyncadd %s2158, %s2167
          %s2169 = smul.addr %s2165, 128
          %s2170 = scalar_lea.hbm %s12, %s2169
          %s2171 = sshll.u32 %s2161, 4
          %s2172 = int_to_ptr.vmem [resolvable:$true] %s2171
          %2177 = dma.vmem_to_hbm [thread:$0]  %s2172, 256, %s2170, %s2158, 128, 128, 8
        $region72: #{dilated_res_block.5} parent=67 // pred_fallthru
          _
      $region68: #{dilated_res_block.5} parent=5 // pred_fallthru
        _
      %p2178 = scmp.le.s32.totalorder 2, %s21
      // Predicated region
      $region73: #{dilated_res_block.5} parent=5 // pred_check
        %p2179 = pneg %p2178
      $region74: #{dilated_res_block.5} parent=5 // pred_check_branch
        %2181 = sbr.rel (%p2179) target = $region76
      $region75: #{dilated_res_block.5} parent=5 // pred_region
        %s2182 = ssub.s32 %s21, 2
        // Predicated region
        $region77: #{dilated_res_block.5} parent=75 // pred_check
          %p2183 = pneg %p317
        $region78: #{dilated_res_block.5} parent=75 // pred_check_branch
          %2185 = sbr.rel (%p2183) target = $region80
        $region79: #{dilated_res_block.5} parent=75 // pred_region
          %s2186 = sand.u32 %s302, 1
          %s2187 = scalar_lea.sflag [#allocation3], %s2186
          %s2188 = sand.u32 %s302, 1
          %s2189 = smul.addr %s2188, 16
          %s2190 = scalar_lea.vmem [#allocation2], %s2189
          %2191 = dma.done %s2187, 256
        $region80: #{dilated_res_block.5} parent=75 // pred_fallthru
          _
      $region76: #{dilated_res_block.5} parent=5 // pred_fallthru
        _
    $region6: #{dilated_res_block.5} parent=1 // loop_footer
      %s25 = sadd.s32 1, %s21
    $region7: #{dilated_res_block.5} parent=1 // loop_footer_branch
      %20 = sbr.rel target = $region3
    $region8: #{dilated_res_block.5} parent=1 // loop_exit
      _
    %2192 = vsyncpa [#allocation3], 1
    %s2193 = scalar_lea.sflag [#allocation3], 1
    %2194 = vsyncpa %s2193, 1

</llo_original>
